<compile_context>
chip_gen: v5e
topology: v5e:2x2
jax: 0.10.0
libtpu: 0.0.40
codegen_flags: <defaults>
</compile_context>

<pallas_src>
import numpy as np
import jax
import jax.numpy as jnp
from jax.experimental import pallas as pl
from jax.experimental.pallas import tpu as pltpu


# ---------------------------------------------------------------------------
# Pallas kernel: whole Decoder (4 blocks), one batch element per grid step.
# ---------------------------------------------------------------------------
def decoder_kernel(*refs):
    (x4_ref, x3_ref, x2_ref, x1_ref, x0_ref,
     u_a, s_a, w1u_a, w1s_a, w2_a, b_a,
     u_b, s_b, w1u_b, w1s_b, w2_b, b_b,
     u_c, s_c, w1u_c, w1s_c, w2_c, b_c,
     u_d, s_d, w1u_d, w1s_d, w2_d, b_d,
     o_ref) = refs

    f32 = jnp.float32

    def block(x, skip, u_ref, s_ref, w1u_ref, w1s_ref, w2_ref, b_ref):
        cout = w2_ref.shape[0]

        # conv1 up-path: apply the (BN-scaled) up-channel weights BEFORE the
        # length expansion, then expand with the shifted upsample matrices.
        #   up_contrib = sum_t (s1*W1_t^{up} @ x) @ U_t
        yu = jnp.dot(w1u_ref[...], x, preferred_element_type=f32)    # (3*Cout, Lin)
        up_c = (jnp.dot(yu[:cout], u_ref[0], preferred_element_type=f32)
                + jnp.dot(yu[cout:2 * cout], u_ref[1], preferred_element_type=f32)
                + jnp.dot(yu[2 * cout:], u_ref[2], preferred_element_type=f32))

        s_m1 = s_ref[0]   # (L, L): (v @ s_m1)[:, t] = v[:, t-1] (0 at t=0)
        s_p1 = s_ref[1]   # (L, L): (v @ s_p1)[:, t] = v[:, t+1] (0 at t=L-1)

        # conv1 skip-path: im2col over the 3 taps -> ONE wide-K matmul.
        v1 = jnp.concatenate(
            [jnp.dot(skip, s_m1, preferred_element_type=f32),
             skip,
             jnp.dot(skip, s_p1, preferred_element_type=f32)],
            axis=0)                                                  # (3*Cskip, L)
        h = jnp.maximum(
            up_c + jnp.dot(w1s_ref[...], v1, preferred_element_type=f32)
            + b_ref[0], 0.0)

        # conv2: same im2col single-matmul scheme.
        v2 = jnp.concatenate(
            [jnp.dot(h, s_m1, preferred_element_type=f32),
             h,
             jnp.dot(h, s_p1, preferred_element_type=f32)],
            axis=0)                                                  # (3*Cout, L)
        return jnp.maximum(
            jnp.dot(w2_ref[...], v2, preferred_element_type=f32) + b_ref[1], 0.0)

    y = block(x4_ref[...], x3_ref[...], u_a, s_a, w1u_a, w1s_a, w2_a, b_a)
    y = block(y, x2_ref[...], u_b, s_b, w1u_b, w1s_b, w2_b, b_b)
    y = block(y, x1_ref[...], u_c, s_c, w1u_c, w1s_c, w2_c, b_c)
    y = block(y, x0_ref[...], u_d, s_d, w1u_d, w1s_d, w2_d, b_d)
    o_ref[...] = y.astype(o_ref.dtype)


def decoder_forward(xs, params):
    """xs: encoder features [x0..x4], each (B, C_i, L_i) -> (B, Cout_last, L0)."""
    B = xs[0].shape[0]
    cout = params[3]["W2"].shape[0]
    lout = xs[0].shape[2]

    acts = [xs[4], xs[3], xs[2], xs[1], xs[0]]
    in_specs = []
    args = []
    for a in acts:
        c, l = a.shape[1], a.shape[2]
        # leading batch dim squeezed -> kernel sees (C, L) refs directly
        in_specs.append(pl.BlockSpec((None, c, l), lambda b: (b, 0, 0)))
        args.append(a)
    for p in params:
        for name in ("U3", "S2", "W1U", "W1S", "W2", "B"):
            a = p[name]
            args.append(a)
            if a.ndim == 3:
                in_specs.append(pl.BlockSpec(a.shape, lambda b: (0, 0, 0)))
            else:
                in_specs.append(pl.BlockSpec(a.shape, lambda b: (0, 0)))

    return pl.pallas_call(
        decoder_kernel,
        out_shape=jax.ShapeDtypeStruct((B, cout, lout), jnp.float32),
        grid_spec=pltpu.PrefetchScalarGridSpec(
            num_scalar_prefetch=0,
            grid=(B,),
            in_specs=in_specs,
            out_specs=pl.BlockSpec((None, cout, lout), lambda b: (b, 0, 0)),
        ),
        compiler_params=pltpu.CompilerParams(
            dimension_semantics=("parallel",)),
    )(*args)


# ---------------------------------------------------------------------------
# Glue: interpolation / shift matrices, parameter init, pure-JAX reference.
# ---------------------------------------------------------------------------
def upsample_matrix(lin, lout):
    """F.interpolate(mode='linear', align_corners=True, scale_factor=2) as (lin, lout)."""
    j = np.arange(lout)
    pos = j * (lin - 1) / (lout - 1)
    lo = np.floor(pos).astype(np.int64)
    hi = np.minimum(lo + 1, lin - 1)
    frac = (pos - lo).astype(np.float32)
    U = np.zeros((lin, lout), np.float32)
    U[lo, j] += (1.0 - frac)
    U[hi, j] += frac
    return U


def shift_matrices(l):
    # (v @ s_m1)[:, t] = v[:, t-1] (0 at t=0); (v @ s_p1)[:, t] = v[:, t+1] (0 at t=l-1)
    s_m1 = np.eye(l, k=1, dtype=np.float32)
    s_p1 = np.eye(l, k=-1, dtype=np.float32)
    return s_m1, s_p1


def init_block_params(key, cin, cskip, cout, lin):
    ks = jax.random.split(key, 10)
    eps = 1e-5
    fan1 = (cin + cskip) * 3
    w1 = jax.random.normal(ks[0], (3, cout, cin + cskip), jnp.float32) / np.sqrt(fan1)
    fan2 = cout * 3
    w2 = jax.random.normal(ks[1], (3, cout, cout), jnp.float32) / np.sqrt(fan2)

    def bn(kg, kb, km, kv):
        g = 1.0 + 0.1 * jax.random.normal(kg, (cout, 1), jnp.float32)
        b = 0.1 * jax.random.normal(kb, (cout, 1), jnp.float32)
        mu = 0.1 * jax.random.normal(km, (cout, 1), jnp.float32)
        var = 1.0 + 0.1 * jnp.abs(jax.random.normal(kv, (cout, 1), jnp.float32))
        s = g / jnp.sqrt(var + eps)
        return s, b - mu * s

    s1, b1 = bn(ks[2], ks[3], ks[4], ks[5])
    s2, b2 = bn(ks[6], ks[7], ks[8], ks[9])

    lout = 2 * lin
    u0 = upsample_matrix(lin, lout)
    s_m1, s_p1 = shift_matrices(lout)
    # U_t already carries the conv1 halo shift for tap t in {-1, 0, +1}.
    u3 = jnp.asarray(np.stack([u0 @ s_m1, u0, u0 @ s_p1], axis=0))   # (3, lin, lout)
    shift = jnp.asarray(np.stack([s_m1, s_p1], axis=0))              # (2, lout, lout)

    # conv1 up-channel weights: BN scale folded in, taps stacked along rows
    # (matches yu[:cout], yu[cout:2cout], yu[2cout:] in the kernel).
    w1u = jnp.concatenate(
        [w1[0, :, :cin] * s1, w1[1, :, :cin] * s1, w1[2, :, :cin] * s1],
        axis=0)                                                      # (3*cout, cin)
    # conv1 skip-channel im2col weights; column order [tap-1 | tap0 | tap+1].
    w1s = jnp.concatenate(
        [w1[0, :, cin:], w1[1, :, cin:], w1[2, :, cin:]], axis=1) * s1   # (cout, 3*cskip)
    w2_cat = jnp.concatenate([w2[0], w2[1], w2[2]], axis=1) * s2         # (cout, 3*cout)
    bias = jnp.stack([b1, b2], axis=0)                                   # (2, cout, 1)

    return {
        # fused-kernel params
        "U3": u3, "S2": shift, "W1U": w1u, "W1S": w1s, "W2": w2_cat, "B": bias,
        # raw params for the pure-JAX reference
        "w1": w1, "w2": w2, "s1": s1, "b1": b1, "s2": s2, "b2": b2,
        "U": jnp.asarray(u0),
    }


def ref_block(x, skip, p):
    up = jnp.einsum("bcl,lm->bcm", x, p["U"],
                    precision=jax.lax.Precision.HIGHEST)
    cat = jnp.concatenate([up, skip], axis=1)

    def conv1d(v, w):  # w: (3, Cout, Cin)
        w_t = jnp.transpose(w, (1, 2, 0))  # (Cout, Cin, 3)
        return jax.lax.conv_general_dilated(
            v, w_t, window_strides=(1,), padding=((1, 1),),
            dimension_numbers=("NCH", "OIH", "NCH"),
            precision=jax.lax.Precision.HIGHEST)

    h = jnp.maximum(conv1d(cat, p["w1"]) * p["s1"][None] + p["b1"][None], 0.0)
    return jnp.maximum(conv1d(h, p["w2"]) * p["s2"][None] + p["b2"][None], 0.0)


def ref_forward(xs, params):
    x = ref_block(xs[4], xs[3], params[0])
    x = ref_block(x, xs[2], params[1])
    x = ref_block(x, xs[1], params[2])
    x = ref_block(x, xs[0], params[3])
    return x


# ---------------------------------------------------------------------------
if __name__ == "__main__":
    # Scaled-down channel config (original /16): encoder [8,16,32,64,128],
    # decoder [64,32,16,8]; lengths halve per encoder level.
    enc = [8, 16, 32, 64, 128]
    dec = [64, 32, 16, 8]
    lens = [128, 64, 32, 16, 8]
    B = 2

    key = jax.random.PRNGKey(0)
    kx, kp = jax.random.split(key)
    xkeys = jax.random.split(kx, 5)
    xs = [jax.random.normal(xkeys[i], (B, enc[i], lens[i]), jnp.float32)
          for i in range(5)]

    pkeys = jax.random.split(kp, 4)
    # (cin, cskip, cout, lin) per block, applied in order block4..block1
    cfgs = [
        (enc[4], enc[3], dec[0], lens[4]),
        (dec[0], enc[2], dec[1], lens[3]),
        (dec[1], enc[1], dec[2], lens[2]),
        (dec[2], enc[0], dec[3], lens[1]),
    ]
    params = [init_block_params(pkeys[i], *cfgs[i]) for i in range(4)]

    out = jax.block_until_ready(decoder_forward(xs, params))
    assert out.shape == (B, dec[3], lens[0]), out.shape

    ref = jax.block_until_ready(ref_forward(xs, params))
    # MXU f32 matmuls vs HIGHEST-precision XLA conv reference; the fold /
    # reassociation tricks are algebraically exact.
    np.testing.assert_allclose(np.asarray(out), np.asarray(ref),
                               rtol=1e-3, atol=1e-3)
    print("KERNEL_OK")
</pallas_src>

<mosaic_0001>
module attributes {stable_mosaic.version = 11 : i64} {
  func.func @decoder_kernel(%arg0: i32, %arg1: memref<1x128x8xf32, #tpu.memory_space<vmem>>, %arg2: memref<1x64x16xf32, #tpu.memory_space<vmem>>, %arg3: memref<1x32x32xf32, #tpu.memory_space<vmem>>, %arg4: memref<1x16x64xf32, #tpu.memory_space<vmem>>, %arg5: memref<1x8x128xf32, #tpu.memory_space<vmem>>, %arg6: memref<3x8x16xf32, #tpu.memory_space<vmem>>, %arg7: memref<2x16x16xf32, #tpu.memory_space<vmem>>, %arg8: memref<192x128xf32, #tpu.memory_space<vmem>>, %arg9: memref<64x192xf32, #tpu.memory_space<vmem>>, %arg10: memref<64x192xf32, #tpu.memory_space<vmem>>, %arg11: memref<2x64x1xf32, #tpu.memory_space<vmem>>, %arg12: memref<3x16x32xf32, #tpu.memory_space<vmem>>, %arg13: memref<2x32x32xf32, #tpu.memory_space<vmem>>, %arg14: memref<96x64xf32, #tpu.memory_space<vmem>>, %arg15: memref<32x96xf32, #tpu.memory_space<vmem>>, %arg16: memref<32x96xf32, #tpu.memory_space<vmem>>, %arg17: memref<2x32x1xf32, #tpu.memory_space<vmem>>, %arg18: memref<3x32x64xf32, #tpu.memory_space<vmem>>, %arg19: memref<2x64x64xf32, #tpu.memory_space<vmem>>, %arg20: memref<48x32xf32, #tpu.memory_space<vmem>>, %arg21: memref<16x48xf32, #tpu.memory_space<vmem>>, %arg22: memref<16x48xf32, #tpu.memory_space<vmem>>, %arg23: memref<2x16x1xf32, #tpu.memory_space<vmem>>, %arg24: memref<3x64x128xf32, #tpu.memory_space<vmem>>, %arg25: memref<2x128x128xf32, #tpu.memory_space<vmem>>, %arg26: memref<24x16xf32, #tpu.memory_space<vmem>>, %arg27: memref<8x24xf32, #tpu.memory_space<vmem>>, %arg28: memref<8x24xf32, #tpu.memory_space<vmem>>, %arg29: memref<2x8x1xf32, #tpu.memory_space<vmem>>, %arg30: memref<1x8x128xf32, #tpu.memory_space<vmem>>) attributes {dimension_semantics = [#tpu.dimension_semantics<parallel>], iteration_bounds = array<i64: 2>, scalar_prefetch = 0 : i64, scratch_operands = 0 : i64, tpu.core_type = #tpu.core_type<tc>, window_params = [{transform_indices = @transform_0, window_bounds = array<i64: 1, 128, 8>}, {transform_indices = @transform_1, window_bounds = array<i64: 1, 64, 16>}, {transform_indices = @transform_2, window_bounds = array<i64: 1, 32, 32>}, {transform_indices = @transform_3, window_bounds = array<i64: 1, 16, 64>}, {transform_indices = @transform_4, window_bounds = array<i64: 1, 8, 128>}, {pipeline_mode = #tpu.pipeline_mode<synchronous>, transform_indices = @transform_5, window_bounds = array<i64: 3, 8, 16>}, {pipeline_mode = #tpu.pipeline_mode<synchronous>, transform_indices = @transform_6, window_bounds = array<i64: 2, 16, 16>}, {pipeline_mode = #tpu.pipeline_mode<synchronous>, transform_indices = @transform_7, window_bounds = array<i64: 192, 128>}, {pipeline_mode = #tpu.pipeline_mode<synchronous>, transform_indices = @transform_8, window_bounds = array<i64: 64, 192>}, {pipeline_mode = #tpu.pipeline_mode<synchronous>, transform_indices = @transform_9, window_bounds = array<i64: 64, 192>}, {pipeline_mode = #tpu.pipeline_mode<synchronous>, transform_indices = @transform_10, window_bounds = array<i64: 2, 64, 1>}, {pipeline_mode = #tpu.pipeline_mode<synchronous>, transform_indices = @transform_11, window_bounds = array<i64: 3, 16, 32>}, {pipeline_mode = #tpu.pipeline_mode<synchronous>, transform_indices = @transform_12, window_bounds = array<i64: 2, 32, 32>}, {pipeline_mode = #tpu.pipeline_mode<synchronous>, transform_indices = @transform_13, window_bounds = array<i64: 96, 64>}, {pipeline_mode = #tpu.pipeline_mode<synchronous>, transform_indices = @transform_14, window_bounds = array<i64: 32, 96>}, {pipeline_mode = #tpu.pipeline_mode<synchronous>, transform_indices = @transform_15, window_bounds = array<i64: 32, 96>}, {pipeline_mode = #tpu.pipeline_mode<synchronous>, transform_indices = @transform_16, window_bounds = array<i64: 2, 32, 1>}, {pipeline_mode = #tpu.pipeline_mode<synchronous>, transform_indices = @transform_17, window_bounds = array<i64: 3, 32, 64>}, {pipeline_mode = #tpu.pipeline_mode<synchronous>, transform_indices = @transform_18, window_bounds = array<i64: 2, 64, 64>}, {pipeline_mode = #tpu.pipeline_mode<synchronous>, transform_indices = @transform_19, window_bounds = array<i64: 48, 32>}, {pipeline_mode = #tpu.pipeline_mode<synchronous>, transform_indices = @transform_20, window_bounds = array<i64: 16, 48>}, {pipeline_mode = #tpu.pipeline_mode<synchronous>, transform_indices = @transform_21, window_bounds = array<i64: 16, 48>}, {pipeline_mode = #tpu.pipeline_mode<synchronous>, transform_indices = @transform_22, window_bounds = array<i64: 2, 16, 1>}, {pipeline_mode = #tpu.pipeline_mode<synchronous>, transform_indices = @transform_23, window_bounds = array<i64: 3, 64, 128>}, {pipeline_mode = #tpu.pipeline_mode<synchronous>, transform_indices = @transform_24, window_bounds = array<i64: 2, 128, 128>}, {pipeline_mode = #tpu.pipeline_mode<synchronous>, transform_indices = @transform_25, window_bounds = array<i64: 24, 16>}, {pipeline_mode = #tpu.pipeline_mode<synchronous>, transform_indices = @transform_26, window_bounds = array<i64: 8, 24>}, {pipeline_mode = #tpu.pipeline_mode<synchronous>, transform_indices = @transform_27, window_bounds = array<i64: 8, 24>}, {pipeline_mode = #tpu.pipeline_mode<synchronous>, transform_indices = @transform_28, window_bounds = array<i64: 2, 8, 1>}, {transform_indices = @transform_29, window_bounds = array<i64: 1, 8, 128>}]} {
    %c0 = arith.constant 0 : index
    %c0_0 = arith.constant 0 : index
    %c0_1 = arith.constant 0 : index
    %0 = vector.load %arg1[%c0, %c0_0, %c0_1] : memref<1x128x8xf32, #tpu.memory_space<vmem>>, vector<1x128x8xf32>
    %1 = vector.shape_cast %0 : vector<1x128x8xf32> to vector<128x8xf32>
    %c0_2 = arith.constant 0 : index
    %c0_3 = arith.constant 0 : index
    %c0_4 = arith.constant 0 : index
    %2 = vector.load %arg2[%c0_2, %c0_3, %c0_4] : memref<1x64x16xf32, #tpu.memory_space<vmem>>, vector<1x64x16xf32>
    %3 = vector.shape_cast %2 : vector<1x64x16xf32> to vector<64x16xf32>
    %c0_5 = arith.constant 0 : index
    %c0_6 = arith.constant 0 : index
    %4 = vector.load %arg8[%c0_5, %c0_6] : memref<192x128xf32, #tpu.memory_space<vmem>>, vector<192x128xf32>
    %cst = arith.constant dense<0.000000e+00> : vector<192x8xf32>
    %5 = tpu.matmul %4, %1, %cst {dimension_numbers = #tpu.dot_dimension_numbers<[1], [0], [0], [1], [0, 0, 1, 1], [], []>} : vector<192x128xf32>, vector<128x8xf32>, vector<192x8xf32> -> vector<192x8xf32>
    %6 = vector.extract_strided_slice %5 {offsets = [0, 0], sizes = [64, 8], strides = [1, 1]} : vector<192x8xf32> to vector<64x8xf32>
    %c0_7 = arith.constant 0 : index
    %c0_8 = arith.constant 0 : index
    %c0_9 = arith.constant 0 : index
    %7 = vector.load %arg6[%c0_7, %c0_8, %c0_9] : memref<3x8x16xf32, #tpu.memory_space<vmem>>, vector<1x8x16xf32>
    %8 = vector.shape_cast %7 : vector<1x8x16xf32> to vector<8x16xf32>
    %cst_10 = arith.constant dense<0.000000e+00> : vector<64x16xf32>
    %9 = tpu.matmul %6, %8, %cst_10 {dimension_numbers = #tpu.dot_dimension_numbers<[1], [0], [0], [1], [0, 0, 1, 1], [], []>} : vector<64x8xf32>, vector<8x16xf32>, vector<64x16xf32> -> vector<64x16xf32>
    %10 = vector.extract_strided_slice %5 {offsets = [64, 0], sizes = [64, 8], strides = [1, 1]} : vector<192x8xf32> to vector<64x8xf32>
    %c1 = arith.constant 1 : index
    %c0_11 = arith.constant 0 : index
    %c0_12 = arith.constant 0 : index
    %11 = vector.load %arg6[%c1, %c0_11, %c0_12] : memref<3x8x16xf32, #tpu.memory_space<vmem>>, vector<1x8x16xf32>
    %12 = vector.shape_cast %11 : vector<1x8x16xf32> to vector<8x16xf32>
    %cst_13 = arith.constant dense<0.000000e+00> : vector<64x16xf32>
    %13 = tpu.matmul %10, %12, %cst_13 {dimension_numbers = #tpu.dot_dimension_numbers<[1], [0], [0], [1], [0, 0, 1, 1], [], []>} : vector<64x8xf32>, vector<8x16xf32>, vector<64x16xf32> -> vector<64x16xf32>
    %14 = arith.addf %9, %13 : vector<64x16xf32>
    %15 = vector.extract_strided_slice %5 {offsets = [128, 0], sizes = [64, 8], strides = [1, 1]} : vector<192x8xf32> to vector<64x8xf32>
    %c2 = arith.constant 2 : index
    %c0_14 = arith.constant 0 : index
    %c0_15 = arith.constant 0 : index
    %16 = vector.load %arg6[%c2, %c0_14, %c0_15] : memref<3x8x16xf32, #tpu.memory_space<vmem>>, vector<1x8x16xf32>
    %17 = vector.shape_cast %16 : vector<1x8x16xf32> to vector<8x16xf32>
    %cst_16 = arith.constant dense<0.000000e+00> : vector<64x16xf32>
    %18 = tpu.matmul %15, %17, %cst_16 {dimension_numbers = #tpu.dot_dimension_numbers<[1], [0], [0], [1], [0, 0, 1, 1], [], []>} : vector<64x8xf32>, vector<8x16xf32>, vector<64x16xf32> -> vector<64x16xf32>
    %19 = arith.addf %14, %18 : vector<64x16xf32>
    %c0_17 = arith.constant 0 : index
    %c0_18 = arith.constant 0 : index
    %c0_19 = arith.constant 0 : index
    %20 = vector.load %arg7[%c0_17, %c0_18, %c0_19] : memref<2x16x16xf32, #tpu.memory_space<vmem>>, vector<1x16x16xf32>
    %21 = vector.shape_cast %20 : vector<1x16x16xf32> to vector<16x16xf32>
    %c1_20 = arith.constant 1 : index
    %c0_21 = arith.constant 0 : index
    %c0_22 = arith.constant 0 : index
    %22 = vector.load %arg7[%c1_20, %c0_21, %c0_22] : memref<2x16x16xf32, #tpu.memory_space<vmem>>, vector<1x16x16xf32>
    %23 = vector.shape_cast %22 : vector<1x16x16xf32> to vector<16x16xf32>
    %cst_23 = arith.constant dense<0.000000e+00> : vector<64x16xf32>
    %24 = tpu.matmul %3, %21, %cst_23 {dimension_numbers = #tpu.dot_dimension_numbers<[1], [0], [0], [1], [0, 0, 1, 1], [], []>} : vector<64x16xf32>, vector<16x16xf32>, vector<64x16xf32> -> vector<64x16xf32>
    %cst_24 = arith.constant dense<0.000000e+00> : vector<64x16xf32>
    %25 = tpu.matmul %3, %23, %cst_24 {dimension_numbers = #tpu.dot_dimension_numbers<[1], [0], [0], [1], [0, 0, 1, 1], [], []>} : vector<64x16xf32>, vector<16x16xf32>, vector<64x16xf32> -> vector<64x16xf32>
    %26 = tpu.concatenate %24, %3, %25 in 0 : vector<64x16xf32>, vector<64x16xf32>, vector<64x16xf32> -> vector<192x16xf32>
    %c0_25 = arith.constant 0 : index
    %c0_26 = arith.constant 0 : index
    %27 = vector.load %arg9[%c0_25, %c0_26] : memref<64x192xf32, #tpu.memory_space<vmem>>, vector<64x192xf32>
    %cst_27 = arith.constant dense<0.000000e+00> : vector<64x16xf32>
    %28 = tpu.matmul %27, %26, %cst_27 {dimension_numbers = #tpu.dot_dimension_numbers<[1], [0], [0], [1], [0, 0, 1, 1], [], []>} : vector<64x192xf32>, vector<192x16xf32>, vector<64x16xf32> -> vector<64x16xf32>
    %29 = arith.addf %19, %28 : vector<64x16xf32>
    %c0_28 = arith.constant 0 : index
    %c0_29 = arith.constant 0 : index
    %c0_30 = arith.constant 0 : index
    %30 = vector.load %arg11[%c0_28, %c0_29, %c0_30] : memref<2x64x1xf32, #tpu.memory_space<vmem>>, vector<1x64x1xf32>
    %31 = vector.shape_cast %30 : vector<1x64x1xf32> to vector<64x1xf32>
    %32 = vector.broadcast %31 : vector<64x1xf32> to vector<64x16xf32>
    %33 = arith.addf %29, %32 : vector<64x16xf32>
    %cst_31 = arith.constant 0.000000e+00 : f32
    %34 = vector.broadcast %cst_31 : f32 to vector<64x16xf32>
    %35 = arith.maximumf %33, %34 : vector<64x16xf32>
    %cst_32 = arith.constant dense<0.000000e+00> : vector<64x16xf32>
    %36 = tpu.matmul %35, %21, %cst_32 {dimension_numbers = #tpu.dot_dimension_numbers<[1], [0], [0], [1], [0, 0, 1, 1], [], []>} : vector<64x16xf32>, vector<16x16xf32>, vector<64x16xf32> -> vector<64x16xf32>
    %cst_33 = arith.constant dense<0.000000e+00> : vector<64x16xf32>
    %37 = tpu.matmul %35, %23, %cst_33 {dimension_numbers = #tpu.dot_dimension_numbers<[1], [0], [0], [1], [0, 0, 1, 1], [], []>} : vector<64x16xf32>, vector<16x16xf32>, vector<64x16xf32> -> vector<64x16xf32>
    %38 = tpu.concatenate %36, %35, %37 in 0 : vector<64x16xf32>, vector<64x16xf32>, vector<64x16xf32> -> vector<192x16xf32>
    %c0_34 = arith.constant 0 : index
    %c0_35 = arith.constant 0 : index
    %39 = vector.load %arg10[%c0_34, %c0_35] : memref<64x192xf32, #tpu.memory_space<vmem>>, vector<64x192xf32>
    %cst_36 = arith.constant dense<0.000000e+00> : vector<64x16xf32>
    %40 = tpu.matmul %39, %38, %cst_36 {dimension_numbers = #tpu.dot_dimension_numbers<[1], [0], [0], [1], [0, 0, 1, 1], [], []>} : vector<64x192xf32>, vector<192x16xf32>, vector<64x16xf32> -> vector<64x16xf32>
    %c1_37 = arith.constant 1 : index
    %c0_38 = arith.constant 0 : index
    %c0_39 = arith.constant 0 : index
    %41 = vector.load %arg11[%c1_37, %c0_38, %c0_39] : memref<2x64x1xf32, #tpu.memory_space<vmem>>, vector<1x64x1xf32>
    %42 = vector.shape_cast %41 : vector<1x64x1xf32> to vector<64x1xf32>
    %43 = vector.broadcast %42 : vector<64x1xf32> to vector<64x16xf32>
    %44 = arith.addf %40, %43 : vector<64x16xf32>
    %cst_40 = arith.constant 0.000000e+00 : f32
    %45 = vector.broadcast %cst_40 : f32 to vector<64x16xf32>
    %46 = arith.maximumf %44, %45 : vector<64x16xf32>
    %c0_41 = arith.constant 0 : index
    %c0_42 = arith.constant 0 : index
    %c0_43 = arith.constant 0 : index
    %47 = vector.load %arg3[%c0_41, %c0_42, %c0_43] : memref<1x32x32xf32, #tpu.memory_space<vmem>>, vector<1x32x32xf32>
    %48 = vector.shape_cast %47 : vector<1x32x32xf32> to vector<32x32xf32>
    %c0_44 = arith.constant 0 : index
    %c0_45 = arith.constant 0 : index
    %49 = vector.load %arg14[%c0_44, %c0_45] : memref<96x64xf32, #tpu.memory_space<vmem>>, vector<96x64xf32>
    %cst_46 = arith.constant dense<0.000000e+00> : vector<96x16xf32>
    %50 = tpu.matmul %49, %46, %cst_46 {dimension_numbers = #tpu.dot_dimension_numbers<[1], [0], [0], [1], [0, 0, 1, 1], [], []>} : vector<96x64xf32>, vector<64x16xf32>, vector<96x16xf32> -> vector<96x16xf32>
    %51 = vector.extract_strided_slice %50 {offsets = [0, 0], sizes = [32, 16], strides = [1, 1]} : vector<96x16xf32> to vector<32x16xf32>
    %c0_47 = arith.constant 0 : index
    %c0_48 = arith.constant 0 : index
    %c0_49 = arith.constant 0 : index
    %52 = vector.load %arg12[%c0_47, %c0_48, %c0_49] : memref<3x16x32xf32, #tpu.memory_space<vmem>>, vector<1x16x32xf32>
    %53 = vector.shape_cast %52 : vector<1x16x32xf32> to vector<16x32xf32>
    %cst_50 = arith.constant dense<0.000000e+00> : vector<32x32xf32>
    %54 = tpu.matmul %51, %53, %cst_50 {dimension_numbers = #tpu.dot_dimension_numbers<[1], [0], [0], [1], [0, 0, 1, 1], [], []>} : vector<32x16xf32>, vector<16x32xf32>, vector<32x32xf32> -> vector<32x32xf32>
    %55 = vector.extract_strided_slice %50 {offsets = [32, 0], sizes = [32, 16], strides = [1, 1]} : vector<96x16xf32> to vector<32x16xf32>
    %c1_51 = arith.constant 1 : index
    %c0_52 = arith.constant 0 : index
    %c0_53 = arith.constant 0 : index
    %56 = vector.load %arg12[%c1_51, %c0_52, %c0_53] : memref<3x16x32xf32, #tpu.memory_space<vmem>>, vector<1x16x32xf32>
    %57 = vector.shape_cast %56 : vector<1x16x32xf32> to vector<16x32xf32>
    %cst_54 = arith.constant dense<0.000000e+00> : vector<32x32xf32>
    %58 = tpu.matmul %55, %57, %cst_54 {dimension_numbers = #tpu.dot_dimension_numbers<[1], [0], [0], [1], [0, 0, 1, 1], [], []>} : vector<32x16xf32>, vector<16x32xf32>, vector<32x32xf32> -> vector<32x32xf32>
    %59 = arith.addf %54, %58 : vector<32x32xf32>
    %60 = vector.extract_strided_slice %50 {offsets = [64, 0], sizes = [32, 16], strides = [1, 1]} : vector<96x16xf32> to vector<32x16xf32>
    %c2_55 = arith.constant 2 : index
    %c0_56 = arith.constant 0 : index
    %c0_57 = arith.constant 0 : index
    %61 = vector.load %arg12[%c2_55, %c0_56, %c0_57] : memref<3x16x32xf32, #tpu.memory_space<vmem>>, vector<1x16x32xf32>
    %62 = vector.shape_cast %61 : vector<1x16x32xf32> to vector<16x32xf32>
    %cst_58 = arith.constant dense<0.000000e+00> : vector<32x32xf32>
    %63 = tpu.matmul %60, %62, %cst_58 {dimension_numbers = #tpu.dot_dimension_numbers<[1], [0], [0], [1], [0, 0, 1, 1], [], []>} : vector<32x16xf32>, vector<16x32xf32>, vector<32x32xf32> -> vector<32x32xf32>
    %64 = arith.addf %59, %63 : vector<32x32xf32>
    %c0_59 = arith.constant 0 : index
    %c0_60 = arith.constant 0 : index
    %c0_61 = arith.constant 0 : index
    %65 = vector.load %arg13[%c0_59, %c0_60, %c0_61] : memref<2x32x32xf32, #tpu.memory_space<vmem>>, vector<1x32x32xf32>
    %66 = vector.shape_cast %65 : vector<1x32x32xf32> to vector<32x32xf32>
    %c1_62 = arith.constant 1 : index
    %c0_63 = arith.constant 0 : index
    %c0_64 = arith.constant 0 : index
    %67 = vector.load %arg13[%c1_62, %c0_63, %c0_64] : memref<2x32x32xf32, #tpu.memory_space<vmem>>, vector<1x32x32xf32>
    %68 = vector.shape_cast %67 : vector<1x32x32xf32> to vector<32x32xf32>
    %cst_65 = arith.constant dense<0.000000e+00> : vector<32x32xf32>
    %69 = tpu.matmul %48, %66, %cst_65 {dimension_numbers = #tpu.dot_dimension_numbers<[1], [0], [0], [1], [0, 0, 1, 1], [], []>} : vector<32x32xf32>, vector<32x32xf32>, vector<32x32xf32> -> vector<32x32xf32>
    %cst_66 = arith.constant dense<0.000000e+00> : vector<32x32xf32>
    %70 = tpu.matmul %48, %68, %cst_66 {dimension_numbers = #tpu.dot_dimension_numbers<[1], [0], [0], [1], [0, 0, 1, 1], [], []>} : vector<32x32xf32>, vector<32x32xf32>, vector<32x32xf32> -> vector<32x32xf32>
    %71 = tpu.concatenate %69, %48, %70 in 0 : vector<32x32xf32>, vector<32x32xf32>, vector<32x32xf32> -> vector<96x32xf32>
    %c0_67 = arith.constant 0 : index
    %c0_68 = arith.constant 0 : index
    %72 = vector.load %arg15[%c0_67, %c0_68] : memref<32x96xf32, #tpu.memory_space<vmem>>, vector<32x96xf32>
    %cst_69 = arith.constant dense<0.000000e+00> : vector<32x32xf32>
    %73 = tpu.matmul %72, %71, %cst_69 {dimension_numbers = #tpu.dot_dimension_numbers<[1], [0], [0], [1], [0, 0, 1, 1], [], []>} : vector<32x96xf32>, vector<96x32xf32>, vector<32x32xf32> -> vector<32x32xf32>
    %74 = arith.addf %64, %73 : vector<32x32xf32>
    %c0_70 = arith.constant 0 : index
    %c0_71 = arith.constant 0 : index
    %c0_72 = arith.constant 0 : index
    %75 = vector.load %arg17[%c0_70, %c0_71, %c0_72] : memref<2x32x1xf32, #tpu.memory_space<vmem>>, vector<1x32x1xf32>
    %76 = vector.shape_cast %75 : vector<1x32x1xf32> to vector<32x1xf32>
    %77 = vector.broadcast %76 : vector<32x1xf32> to vector<32x32xf32>
    %78 = arith.addf %74, %77 : vector<32x32xf32>
    %cst_73 = arith.constant 0.000000e+00 : f32
    %79 = vector.broadcast %cst_73 : f32 to vector<32x32xf32>
    %80 = arith.maximumf %78, %79 : vector<32x32xf32>
    %cst_74 = arith.constant dense<0.000000e+00> : vector<32x32xf32>
    %81 = tpu.matmul %80, %66, %cst_74 {dimension_numbers = #tpu.dot_dimension_numbers<[1], [0], [0], [1], [0, 0, 1, 1], [], []>} : vector<32x32xf32>, vector<32x32xf32>, vector<32x32xf32> -> vector<32x32xf32>
    %cst_75 = arith.constant dense<0.000000e+00> : vector<32x32xf32>
    %82 = tpu.matmul %80, %68, %cst_75 {dimension_numbers = #tpu.dot_dimension_numbers<[1], [0], [0], [1], [0, 0, 1, 1], [], []>} : vector<32x32xf32>, vector<32x32xf32>, vector<32x32xf32> -> vector<32x32xf32>
    %83 = tpu.concatenate %81, %80, %82 in 0 : vector<32x32xf32>, vector<32x32xf32>, vector<32x32xf32> -> vector<96x32xf32>
    %c0_76 = arith.constant 0 : index
    %c0_77 = arith.constant 0 : index
    %84 = vector.load %arg16[%c0_76, %c0_77] : memref<32x96xf32, #tpu.memory_space<vmem>>, vector<32x96xf32>
    %cst_78 = arith.constant dense<0.000000e+00> : vector<32x32xf32>
    %85 = tpu.matmul %84, %83, %cst_78 {dimension_numbers = #tpu.dot_dimension_numbers<[1], [0], [0], [1], [0, 0, 1, 1], [], []>} : vector<32x96xf32>, vector<96x32xf32>, vector<32x32xf32> -> vector<32x32xf32>
    %c1_79 = arith.constant 1 : index
    %c0_80 = arith.constant 0 : index
    %c0_81 = arith.constant 0 : index
    %86 = vector.load %arg17[%c1_79, %c0_80, %c0_81] : memref<2x32x1xf32, #tpu.memory_space<vmem>>, vector<1x32x1xf32>
    %87 = vector.shape_cast %86 : vector<1x32x1xf32> to vector<32x1xf32>
    %88 = vector.broadcast %87 : vector<32x1xf32> to vector<32x32xf32>
    %89 = arith.addf %85, %88 : vector<32x32xf32>
    %cst_82 = arith.constant 0.000000e+00 : f32
    %90 = vector.broadcast %cst_82 : f32 to vector<32x32xf32>
    %91 = arith.maximumf %89, %90 : vector<32x32xf32>
    %c0_83 = arith.constant 0 : index
    %c0_84 = arith.constant 0 : index
    %c0_85 = arith.constant 0 : index
    %92 = vector.load %arg4[%c0_83, %c0_84, %c0_85] : memref<1x16x64xf32, #tpu.memory_space<vmem>>, vector<1x16x64xf32>
    %93 = vector.shape_cast %92 : vector<1x16x64xf32> to vector<16x64xf32>
    %c0_86 = arith.constant 0 : index
    %c0_87 = arith.constant 0 : index
    %94 = vector.load %arg20[%c0_86, %c0_87] : memref<48x32xf32, #tpu.memory_space<vmem>>, vector<48x32xf32>
    %cst_88 = arith.constant dense<0.000000e+00> : vector<48x32xf32>
    %95 = tpu.matmul %94, %91, %cst_88 {dimension_numbers = #tpu.dot_dimension_numbers<[1], [0], [0], [1], [0, 0, 1, 1], [], []>} : vector<48x32xf32>, vector<32x32xf32>, vector<48x32xf32> -> vector<48x32xf32>
    %96 = vector.extract_strided_slice %95 {offsets = [0, 0], sizes = [16, 32], strides = [1, 1]} : vector<48x32xf32> to vector<16x32xf32>
    %c0_89 = arith.constant 0 : index
    %c0_90 = arith.constant 0 : index
    %c0_91 = arith.constant 0 : index
    %97 = vector.load %arg18[%c0_89, %c0_90, %c0_91] : memref<3x32x64xf32, #tpu.memory_space<vmem>>, vector<1x32x64xf32>
    %98 = vector.shape_cast %97 : vector<1x32x64xf32> to vector<32x64xf32>
    %cst_92 = arith.constant dense<0.000000e+00> : vector<16x64xf32>
    %99 = tpu.matmul %96, %98, %cst_92 {dimension_numbers = #tpu.dot_dimension_numbers<[1], [0], [0], [1], [0, 0, 1, 1], [], []>} : vector<16x32xf32>, vector<32x64xf32>, vector<16x64xf32> -> vector<16x64xf32>
    %100 = vector.extract_strided_slice %95 {offsets = [16, 0], sizes = [16, 32], strides = [1, 1]} : vector<48x32xf32> to vector<16x32xf32>
    %c1_93 = arith.constant 1 : index
    %c0_94 = arith.constant 0 : index
    %c0_95 = arith.constant 0 : index
    %101 = vector.load %arg18[%c1_93, %c0_94, %c0_95] : memref<3x32x64xf32, #tpu.memory_space<vmem>>, vector<1x32x64xf32>
    %102 = vector.shape_cast %101 : vector<1x32x64xf32> to vector<32x64xf32>
    %cst_96 = arith.constant dense<0.000000e+00> : vector<16x64xf32>
    %103 = tpu.matmul %100, %102, %cst_96 {dimension_numbers = #tpu.dot_dimension_numbers<[1], [0], [0], [1], [0, 0, 1, 1], [], []>} : vector<16x32xf32>, vector<32x64xf32>, vector<16x64xf32> -> vector<16x64xf32>
    %104 = arith.addf %99, %103 : vector<16x64xf32>
    %105 = vector.extract_strided_slice %95 {offsets = [32, 0], sizes = [16, 32], strides = [1, 1]} : vector<48x32xf32> to vector<16x32xf32>
    %c2_97 = arith.constant 2 : index
    %c0_98 = arith.constant 0 : index
    %c0_99 = arith.constant 0 : index
    %106 = vector.load %arg18[%c2_97, %c0_98, %c0_99] : memref<3x32x64xf32, #tpu.memory_space<vmem>>, vector<1x32x64xf32>
    %107 = vector.shape_cast %106 : vector<1x32x64xf32> to vector<32x64xf32>
    %cst_100 = arith.constant dense<0.000000e+00> : vector<16x64xf32>
    %108 = tpu.matmul %105, %107, %cst_100 {dimension_numbers = #tpu.dot_dimension_numbers<[1], [0], [0], [1], [0, 0, 1, 1], [], []>} : vector<16x32xf32>, vector<32x64xf32>, vector<16x64xf32> -> vector<16x64xf32>
    %109 = arith.addf %104, %108 : vector<16x64xf32>
    %c0_101 = arith.constant 0 : index
    %c0_102 = arith.constant 0 : index
    %c0_103 = arith.constant 0 : index
    %110 = vector.load %arg19[%c0_101, %c0_102, %c0_103] : memref<2x64x64xf32, #tpu.memory_space<vmem>>, vector<1x64x64xf32>
    %111 = vector.shape_cast %110 : vector<1x64x64xf32> to vector<64x64xf32>
    %c1_104 = arith.constant 1 : index
    %c0_105 = arith.constant 0 : index
    %c0_106 = arith.constant 0 : index
    %112 = vector.load %arg19[%c1_104, %c0_105, %c0_106] : memref<2x64x64xf32, #tpu.memory_space<vmem>>, vector<1x64x64xf32>
    %113 = vector.shape_cast %112 : vector<1x64x64xf32> to vector<64x64xf32>
    %cst_107 = arith.constant dense<0.000000e+00> : vector<16x64xf32>
    %114 = tpu.matmul %93, %111, %cst_107 {dimension_numbers = #tpu.dot_dimension_numbers<[1], [0], [0], [1], [0, 0, 1, 1], [], []>} : vector<16x64xf32>, vector<64x64xf32>, vector<16x64xf32> -> vector<16x64xf32>
    %cst_108 = arith.constant dense<0.000000e+00> : vector<16x64xf32>
    %115 = tpu.matmul %93, %113, %cst_108 {dimension_numbers = #tpu.dot_dimension_numbers<[1], [0], [0], [1], [0, 0, 1, 1], [], []>} : vector<16x64xf32>, vector<64x64xf32>, vector<16x64xf32> -> vector<16x64xf32>
    %116 = tpu.concatenate %114, %93, %115 in 0 : vector<16x64xf32>, vector<16x64xf32>, vector<16x64xf32> -> vector<48x64xf32>
    %c0_109 = arith.constant 0 : index
    %c0_110 = arith.constant 0 : index
    %117 = vector.load %arg21[%c0_109, %c0_110] : memref<16x48xf32, #tpu.memory_space<vmem>>, vector<16x48xf32>
    %cst_111 = arith.constant dense<0.000000e+00> : vector<16x64xf32>
    %118 = tpu.matmul %117, %116, %cst_111 {dimension_numbers = #tpu.dot_dimension_numbers<[1], [0], [0], [1], [0, 0, 1, 1], [], []>} : vector<16x48xf32>, vector<48x64xf32>, vector<16x64xf32> -> vector<16x64xf32>
    %119 = arith.addf %109, %118 : vector<16x64xf32>
    %c0_112 = arith.constant 0 : index
    %c0_113 = arith.constant 0 : index
    %c0_114 = arith.constant 0 : index
    %120 = vector.load %arg23[%c0_112, %c0_113, %c0_114] : memref<2x16x1xf32, #tpu.memory_space<vmem>>, vector<1x16x1xf32>
    %121 = vector.shape_cast %120 : vector<1x16x1xf32> to vector<16x1xf32>
    %122 = vector.broadcast %121 : vector<16x1xf32> to vector<16x64xf32>
    %123 = arith.addf %119, %122 : vector<16x64xf32>
    %cst_115 = arith.constant 0.000000e+00 : f32
    %124 = vector.broadcast %cst_115 : f32 to vector<16x64xf32>
    %125 = arith.maximumf %123, %124 : vector<16x64xf32>
    %cst_116 = arith.constant dense<0.000000e+00> : vector<16x64xf32>
    %126 = tpu.matmul %125, %111, %cst_116 {dimension_numbers = #tpu.dot_dimension_numbers<[1], [0], [0], [1], [0, 0, 1, 1], [], []>} : vector<16x64xf32>, vector<64x64xf32>, vector<16x64xf32> -> vector<16x64xf32>
    %cst_117 = arith.constant dense<0.000000e+00> : vector<16x64xf32>
    %127 = tpu.matmul %125, %113, %cst_117 {dimension_numbers = #tpu.dot_dimension_numbers<[1], [0], [0], [1], [0, 0, 1, 1], [], []>} : vector<16x64xf32>, vector<64x64xf32>, vector<16x64xf32> -> vector<16x64xf32>
    %128 = tpu.concatenate %126, %125, %127 in 0 : vector<16x64xf32>, vector<16x64xf32>, vector<16x64xf32> -> vector<48x64xf32>
    %c0_118 = arith.constant 0 : index
    %c0_119 = arith.constant 0 : index
    %129 = vector.load %arg22[%c0_118, %c0_119] : memref<16x48xf32, #tpu.memory_space<vmem>>, vector<16x48xf32>
    %cst_120 = arith.constant dense<0.000000e+00> : vector<16x64xf32>
    %130 = tpu.matmul %129, %128, %cst_120 {dimension_numbers = #tpu.dot_dimension_numbers<[1], [0], [0], [1], [0, 0, 1, 1], [], []>} : vector<16x48xf32>, vector<48x64xf32>, vector<16x64xf32> -> vector<16x64xf32>
    %c1_121 = arith.constant 1 : index
    %c0_122 = arith.constant 0 : index
    %c0_123 = arith.constant 0 : index
    %131 = vector.load %arg23[%c1_121, %c0_122, %c0_123] : memref<2x16x1xf32, #tpu.memory_space<vmem>>, vector<1x16x1xf32>
    %132 = vector.shape_cast %131 : vector<1x16x1xf32> to vector<16x1xf32>
    %133 = vector.broadcast %132 : vector<16x1xf32> to vector<16x64xf32>
    %134 = arith.addf %130, %133 : vector<16x64xf32>
    %cst_124 = arith.constant 0.000000e+00 : f32
    %135 = vector.broadcast %cst_124 : f32 to vector<16x64xf32>
    %136 = arith.maximumf %134, %135 : vector<16x64xf32>
    %c0_125 = arith.constant 0 : index
    %c0_126 = arith.constant 0 : index
    %c0_127 = arith.constant 0 : index
    %137 = vector.load %arg5[%c0_125, %c0_126, %c0_127] : memref<1x8x128xf32, #tpu.memory_space<vmem>>, vector<1x8x128xf32>
    %138 = vector.shape_cast %137 : vector<1x8x128xf32> to vector<8x128xf32>
    %c0_128 = arith.constant 0 : index
    %c0_129 = arith.constant 0 : index
    %139 = vector.load %arg26[%c0_128, %c0_129] : memref<24x16xf32, #tpu.memory_space<vmem>>, vector<24x16xf32>
    %cst_130 = arith.constant dense<0.000000e+00> : vector<24x64xf32>
    %140 = tpu.matmul %139, %136, %cst_130 {dimension_numbers = #tpu.dot_dimension_numbers<[1], [0], [0], [1], [0, 0, 1, 1], [], []>} : vector<24x16xf32>, vector<16x64xf32>, vector<24x64xf32> -> vector<24x64xf32>
    %141 = vector.extract_strided_slice %140 {offsets = [0, 0], sizes = [8, 64], strides = [1, 1]} : vector<24x64xf32> to vector<8x64xf32>
    %c0_131 = arith.constant 0 : index
    %c0_132 = arith.constant 0 : index
    %c0_133 = arith.constant 0 : index
    %142 = vector.load %arg24[%c0_131, %c0_132, %c0_133] : memref<3x64x128xf32, #tpu.memory_space<vmem>>, vector<1x64x128xf32>
    %143 = vector.shape_cast %142 : vector<1x64x128xf32> to vector<64x128xf32>
    %cst_134 = arith.constant dense<0.000000e+00> : vector<8x128xf32>
    %144 = tpu.matmul %141, %143, %cst_134 {dimension_numbers = #tpu.dot_dimension_numbers<[1], [0], [0], [1], [0, 0, 1, 1], [], []>} : vector<8x64xf32>, vector<64x128xf32>, vector<8x128xf32> -> vector<8x128xf32>
    %145 = vector.extract_strided_slice %140 {offsets = [8, 0], sizes = [8, 64], strides = [1, 1]} : vector<24x64xf32> to vector<8x64xf32>
    %c1_135 = arith.constant 1 : index
    %c0_136 = arith.constant 0 : index
    %c0_137 = arith.constant 0 : index
    %146 = vector.load %arg24[%c1_135, %c0_136, %c0_137] : memref<3x64x128xf32, #tpu.memory_space<vmem>>, vector<1x64x128xf32>
    %147 = vector.shape_cast %146 : vector<1x64x128xf32> to vector<64x128xf32>
    %cst_138 = arith.constant dense<0.000000e+00> : vector<8x128xf32>
    %148 = tpu.matmul %145, %147, %cst_138 {dimension_numbers = #tpu.dot_dimension_numbers<[1], [0], [0], [1], [0, 0, 1, 1], [], []>} : vector<8x64xf32>, vector<64x128xf32>, vector<8x128xf32> -> vector<8x128xf32>
    %149 = arith.addf %144, %148 : vector<8x128xf32>
    %150 = vector.extract_strided_slice %140 {offsets = [16, 0], sizes = [8, 64], strides = [1, 1]} : vector<24x64xf32> to vector<8x64xf32>
    %c2_139 = arith.constant 2 : index
    %c0_140 = arith.constant 0 : index
    %c0_141 = arith.constant 0 : index
    %151 = vector.load %arg24[%c2_139, %c0_140, %c0_141] : memref<3x64x128xf32, #tpu.memory_space<vmem>>, vector<1x64x128xf32>
    %152 = vector.shape_cast %151 : vector<1x64x128xf32> to vector<64x128xf32>
    %cst_142 = arith.constant dense<0.000000e+00> : vector<8x128xf32>
    %153 = tpu.matmul %150, %152, %cst_142 {dimension_numbers = #tpu.dot_dimension_numbers<[1], [0], [0], [1], [0, 0, 1, 1], [], []>} : vector<8x64xf32>, vector<64x128xf32>, vector<8x128xf32> -> vector<8x128xf32>
    %154 = arith.addf %149, %153 : vector<8x128xf32>
    %c0_143 = arith.constant 0 : index
    %c0_144 = arith.constant 0 : index
    %c0_145 = arith.constant 0 : index
    %155 = vector.load %arg25[%c0_143, %c0_144, %c0_145] : memref<2x128x128xf32, #tpu.memory_space<vmem>>, vector<1x128x128xf32>
    %156 = vector.shape_cast %155 : vector<1x128x128xf32> to vector<128x128xf32>
    %c1_146 = arith.constant 1 : index
    %c0_147 = arith.constant 0 : index
    %c0_148 = arith.constant 0 : index
    %157 = vector.load %arg25[%c1_146, %c0_147, %c0_148] : memref<2x128x128xf32, #tpu.memory_space<vmem>>, vector<1x128x128xf32>
    %158 = vector.shape_cast %157 : vector<1x128x128xf32> to vector<128x128xf32>
    %cst_149 = arith.constant dense<0.000000e+00> : vector<8x128xf32>
    %159 = tpu.matmul %138, %156, %cst_149 {dimension_numbers = #tpu.dot_dimension_numbers<[1], [0], [0], [1], [0, 0, 1, 1], [], []>} : vector<8x128xf32>, vector<128x128xf32>, vector<8x128xf32> -> vector<8x128xf32>
    %cst_150 = arith.constant dense<0.000000e+00> : vector<8x128xf32>
    %160 = tpu.matmul %138, %158, %cst_150 {dimension_numbers = #tpu.dot_dimension_numbers<[1], [0], [0], [1], [0, 0, 1, 1], [], []>} : vector<8x128xf32>, vector<128x128xf32>, vector<8x128xf32> -> vector<8x128xf32>
    %161 = tpu.concatenate %159, %138, %160 in 0 : vector<8x128xf32>, vector<8x128xf32>, vector<8x128xf32> -> vector<24x128xf32>
    %c0_151 = arith.constant 0 : index
    %c0_152 = arith.constant 0 : index
    %162 = vector.load %arg27[%c0_151, %c0_152] : memref<8x24xf32, #tpu.memory_space<vmem>>, vector<8x24xf32>
    %cst_153 = arith.constant dense<0.000000e+00> : vector<8x128xf32>
    %163 = tpu.matmul %162, %161, %cst_153 {dimension_numbers = #tpu.dot_dimension_numbers<[1], [0], [0], [1], [0, 0, 1, 1], [], []>} : vector<8x24xf32>, vector<24x128xf32>, vector<8x128xf32> -> vector<8x128xf32>
    %164 = arith.addf %154, %163 : vector<8x128xf32>
    %c0_154 = arith.constant 0 : index
    %c0_155 = arith.constant 0 : index
    %c0_156 = arith.constant 0 : index
    %165 = vector.load %arg29[%c0_154, %c0_155, %c0_156] : memref<2x8x1xf32, #tpu.memory_space<vmem>>, vector<1x8x1xf32>
    %166 = vector.shape_cast %165 : vector<1x8x1xf32> to vector<8x1xf32>
    %167 = vector.broadcast %166 : vector<8x1xf32> to vector<8x128xf32>
    %168 = arith.addf %164, %167 : vector<8x128xf32>
    %cst_157 = arith.constant 0.000000e+00 : f32
    %169 = vector.broadcast %cst_157 : f32 to vector<8x128xf32>
    %170 = arith.maximumf %168, %169 : vector<8x128xf32>
    %cst_158 = arith.constant dense<0.000000e+00> : vector<8x128xf32>
    %171 = tpu.matmul %170, %156, %cst_158 {dimension_numbers = #tpu.dot_dimension_numbers<[1], [0], [0], [1], [0, 0, 1, 1], [], []>} : vector<8x128xf32>, vector<128x128xf32>, vector<8x128xf32> -> vector<8x128xf32>
    %cst_159 = arith.constant dense<0.000000e+00> : vector<8x128xf32>
    %172 = tpu.matmul %170, %158, %cst_159 {dimension_numbers = #tpu.dot_dimension_numbers<[1], [0], [0], [1], [0, 0, 1, 1], [], []>} : vector<8x128xf32>, vector<128x128xf32>, vector<8x128xf32> -> vector<8x128xf32>
    %173 = tpu.concatenate %171, %170, %172 in 0 : vector<8x128xf32>, vector<8x128xf32>, vector<8x128xf32> -> vector<24x128xf32>
    %c0_160 = arith.constant 0 : index
    %c0_161 = arith.constant 0 : index
    %174 = vector.load %arg28[%c0_160, %c0_161] : memref<8x24xf32, #tpu.memory_space<vmem>>, vector<8x24xf32>
    %cst_162 = arith.constant dense<0.000000e+00> : vector<8x128xf32>
    %175 = tpu.matmul %174, %173, %cst_162 {dimension_numbers = #tpu.dot_dimension_numbers<[1], [0], [0], [1], [0, 0, 1, 1], [], []>} : vector<8x24xf32>, vector<24x128xf32>, vector<8x128xf32> -> vector<8x128xf32>
    %c1_163 = arith.constant 1 : index
    %c0_164 = arith.constant 0 : index
    %c0_165 = arith.constant 0 : index
    %176 = vector.load %arg29[%c1_163, %c0_164, %c0_165] : memref<2x8x1xf32, #tpu.memory_space<vmem>>, vector<1x8x1xf32>
    %177 = vector.shape_cast %176 : vector<1x8x1xf32> to vector<8x1xf32>
    %178 = vector.broadcast %177 : vector<8x1xf32> to vector<8x128xf32>
    %179 = arith.addf %175, %178 : vector<8x128xf32>
    %cst_166 = arith.constant 0.000000e+00 : f32
    %180 = vector.broadcast %cst_166 : f32 to vector<8x128xf32>
    %181 = arith.maximumf %179, %180 : vector<8x128xf32>
    %c0_167 = arith.constant 0 : index
    %c0_168 = arith.constant 0 : index
    %c0_169 = arith.constant 0 : index
    %182 = vector.load %arg30[%c0_167, %c0_168, %c0_169] : memref<1x8x128xf32, #tpu.memory_space<vmem>>, vector<1x8x128xf32>
    %183 = vector.shape_cast %182 : vector<1x8x128xf32> to vector<8x128xf32>
    %184 = vector.shape_cast %181 : vector<8x128xf32> to vector<1x8x128xf32>
    tpu.vector_store %arg30[%c0_167, %c0_168, %c0_169], %184 {strides = array<i32>} : memref<1x8x128xf32, #tpu.memory_space<vmem>>, vector<1x8x128xf32>,
    return
  }
  func.func @transform_0(%arg0: i32) -> (i32, i32, i32) {
    %c0_i32 = arith.constant 0 : i32
    %c0_i32_0 = arith.constant 0 : i32
    %c0_i32_1 = arith.constant 0 : i32
    return %arg0, %c0_i32, %c0_i32_0 : i32, i32, i32
  }
  func.func @transform_1(%arg0: i32) -> (i32, i32, i32) {
    %c0_i32 = arith.constant 0 : i32
    %c0_i32_0 = arith.constant 0 : i32
    %c0_i32_1 = arith.constant 0 : i32
    return %arg0, %c0_i32, %c0_i32_0 : i32, i32, i32
  }
  func.func @transform_2(%arg0: i32) -> (i32, i32, i32) {
    %c0_i32 = arith.constant 0 : i32
    %c0_i32_0 = arith.constant 0 : i32
    %c0_i32_1 = arith.constant 0 : i32
    return %arg0, %c0_i32, %c0_i32_0 : i32, i32, i32
  }
  func.func @transform_3(%arg0: i32) -> (i32, i32, i32) {
    %c0_i32 = arith.constant 0 : i32
    %c0_i32_0 = arith.constant 0 : i32
    %c0_i32_1 = arith.constant 0 : i32
    return %arg0, %c0_i32, %c0_i32_0 : i32, i32, i32
  }
  func.func @transform_4(%arg0: i32) -> (i32, i32, i32) {
    %c0_i32 = arith.constant 0 : i32
    %c0_i32_0 = arith.constant 0 : i32
    %c0_i32_1 = arith.constant 0 : i32
    return %arg0, %c0_i32, %c0_i32_0 : i32, i32, i32
  }
  func.func @transform_5(%arg0: i32) -> (i32, i32, i32) {
    %c0_i32 = arith.constant 0 : i32
    %c0_i32_0 = arith.constant 0 : i32
    %c0_i32_1 = arith.constant 0 : i32
    %c0_i32_2 = arith.constant 0 : i32
    return %c0_i32, %c0_i32_0, %c0_i32_1 : i32, i32, i32
  }
  func.func @transform_6(%arg0: i32) -> (i32, i32, i32) {
    %c0_i32 = arith.constant 0 : i32
    %c0_i32_0 = arith.constant 0 : i32
    %c0_i32_1 = arith.constant 0 : i32
    %c0_i32_2 = arith.constant 0 : i32
    return %c0_i32, %c0_i32_0, %c0_i32_1 : i32, i32, i32
  }
  func.func @transform_7(%arg0: i32) -> (i32, i32) {
    %c0_i32 = arith.constant 0 : i32
    %c0_i32_0 = arith.constant 0 : i32
    %c0_i32_1 = arith.constant 0 : i32
    return %c0_i32, %c0_i32_0 : i32, i32
  }
  func.func @transform_8(%arg0: i32) -> (i32, i32) {
    %c0_i32 = arith.constant 0 : i32
    %c0_i32_0 = arith.constant 0 : i32
    %c0_i32_1 = arith.constant 0 : i32
    return %c0_i32, %c0_i32_0 : i32, i32
  }
  func.func @transform_9(%arg0: i32) -> (i32, i32) {
    %c0_i32 = arith.constant 0 : i32
    %c0_i32_0 = arith.constant 0 : i32
    %c0_i32_1 = arith.constant 0 : i32
    return %c0_i32, %c0_i32_0 : i32, i32
  }
  func.func @transform_10(%arg0: i32) -> (i32, i32, i32) {
    %c0_i32 = arith.constant 0 : i32
    %c0_i32_0 = arith.constant 0 : i32
    %c0_i32_1 = arith.constant 0 : i32
    %c0_i32_2 = arith.constant 0 : i32
    return %c0_i32, %c0_i32_0, %c0_i32_1 : i32, i32, i32
  }
  func.func @transform_11(%arg0: i32) -> (i32, i32, i32) {
    %c0_i32 = arith.constant 0 : i32
    %c0_i32_0 = arith.constant 0 : i32
    %c0_i32_1 = arith.constant 0 : i32
    %c0_i32_2 = arith.constant 0 : i32
    return %c0_i32, %c0_i32_0, %c0_i32_1 : i32, i32, i32
  }
  func.func @transform_12(%arg0: i32) -> (i32, i32, i32) {
    %c0_i32 = arith.constant 0 : i32
    %c0_i32_0 = arith.constant 0 : i32
    %c0_i32_1 = arith.constant 0 : i32
    %c0_i32_2 = arith.constant 0 : i32
    return %c0_i32, %c0_i32_0, %c0_i32_1 : i32, i32, i32
  }
  func.func @transform_13(%arg0: i32) -> (i32, i32) {
    %c0_i32 = arith.constant 0 : i32
    %c0_i32_0 = arith.constant 0 : i32
    %c0_i32_1 = arith.constant 0 : i32
    return %c0_i32, %c0_i32_0 : i32, i32
  }
  func.func @transform_14(%arg0: i32) -> (i32, i32) {
    %c0_i32 = arith.constant 0 : i32
    %c0_i32_0 = arith.constant 0 : i32
    %c0_i32_1 = arith.constant 0 : i32
    return %c0_i32, %c0_i32_0 : i32, i32
  }
  func.func @transform_15(%arg0: i32) -> (i32, i32) {
    %c0_i32 = arith.constant 0 : i32
    %c0_i32_0 = arith.constant 0 : i32
    %c0_i32_1 = arith.constant 0 : i32
    return %c0_i32, %c0_i32_0 : i32, i32
  }
  func.func @transform_16(%arg0: i32) -> (i32, i32, i32) {
    %c0_i32 = arith.constant 0 : i32
    %c0_i32_0 = arith.constant 0 : i32
    %c0_i32_1 = arith.constant 0 : i32
    %c0_i32_2 = arith.constant 0 : i32
    return %c0_i32, %c0_i32_0, %c0_i32_1 : i32, i32, i32
  }
  func.func @transform_17(%arg0: i32) -> (i32, i32, i32) {
    %c0_i32 = arith.constant 0 : i32
    %c0_i32_0 = arith.constant 0 : i32
    %c0_i32_1 = arith.constant 0 : i32
    %c0_i32_2 = arith.constant 0 : i32
    return %c0_i32, %c0_i32_0, %c0_i32_1 : i32, i32, i32
  }
  func.func @transform_18(%arg0: i32) -> (i32, i32, i32) {
    %c0_i32 = arith.constant 0 : i32
    %c0_i32_0 = arith.constant 0 : i32
    %c0_i32_1 = arith.constant 0 : i32
    %c0_i32_2 = arith.constant 0 : i32
    return %c0_i32, %c0_i32_0, %c0_i32_1 : i32, i32, i32
  }
  func.func @transform_19(%arg0: i32) -> (i32, i32) {
    %c0_i32 = arith.constant 0 : i32
    %c0_i32_0 = arith.constant 0 : i32
    %c0_i32_1 = arith.constant 0 : i32
    return %c0_i32, %c0_i32_0 : i32, i32
  }
  func.func @transform_20(%arg0: i32) -> (i32, i32) {
    %c0_i32 = arith.constant 0 : i32
    %c0_i32_0 = arith.constant 0 : i32
    %c0_i32_1 = arith.constant 0 : i32
    return %c0_i32, %c0_i32_0 : i32, i32
  }
  func.func @transform_21(%arg0: i32) -> (i32, i32) {
    %c0_i32 = arith.constant 0 : i32
    %c0_i32_0 = arith.constant 0 : i32
    %c0_i32_1 = arith.constant 0 : i32
    return %c0_i32, %c0_i32_0 : i32, i32
  }
  func.func @transform_22(%arg0: i32) -> (i32, i32, i32) {
    %c0_i32 = arith.constant 0 : i32
    %c0_i32_0 = arith.constant 0 : i32
    %c0_i32_1 = arith.constant 0 : i32
    %c0_i32_2 = arith.constant 0 : i32
    return %c0_i32, %c0_i32_0, %c0_i32_1 : i32, i32, i32
  }
  func.func @transform_23(%arg0: i32) -> (i32, i32, i32) {
    %c0_i32 = arith.constant 0 : i32
    %c0_i32_0 = arith.constant 0 : i32
    %c0_i32_1 = arith.constant 0 : i32
    %c0_i32_2 = arith.constant 0 : i32
    return %c0_i32, %c0_i32_0, %c0_i32_1 : i32, i32, i32
  }
  func.func @transform_24(%arg0: i32) -> (i32, i32, i32) {
    %c0_i32 = arith.constant 0 : i32
    %c0_i32_0 = arith.constant 0 : i32
    %c0_i32_1 = arith.constant 0 : i32
    %c0_i32_2 = arith.constant 0 : i32
    return %c0_i32, %c0_i32_0, %c0_i32_1 : i32, i32, i32
  }
  func.func @transform_25(%arg0: i32) -> (i32, i32) {
    %c0_i32 = arith.constant 0 : i32
    %c0_i32_0 = arith.constant 0 : i32
    %c0_i32_1 = arith.constant 0 : i32
    return %c0_i32, %c0_i32_0 : i32, i32
  }
  func.func @transform_26(%arg0: i32) -> (i32, i32) {
    %c0_i32 = arith.constant 0 : i32
    %c0_i32_0 = arith.constant 0 : i32
    %c0_i32_1 = arith.constant 0 : i32
    return %c0_i32, %c0_i32_0 : i32, i32
  }
  func.func @transform_27(%arg0: i32) -> (i32, i32) {
    %c0_i32 = arith.constant 0 : i32
    %c0_i32_0 = arith.constant 0 : i32
    %c0_i32_1 = arith.constant 0 : i32
    return %c0_i32, %c0_i32_0 : i32, i32
  }
  func.func @transform_28(%arg0: i32) -> (i32, i32, i32) {
    %c0_i32 = arith.constant 0 : i32
    %c0_i32_0 = arith.constant 0 : i32
    %c0_i32_1 = arith.constant 0 : i32
    %c0_i32_2 = arith.constant 0 : i32
    return %c0_i32, %c0_i32_0, %c0_i32_1 : i32, i32, i32
  }
  func.func @transform_29(%arg0: i32) -> (i32, i32, i32) {
    %c0_i32 = arith.constant 0 : i32
    %c0_i32_0 = arith.constant 0 : i32
    %c0_i32_1 = arith.constant 0 : i32
    return %arg0, %c0_i32, %c0_i32_0 : i32, i32, i32
  }
}

</mosaic_0001>

<llo_original>
// kernel: tpu_custom_call.1
$region0: #{tpu_custom_call.1}
  #allocation0 [shape = 'u32[]', space=smem, size = 0x4, offset = 0x4, fixed_abs, tag = 'smem constant byte address 0x4 - core index']
  #allocation1 [shape = 'u32[72,128]{1,0:T(1,128)}', space=vmem, size = 0x9000, scoped, tag = 'internal scratch']
  %s0 = inlined_call_operand.smem [shape: u32[30], index: -1, kind: input, shape index: {}]
  %s1 = sld [smem:[%s0]]
  %s2 = scalar_lea.smem %s0, 1
  %s3 = sld [smem:[%s2]]
  %s4 = scalar_lea.smem %s0, 2
  %s5 = sld [smem:[%s4]]
  %s6 = scalar_lea.smem %s0, 3
  %s7 = sld [smem:[%s6]]
  %s8 = scalar_lea.smem %s0, 4
  %s9 = sld [smem:[%s8]]
  %s10 = scalar_lea.smem %s0, 5
  %s11 = sld [smem:[%s10]]
  %s12 = scalar_lea.smem %s0, 6
  %s13 = sld [smem:[%s12]]
  %s14 = scalar_lea.smem %s0, 7
  %s15 = sld [smem:[%s14]]
  %s16 = scalar_lea.smem %s0, 8
  %s17 = sld [smem:[%s16]]
  %s18 = scalar_lea.smem %s0, 9
  %s19 = sld [smem:[%s18]]
  %s20 = scalar_lea.smem %s0, 10
  %s21 = sld [smem:[%s20]]
  %s22 = scalar_lea.smem %s0, 11
  %s23 = sld [smem:[%s22]]
  %s24 = scalar_lea.smem %s0, 12
  %s25 = sld [smem:[%s24]]
  %s26 = scalar_lea.smem %s0, 13
  %s27 = sld [smem:[%s26]]
  %s28 = scalar_lea.smem %s0, 14
  %s29 = sld [smem:[%s28]]
  %s30 = scalar_lea.smem %s0, 15
  %s31 = sld [smem:[%s30]]
  %s32 = scalar_lea.smem %s0, 16
  %s33 = sld [smem:[%s32]]
  %s34 = scalar_lea.smem %s0, 17
  %s35 = sld [smem:[%s34]]
  %s36 = scalar_lea.smem %s0, 18
  %s37 = sld [smem:[%s36]]
  %s38 = scalar_lea.smem %s0, 19
  %s39 = sld [smem:[%s38]]
  %s40 = scalar_lea.smem %s0, 20
  %s41 = sld [smem:[%s40]]
  %s42 = scalar_lea.smem %s0, 21
  %s43 = sld [smem:[%s42]]
  %s44 = scalar_lea.smem %s0, 22
  %s45 = sld [smem:[%s44]]
  %s46 = scalar_lea.smem %s0, 23
  %s47 = sld [smem:[%s46]]
  %s48 = scalar_lea.smem %s0, 24
  %s49 = sld [smem:[%s48]]
  %s50 = scalar_lea.smem %s0, 25
  %s51 = sld [smem:[%s50]]
  %s52 = scalar_lea.smem %s0, 26
  %s53 = sld [smem:[%s52]]
  %s54 = scalar_lea.smem %s0, 27
  %s55 = sld [smem:[%s54]]
  %s56 = scalar_lea.smem %s0, 28
  %s57 = sld [smem:[%s56]]
  %s58 = scalar_lea.smem %s0, 29
  %s59 = sld [smem:[%s58]]
  %s60 = sld [smem:[#allocation0]]
  $region201: #{tpu_custom_call.1} parent=0
    _
  %s62 = ssub.s32 1, %s60
  %s63 = scalar_select 0, %s62, %s60
  $region1: #{tpu_custom_call.1} parent=0
    #allocation2 [shape = 'u8[32768]{0}', space=vmem, size = 0x8000, scoped, tag = 'input window, operand 2']
    #allocation3 [shape = 's32[2]{0}', space=sflag, size = 0x8, scoped, tag = 'scoped memory for tpu_custom_call.1']
    #allocation4 [shape = 's32[2]{0}', space=sflag, size = 0x8, scoped, tag = 'scoped memory for tpu_custom_call.1']
    #allocation5 [shape = 'u8[16384]{0}', space=vmem, size = 0x4000, scoped, tag = 'input window, operand 3']
    #allocation6 [shape = 's32[2]{0}', space=sflag, size = 0x8, scoped, tag = 'scoped memory for tpu_custom_call.1']
    #allocation7 [shape = 'u8[12288]{0}', space=vmem, size = 0x3000, scoped, tag = 'input window, operand 5, single buffered']
    #allocation8 [shape = 'u8[16384]{0}', space=vmem, size = 0x4000, scoped, tag = 'input window, operand 6, single buffered']
    #allocation9 [shape = 's32[1]{0}', space=sflag, size = 0x4, scoped, tag = 'scoped memory for tpu_custom_call.1']
    #allocation10 [shape = 'u8[65536]{0}', space=vmem, size = 0x10000, scoped, tag = 'input window, operand 8, single buffered']
    #allocation11 [shape = 'u8[65536]{0}', space=vmem, size = 0x10000, scoped, tag = 'input window, operand 9, single buffered']
    #allocation12 [shape = 's32[1]{0}', space=sflag, size = 0x4, scoped, tag = 'scoped memory for tpu_custom_call.1']
    #allocation13 [shape = 'u8[32768]{0}', space=vmem, size = 0x8000, scoped, tag = 'input window, operand 12, single buffered']
    #allocation14 [shape = 'u8[16384]{0}', space=vmem, size = 0x4000, scoped, tag = 'input window, operand 14, single buffered']
    #allocation15 [shape = 's32[1]{0}', space=sflag, size = 0x4, scoped, tag = 'scoped memory for tpu_custom_call.1']
    #allocation16 [shape = 'u8[16384]{0}', space=vmem, size = 0x4000, scoped, tag = 'input window, operand 15, single buffered']
    #allocation17 [shape = 'u8[65536]{0}', space=vmem, size = 0x10000, scoped, tag = 'input window, operand 18, single buffered']
    #allocation18 [shape = 's32[1]{0}', space=sflag, size = 0x4, scoped, tag = 'scoped memory for tpu_custom_call.1']
    #allocation19 [shape = 'u8[8192]{0}', space=vmem, size = 0x2000, scoped, tag = 'input window, operand 20, single buffered']
    #allocation20 [shape = 'u8[8192]{0}', space=vmem, size = 0x2000, scoped, tag = 'input window, operand 21, single buffered']
    #allocation21 [shape = 's32[1]{0}', space=sflag, size = 0x4, scoped, tag = 'scoped memory for tpu_custom_call.1']
    #allocation22 [shape = 'u8[4096]{0}', space=vmem, size = 0x1000, scoped, tag = 'input window, operand 27, single buffered']
    #allocation23 [shape = 'u8[8192]{0}', space=vmem, size = 0x2000, scoped, tag = 'output window, operand 0']
    %64 = vsyncpa [#allocation3], 0
    %s65 = scalar_lea.sflag [#allocation3], 1
    %66 = vsyncpa %s65, 0
    %67 = vsyncpa [#allocation6], 0
    %s68 = scalar_lea.sflag [#allocation6], 1
    %69 = vsyncpa %s68, 0
    %70 = vsyncpa [#allocation9], 0
    %71 = vsyncpa [#allocation12], 0
    %72 = vsyncpa [#allocation15], 0
    %73 = vsyncpa [#allocation18], 0
    %74 = vsyncpa [#allocation21], 0
    %75 = vsyncpa [#allocation4], 0
    %s76 = scalar_lea.sflag [#allocation4], 1
    %77 = vsyncpa %s76, 0
    loop: start=0, step=1, limit=4
    $region2: #{tpu_custom_call.1} parent=1 // loop_pre_header
      _
    $region3: #{tpu_custom_call.1} parent=1 // loop_header
      %s79 = sphi 0, %s83
      %p80 = scmp.ge.s32.totalorder %s79, 4
      %s89 = sphi 0, %s91
      %s92 = sphi 0, %s89
      %s93 = sphi 0, %s92
      %s109 = sphi 0, %s93
      %s115 = sphi 0, %s117
      %s118 = sphi 0, %s115
      %s119 = sphi 0, %s118
      %s135 = sphi 0, %s119
      %s141 = sphi 0, %s143
      %s144 = sphi 0, %s141
      %s145 = sphi 0, %s144
      %s161 = sphi 0, %s145
      %s167 = sphi 0, %s169
      %s170 = sphi 0, %s167
      %s171 = sphi 0, %s170
      %s187 = sphi 0, %s171
      %s193 = sphi 0, %s195
      %s196 = sphi 0, %s193
      %s197 = sphi 0, %s196
      %s213 = sphi 0, %s197
      %s217 = sphi 0, %s217
      %s219 = sphi 0, %s217
      %s220 = sphi 0, %s219
      %s234 = sphi 0, %s220
      %s238 = sphi 0, %s238
      %s240 = sphi 0, %s238
      %s241 = sphi 0, %s240
      %s255 = sphi 0, %s241
      %s259 = sphi 0, %s259
      %s261 = sphi 0, %s259
      %s262 = sphi 0, %s261
      %s276 = sphi 0, %s262
      %s280 = sphi 0, %s280
      %s282 = sphi 0, %s280
      %s283 = sphi 0, %s282
      %s297 = sphi 0, %s283
      %s301 = sphi 0, %s301
      %s303 = sphi 0, %s301
      %s304 = sphi 0, %s303
      %s318 = sphi 0, %s304
      %s322 = sphi 0, %s322
      %s324 = sphi 0, %s322
      %s325 = sphi 0, %s324
      %s339 = sphi 0, %s325
      %s343 = sphi 0, %s343
      %s345 = sphi 0, %s343
      %s346 = sphi 0, %s345
      %s360 = sphi 0, %s346
      %s364 = sphi 0, %s364
      %s366 = sphi 0, %s364
      %s367 = sphi 0, %s366
      %s381 = sphi 0, %s367
      %s385 = sphi 0, %s385
      %s387 = sphi 0, %s385
      %s388 = sphi 0, %s387
      %s402 = sphi 0, %s388
      %s406 = sphi 0, %s406
      %s408 = sphi 0, %s406
      %s409 = sphi 0, %s408
      %s423 = sphi 0, %s409
      %s427 = sphi 0, %s427
      %s429 = sphi 0, %s427
      %s430 = sphi 0, %s429
      %s444 = sphi 0, %s430
      %s448 = sphi 0, %s448
      %s450 = sphi 0, %s448
      %s451 = sphi 0, %s450
      %s465 = sphi 0, %s451
      %s469 = sphi 0, %s469
      %s471 = sphi 0, %s469
      %s472 = sphi 0, %s471
      %s486 = sphi 0, %s472
      %s490 = sphi 0, %s490
      %s492 = sphi 0, %s490
      %s493 = sphi 0, %s492
      %s507 = sphi 0, %s493
      %s511 = sphi 0, %s511
      %s513 = sphi 0, %s511
      %s514 = sphi 0, %s513
      %s528 = sphi 0, %s514
      %s532 = sphi 0, %s532
      %s534 = sphi 0, %s532
      %s535 = sphi 0, %s534
      %s549 = sphi 0, %s535
      %s553 = sphi 0, %s553
      %s555 = sphi 0, %s553
      %s556 = sphi 0, %s555
      %s570 = sphi 0, %s556
      %s574 = sphi 0, %s574
      %s576 = sphi 0, %s574
      %s577 = sphi 0, %s576
      %s591 = sphi 0, %s577
      %s595 = sphi 0, %s595
      %s597 = sphi 0, %s595
      %s598 = sphi 0, %s597
      %s612 = sphi 0, %s598
      %s616 = sphi 0, %s616
      %s618 = sphi 0, %s616
      %s619 = sphi 0, %s618
      %s633 = sphi 0, %s619
      %s637 = sphi 0, %s637
      %s639 = sphi 0, %s637
      %s640 = sphi 0, %s639
      %s654 = sphi 0, %s640
      %s658 = sphi 0, %s658
      %s660 = sphi 0, %s658
      %s661 = sphi 0, %s660
      %s675 = sphi 0, %s661
      %s679 = sphi 0, %s679
      %s681 = sphi 0, %s679
      %s682 = sphi 0, %s681
      %s696 = sphi 0, %s682
      %s700 = sphi 0, %s700
      %s702 = sphi 0, %s700
      %s703 = sphi 0, %s702
      %s717 = sphi 0, %s703
      %s723 = sphi 0, %s725
      %s726 = sphi 0, %s723
      %s727 = sphi 0, %s726
      %s743 = sphi 0, %s727
    $region4: #{tpu_custom_call.1} parent=1 // loop_header_branch
      %82 = sbr.rel (%p80) target = $region8
    $region5: #{tpu_custom_call.1} parent=1 // loop_body
      %s84 = ssub.s32 %s79, 1
      %s85 = ssub.s32 %s79, 2
      %s86 = sadd.s32 %s79, 1
      %s87 = ssub.s32 %s79, %s86
      %p88 = scmp.eq.s32.totalorder %s87, 0
      %s90 = sadd.s32 %s89, 1
      %s91 = scalar_select %p88, %s89, %s90
      %p94 = pneg %p88
      %p95 = scmp.eq.s32.totalorder %s79, 1
      %p96 = por %p94, %p95
      %p97 = scmp.ne.s32.totalorder %s89, %s92
      %p98 = scmp.eq.s32.totalorder %s79, 0
      %p99 = por %p97, %p98
      %p100 = scmp.ne.s32.totalorder %s89, %s92
      %p101 = scmp.eq.s32.totalorder %s84, 1
      %p102 = por %p100, %p101
      %p103 = scmp.ne.s32.totalorder %s92, %s93
      %p104 = scmp.eq.s32.totalorder %s84, 0
      %p105 = por %p103, %p104
      %p106 = scmp.ne.s32.totalorder %s92, %s93
      %p107 = scmp.eq.s32.totalorder %s85, 1
      %p108 = por %p106, %p107
      %p110 = scmp.ne.s32.totalorder %s93, %s109
      %p111 = scmp.eq.s32.totalorder %s85, 0
      %p112 = por %p110, %p111
      %s113 = ssub.s32 %s79, %s86
      %p114 = scmp.eq.s32.totalorder %s113, 0
      %s116 = sadd.s32 %s115, 1
      %s117 = scalar_select %p114, %s115, %s116
      %p120 = pneg %p114
      %p121 = scmp.eq.s32.totalorder %s79, 1
      %p122 = por %p120, %p121
      %p123 = scmp.ne.s32.totalorder %s115, %s118
      %p124 = scmp.eq.s32.totalorder %s79, 0
      %p125 = por %p123, %p124
      %p126 = scmp.ne.s32.totalorder %s115, %s118
      %p127 = scmp.eq.s32.totalorder %s84, 1
      %p128 = por %p126, %p127
      %p129 = scmp.ne.s32.totalorder %s118, %s119
      %p130 = scmp.eq.s32.totalorder %s84, 0
      %p131 = por %p129, %p130
      %p132 = scmp.ne.s32.totalorder %s118, %s119
      %p133 = scmp.eq.s32.totalorder %s85, 1
      %p134 = por %p132, %p133
      %p136 = scmp.ne.s32.totalorder %s119, %s135
      %p137 = scmp.eq.s32.totalorder %s85, 0
      %p138 = por %p136, %p137
      %s139 = ssub.s32 %s79, %s86
      %p140 = scmp.eq.s32.totalorder %s139, 0
      %s142 = sadd.s32 %s141, 1
      %s143 = scalar_select %p140, %s141, %s142
      %p146 = pneg %p140
      %p147 = scmp.eq.s32.totalorder %s79, 1
      %p148 = por %p146, %p147
      %p149 = scmp.ne.s32.totalorder %s141, %s144
      %p150 = scmp.eq.s32.totalorder %s79, 0
      %p151 = por %p149, %p150
      %p152 = scmp.ne.s32.totalorder %s141, %s144
      %p153 = scmp.eq.s32.totalorder %s84, 1
      %p154 = por %p152, %p153
      %p155 = scmp.ne.s32.totalorder %s144, %s145
      %p156 = scmp.eq.s32.totalorder %s84, 0
      %p157 = por %p155, %p156
      %p158 = scmp.ne.s32.totalorder %s144, %s145
      %p159 = scmp.eq.s32.totalorder %s85, 1
      %p160 = por %p158, %p159
      %p162 = scmp.ne.s32.totalorder %s145, %s161
      %p163 = scmp.eq.s32.totalorder %s85, 0
      %p164 = por %p162, %p163
      %s165 = ssub.s32 %s79, %s86
      %p166 = scmp.eq.s32.totalorder %s165, 0
      %s168 = sadd.s32 %s167, 1
      %s169 = scalar_select %p166, %s167, %s168
      %p172 = pneg %p166
      %p173 = scmp.eq.s32.totalorder %s79, 1
      %p174 = por %p172, %p173
      %p175 = scmp.ne.s32.totalorder %s167, %s170
      %p176 = scmp.eq.s32.totalorder %s79, 0
      %p177 = por %p175, %p176
      %p178 = scmp.ne.s32.totalorder %s167, %s170
      %p179 = scmp.eq.s32.totalorder %s84, 1
      %p180 = por %p178, %p179
      %p181 = scmp.ne.s32.totalorder %s170, %s171
      %p182 = scmp.eq.s32.totalorder %s84, 0
      %p183 = por %p181, %p182
      %p184 = scmp.ne.s32.totalorder %s170, %s171
      %p185 = scmp.eq.s32.totalorder %s85, 1
      %p186 = por %p184, %p185
      %p188 = scmp.ne.s32.totalorder %s171, %s187
      %p189 = scmp.eq.s32.totalorder %s85, 0
      %p190 = por %p188, %p189
      %s191 = ssub.s32 %s79, %s86
      %p192 = scmp.eq.s32.totalorder %s191, 0
      %s194 = sadd.s32 %s193, 1
      %s195 = scalar_select %p192, %s193, %s194
      %p198 = pneg %p192
      %p199 = scmp.eq.s32.totalorder %s79, 1
      %p200 = por %p198, %p199
      %p201 = scmp.ne.s32.totalorder %s193, %s196
      %p202 = scmp.eq.s32.totalorder %s79, 0
      %p203 = por %p201, %p202
      %p204 = scmp.ne.s32.totalorder %s193, %s196
      %p205 = scmp.eq.s32.totalorder %s84, 1
      %p206 = por %p204, %p205
      %p207 = scmp.ne.s32.totalorder %s196, %s197
      %p208 = scmp.eq.s32.totalorder %s84, 0
      %p209 = por %p207, %p208
      %p210 = scmp.ne.s32.totalorder %s196, %s197
      %p211 = scmp.eq.s32.totalorder %s85, 1
      %p212 = por %p210, %p211
      %p214 = scmp.ne.s32.totalorder %s197, %s213
      %p215 = scmp.eq.s32.totalorder %s85, 0
      %p216 = por %p214, %p215
      %s218 = sadd.s32 %s217, 1
      %p221 = scmp.eq.s32.totalorder %s79, 1
      %p222 = scmp.ne.s32.totalorder %s217, %s219
      %p223 = scmp.eq.s32.totalorder %s79, 0
      %p224 = por %p222, %p223
      %p225 = scmp.ne.s32.totalorder %s217, %s219
      %p226 = scmp.eq.s32.totalorder %s84, 1
      %p227 = por %p225, %p226
      %p228 = scmp.ne.s32.totalorder %s219, %s220
      %p229 = scmp.eq.s32.totalorder %s84, 0
      %p230 = por %p228, %p229
      %p231 = scmp.ne.s32.totalorder %s219, %s220
      %p232 = scmp.eq.s32.totalorder %s85, 1
      %p233 = por %p231, %p232
      %p235 = scmp.ne.s32.totalorder %s220, %s234
      %p236 = scmp.eq.s32.totalorder %s85, 0
      %p237 = por %p235, %p236
      %s239 = sadd.s32 %s238, 1
      %p242 = scmp.eq.s32.totalorder %s79, 1
      %p243 = scmp.ne.s32.totalorder %s238, %s240
      %p244 = scmp.eq.s32.totalorder %s79, 0
      %p245 = por %p243, %p244
      %p246 = scmp.ne.s32.totalorder %s238, %s240
      %p247 = scmp.eq.s32.totalorder %s84, 1
      %p248 = por %p246, %p247
      %p249 = scmp.ne.s32.totalorder %s240, %s241
      %p250 = scmp.eq.s32.totalorder %s84, 0
      %p251 = por %p249, %p250
      %p252 = scmp.ne.s32.totalorder %s240, %s241
      %p253 = scmp.eq.s32.totalorder %s85, 1
      %p254 = por %p252, %p253
      %p256 = scmp.ne.s32.totalorder %s241, %s255
      %p257 = scmp.eq.s32.totalorder %s85, 0
      %p258 = por %p256, %p257
      %s260 = sadd.s32 %s259, 1
      %p263 = scmp.eq.s32.totalorder %s79, 1
      %p264 = scmp.ne.s32.totalorder %s259, %s261
      %p265 = scmp.eq.s32.totalorder %s79, 0
      %p266 = por %p264, %p265
      %p267 = scmp.ne.s32.totalorder %s259, %s261
      %p268 = scmp.eq.s32.totalorder %s84, 1
      %p269 = por %p267, %p268
      %p270 = scmp.ne.s32.totalorder %s261, %s262
      %p271 = scmp.eq.s32.totalorder %s84, 0
      %p272 = por %p270, %p271
      %p273 = scmp.ne.s32.totalorder %s261, %s262
      %p274 = scmp.eq.s32.totalorder %s85, 1
      %p275 = por %p273, %p274
      %p277 = scmp.ne.s32.totalorder %s262, %s276
      %p278 = scmp.eq.s32.totalorder %s85, 0
      %p279 = por %p277, %p278
      %s281 = sadd.s32 %s280, 1
      %p284 = scmp.eq.s32.totalorder %s79, 1
      %p285 = scmp.ne.s32.totalorder %s280, %s282
      %p286 = scmp.eq.s32.totalorder %s79, 0
      %p287 = por %p285, %p286
      %p288 = scmp.ne.s32.totalorder %s280, %s282
      %p289 = scmp.eq.s32.totalorder %s84, 1
      %p290 = por %p288, %p289
      %p291 = scmp.ne.s32.totalorder %s282, %s283
      %p292 = scmp.eq.s32.totalorder %s84, 0
      %p293 = por %p291, %p292
      %p294 = scmp.ne.s32.totalorder %s282, %s283
      %p295 = scmp.eq.s32.totalorder %s85, 1
      %p296 = por %p294, %p295
      %p298 = scmp.ne.s32.totalorder %s283, %s297
      %p299 = scmp.eq.s32.totalorder %s85, 0
      %p300 = por %p298, %p299
      %s302 = sadd.s32 %s301, 1
      %p305 = scmp.eq.s32.totalorder %s79, 1
      %p306 = scmp.ne.s32.totalorder %s301, %s303
      %p307 = scmp.eq.s32.totalorder %s79, 0
      %p308 = por %p306, %p307
      %p309 = scmp.ne.s32.totalorder %s301, %s303
      %p310 = scmp.eq.s32.totalorder %s84, 1
      %p311 = por %p309, %p310
      %p312 = scmp.ne.s32.totalorder %s303, %s304
      %p313 = scmp.eq.s32.totalorder %s84, 0
      %p314 = por %p312, %p313
      %p315 = scmp.ne.s32.totalorder %s303, %s304
      %p316 = scmp.eq.s32.totalorder %s85, 1
      %p317 = por %p315, %p316
      %p319 = scmp.ne.s32.totalorder %s304, %s318
      %p320 = scmp.eq.s32.totalorder %s85, 0
      %p321 = por %p319, %p320
      %s323 = sadd.s32 %s322, 1
      %p326 = scmp.eq.s32.totalorder %s79, 1
      %p327 = scmp.ne.s32.totalorder %s322, %s324
      %p328 = scmp.eq.s32.totalorder %s79, 0
      %p329 = por %p327, %p328
      %p330 = scmp.ne.s32.totalorder %s322, %s324
      %p331 = scmp.eq.s32.totalorder %s84, 1
      %p332 = por %p330, %p331
      %p333 = scmp.ne.s32.totalorder %s324, %s325
      %p334 = scmp.eq.s32.totalorder %s84, 0
      %p335 = por %p333, %p334
      %p336 = scmp.ne.s32.totalorder %s324, %s325
      %p337 = scmp.eq.s32.totalorder %s85, 1
      %p338 = por %p336, %p337
      %p340 = scmp.ne.s32.totalorder %s325, %s339
      %p341 = scmp.eq.s32.totalorder %s85, 0
      %p342 = por %p340, %p341
      %s344 = sadd.s32 %s343, 1
      %p347 = scmp.eq.s32.totalorder %s79, 1
      %p348 = scmp.ne.s32.totalorder %s343, %s345
      %p349 = scmp.eq.s32.totalorder %s79, 0
      %p350 = por %p348, %p349
      %p351 = scmp.ne.s32.totalorder %s343, %s345
      %p352 = scmp.eq.s32.totalorder %s84, 1
      %p353 = por %p351, %p352
      %p354 = scmp.ne.s32.totalorder %s345, %s346
      %p355 = scmp.eq.s32.totalorder %s84, 0
      %p356 = por %p354, %p355
      %p357 = scmp.ne.s32.totalorder %s345, %s346
      %p358 = scmp.eq.s32.totalorder %s85, 1
      %p359 = por %p357, %p358
      %p361 = scmp.ne.s32.totalorder %s346, %s360
      %p362 = scmp.eq.s32.totalorder %s85, 0
      %p363 = por %p361, %p362
      %s365 = sadd.s32 %s364, 1
      %p368 = scmp.eq.s32.totalorder %s79, 1
      %p369 = scmp.ne.s32.totalorder %s364, %s366
      %p370 = scmp.eq.s32.totalorder %s79, 0
      %p371 = por %p369, %p370
      %p372 = scmp.ne.s32.totalorder %s364, %s366
      %p373 = scmp.eq.s32.totalorder %s84, 1
      %p374 = por %p372, %p373
      %p375 = scmp.ne.s32.totalorder %s366, %s367
      %p376 = scmp.eq.s32.totalorder %s84, 0
      %p377 = por %p375, %p376
      %p378 = scmp.ne.s32.totalorder %s366, %s367
      %p379 = scmp.eq.s32.totalorder %s85, 1
      %p380 = por %p378, %p379
      %p382 = scmp.ne.s32.totalorder %s367, %s381
      %p383 = scmp.eq.s32.totalorder %s85, 0
      %p384 = por %p382, %p383
      %s386 = sadd.s32 %s385, 1
      %p389 = scmp.eq.s32.totalorder %s79, 1
      %p390 = scmp.ne.s32.totalorder %s385, %s387
      %p391 = scmp.eq.s32.totalorder %s79, 0
      %p392 = por %p390, %p391
      %p393 = scmp.ne.s32.totalorder %s385, %s387
      %p394 = scmp.eq.s32.totalorder %s84, 1
      %p395 = por %p393, %p394
      %p396 = scmp.ne.s32.totalorder %s387, %s388
      %p397 = scmp.eq.s32.totalorder %s84, 0
      %p398 = por %p396, %p397
      %p399 = scmp.ne.s32.totalorder %s387, %s388
      %p400 = scmp.eq.s32.totalorder %s85, 1
      %p401 = por %p399, %p400
      %p403 = scmp.ne.s32.totalorder %s388, %s402
      %p404 = scmp.eq.s32.totalorder %s85, 0
      %p405 = por %p403, %p404
      %s407 = sadd.s32 %s406, 1
      %p410 = scmp.eq.s32.totalorder %s79, 1
      %p411 = scmp.ne.s32.totalorder %s406, %s408
      %p412 = scmp.eq.s32.totalorder %s79, 0
      %p413 = por %p411, %p412
      %p414 = scmp.ne.s32.totalorder %s406, %s408
      %p415 = scmp.eq.s32.totalorder %s84, 1
      %p416 = por %p414, %p415
      %p417 = scmp.ne.s32.totalorder %s408, %s409
      %p418 = scmp.eq.s32.totalorder %s84, 0
      %p419 = por %p417, %p418
      %p420 = scmp.ne.s32.totalorder %s408, %s409
      %p421 = scmp.eq.s32.totalorder %s85, 1
      %p422 = por %p420, %p421
      %p424 = scmp.ne.s32.totalorder %s409, %s423
      %p425 = scmp.eq.s32.totalorder %s85, 0
      %p426 = por %p424, %p425
      %s428 = sadd.s32 %s427, 1
      %p431 = scmp.eq.s32.totalorder %s79, 1
      %p432 = scmp.ne.s32.totalorder %s427, %s429
      %p433 = scmp.eq.s32.totalorder %s79, 0
      %p434 = por %p432, %p433
      %p435 = scmp.ne.s32.totalorder %s427, %s429
      %p436 = scmp.eq.s32.totalorder %s84, 1
      %p437 = por %p435, %p436
      %p438 = scmp.ne.s32.totalorder %s429, %s430
      %p439 = scmp.eq.s32.totalorder %s84, 0
      %p440 = por %p438, %p439
      %p441 = scmp.ne.s32.totalorder %s429, %s430
      %p442 = scmp.eq.s32.totalorder %s85, 1
      %p443 = por %p441, %p442
      %p445 = scmp.ne.s32.totalorder %s430, %s444
      %p446 = scmp.eq.s32.totalorder %s85, 0
      %p447 = por %p445, %p446
      %s449 = sadd.s32 %s448, 1
      %p452 = scmp.eq.s32.totalorder %s79, 1
      %p453 = scmp.ne.s32.totalorder %s448, %s450
      %p454 = scmp.eq.s32.totalorder %s79, 0
      %p455 = por %p453, %p454
      %p456 = scmp.ne.s32.totalorder %s448, %s450
      %p457 = scmp.eq.s32.totalorder %s84, 1
      %p458 = por %p456, %p457
      %p459 = scmp.ne.s32.totalorder %s450, %s451
      %p460 = scmp.eq.s32.totalorder %s84, 0
      %p461 = por %p459, %p460
      %p462 = scmp.ne.s32.totalorder %s450, %s451
      %p463 = scmp.eq.s32.totalorder %s85, 1
      %p464 = por %p462, %p463
      %p466 = scmp.ne.s32.totalorder %s451, %s465
      %p467 = scmp.eq.s32.totalorder %s85, 0
      %p468 = por %p466, %p467
      %s470 = sadd.s32 %s469, 1
      %p473 = scmp.eq.s32.totalorder %s79, 1
      %p474 = scmp.ne.s32.totalorder %s469, %s471
      %p475 = scmp.eq.s32.totalorder %s79, 0
      %p476 = por %p474, %p475
      %p477 = scmp.ne.s32.totalorder %s469, %s471
      %p478 = scmp.eq.s32.totalorder %s84, 1
      %p479 = por %p477, %p478
      %p480 = scmp.ne.s32.totalorder %s471, %s472
      %p481 = scmp.eq.s32.totalorder %s84, 0
      %p482 = por %p480, %p481
      %p483 = scmp.ne.s32.totalorder %s471, %s472
      %p484 = scmp.eq.s32.totalorder %s85, 1
      %p485 = por %p483, %p484
      %p487 = scmp.ne.s32.totalorder %s472, %s486
      %p488 = scmp.eq.s32.totalorder %s85, 0
      %p489 = por %p487, %p488
      %s491 = sadd.s32 %s490, 1
      %p494 = scmp.eq.s32.totalorder %s79, 1
      %p495 = scmp.ne.s32.totalorder %s490, %s492
      %p496 = scmp.eq.s32.totalorder %s79, 0
      %p497 = por %p495, %p496
      %p498 = scmp.ne.s32.totalorder %s490, %s492
      %p499 = scmp.eq.s32.totalorder %s84, 1
      %p500 = por %p498, %p499
      %p501 = scmp.ne.s32.totalorder %s492, %s493
      %p502 = scmp.eq.s32.totalorder %s84, 0
      %p503 = por %p501, %p502
      %p504 = scmp.ne.s32.totalorder %s492, %s493
      %p505 = scmp.eq.s32.totalorder %s85, 1
      %p506 = por %p504, %p505
      %p508 = scmp.ne.s32.totalorder %s493, %s507
      %p509 = scmp.eq.s32.totalorder %s85, 0
      %p510 = por %p508, %p509
      %s512 = sadd.s32 %s511, 1
      %p515 = scmp.eq.s32.totalorder %s79, 1
      %p516 = scmp.ne.s32.totalorder %s511, %s513
      %p517 = scmp.eq.s32.totalorder %s79, 0
      %p518 = por %p516, %p517
      %p519 = scmp.ne.s32.totalorder %s511, %s513
      %p520 = scmp.eq.s32.totalorder %s84, 1
      %p521 = por %p519, %p520
      %p522 = scmp.ne.s32.totalorder %s513, %s514
      %p523 = scmp.eq.s32.totalorder %s84, 0
      %p524 = por %p522, %p523
      %p525 = scmp.ne.s32.totalorder %s513, %s514
      %p526 = scmp.eq.s32.totalorder %s85, 1
      %p527 = por %p525, %p526
      %p529 = scmp.ne.s32.totalorder %s514, %s528
      %p530 = scmp.eq.s32.totalorder %s85, 0
      %p531 = por %p529, %p530
      %s533 = sadd.s32 %s532, 1
      %p536 = scmp.eq.s32.totalorder %s79, 1
      %p537 = scmp.ne.s32.totalorder %s532, %s534
      %p538 = scmp.eq.s32.totalorder %s79, 0
      %p539 = por %p537, %p538
      %p540 = scmp.ne.s32.totalorder %s532, %s534
      %p541 = scmp.eq.s32.totalorder %s84, 1
      %p542 = por %p540, %p541
      %p543 = scmp.ne.s32.totalorder %s534, %s535
      %p544 = scmp.eq.s32.totalorder %s84, 0
      %p545 = por %p543, %p544
      %p546 = scmp.ne.s32.totalorder %s534, %s535
      %p547 = scmp.eq.s32.totalorder %s85, 1
      %p548 = por %p546, %p547
      %p550 = scmp.ne.s32.totalorder %s535, %s549
      %p551 = scmp.eq.s32.totalorder %s85, 0
      %p552 = por %p550, %p551
      %s554 = sadd.s32 %s553, 1
      %p557 = scmp.eq.s32.totalorder %s79, 1
      %p558 = scmp.ne.s32.totalorder %s553, %s555
      %p559 = scmp.eq.s32.totalorder %s79, 0
      %p560 = por %p558, %p559
      %p561 = scmp.ne.s32.totalorder %s553, %s555
      %p562 = scmp.eq.s32.totalorder %s84, 1
      %p563 = por %p561, %p562
      %p564 = scmp.ne.s32.totalorder %s555, %s556
      %p565 = scmp.eq.s32.totalorder %s84, 0
      %p566 = por %p564, %p565
      %p567 = scmp.ne.s32.totalorder %s555, %s556
      %p568 = scmp.eq.s32.totalorder %s85, 1
      %p569 = por %p567, %p568
      %p571 = scmp.ne.s32.totalorder %s556, %s570
      %p572 = scmp.eq.s32.totalorder %s85, 0
      %p573 = por %p571, %p572
      %s575 = sadd.s32 %s574, 1
      %p578 = scmp.eq.s32.totalorder %s79, 1
      %p579 = scmp.ne.s32.totalorder %s574, %s576
      %p580 = scmp.eq.s32.totalorder %s79, 0
      %p581 = por %p579, %p580
      %p582 = scmp.ne.s32.totalorder %s574, %s576
      %p583 = scmp.eq.s32.totalorder %s84, 1
      %p584 = por %p582, %p583
      %p585 = scmp.ne.s32.totalorder %s576, %s577
      %p586 = scmp.eq.s32.totalorder %s84, 0
      %p587 = por %p585, %p586
      %p588 = scmp.ne.s32.totalorder %s576, %s577
      %p589 = scmp.eq.s32.totalorder %s85, 1
      %p590 = por %p588, %p589
      %p592 = scmp.ne.s32.totalorder %s577, %s591
      %p593 = scmp.eq.s32.totalorder %s85, 0
      %p594 = por %p592, %p593
      %s596 = sadd.s32 %s595, 1
      %p599 = scmp.eq.s32.totalorder %s79, 1
      %p600 = scmp.ne.s32.totalorder %s595, %s597
      %p601 = scmp.eq.s32.totalorder %s79, 0
      %p602 = por %p600, %p601
      %p603 = scmp.ne.s32.totalorder %s595, %s597
      %p604 = scmp.eq.s32.totalorder %s84, 1
      %p605 = por %p603, %p604
      %p606 = scmp.ne.s32.totalorder %s597, %s598
      %p607 = scmp.eq.s32.totalorder %s84, 0
      %p608 = por %p606, %p607
      %p609 = scmp.ne.s32.totalorder %s597, %s598
      %p610 = scmp.eq.s32.totalorder %s85, 1
      %p611 = por %p609, %p610
      %p613 = scmp.ne.s32.totalorder %s598, %s612
      %p614 = scmp.eq.s32.totalorder %s85, 0
      %p615 = por %p613, %p614
      %s617 = sadd.s32 %s616, 1
      %p620 = scmp.eq.s32.totalorder %s79, 1
      %p621 = scmp.ne.s32.totalorder %s616, %s618
      %p622 = scmp.eq.s32.totalorder %s79, 0
      %p623 = por %p621, %p622
      %p624 = scmp.ne.s32.totalorder %s616, %s618
      %p625 = scmp.eq.s32.totalorder %s84, 1
      %p626 = por %p624, %p625
      %p627 = scmp.ne.s32.totalorder %s618, %s619
      %p628 = scmp.eq.s32.totalorder %s84, 0
      %p629 = por %p627, %p628
      %p630 = scmp.ne.s32.totalorder %s618, %s619
      %p631 = scmp.eq.s32.totalorder %s85, 1
      %p632 = por %p630, %p631
      %p634 = scmp.ne.s32.totalorder %s619, %s633
      %p635 = scmp.eq.s32.totalorder %s85, 0
      %p636 = por %p634, %p635
      %s638 = sadd.s32 %s637, 1
      %p641 = scmp.eq.s32.totalorder %s79, 1
      %p642 = scmp.ne.s32.totalorder %s637, %s639
      %p643 = scmp.eq.s32.totalorder %s79, 0
      %p644 = por %p642, %p643
      %p645 = scmp.ne.s32.totalorder %s637, %s639
      %p646 = scmp.eq.s32.totalorder %s84, 1
      %p647 = por %p645, %p646
      %p648 = scmp.ne.s32.totalorder %s639, %s640
      %p649 = scmp.eq.s32.totalorder %s84, 0
      %p650 = por %p648, %p649
      %p651 = scmp.ne.s32.totalorder %s639, %s640
      %p652 = scmp.eq.s32.totalorder %s85, 1
      %p653 = por %p651, %p652
      %p655 = scmp.ne.s32.totalorder %s640, %s654
      %p656 = scmp.eq.s32.totalorder %s85, 0
      %p657 = por %p655, %p656
      %s659 = sadd.s32 %s658, 1
      %p662 = scmp.eq.s32.totalorder %s79, 1
      %p663 = scmp.ne.s32.totalorder %s658, %s660
      %p664 = scmp.eq.s32.totalorder %s79, 0
      %p665 = por %p663, %p664
      %p666 = scmp.ne.s32.totalorder %s658, %s660
      %p667 = scmp.eq.s32.totalorder %s84, 1
      %p668 = por %p666, %p667
      %p669 = scmp.ne.s32.totalorder %s660, %s661
      %p670 = scmp.eq.s32.totalorder %s84, 0
      %p671 = por %p669, %p670
      %p672 = scmp.ne.s32.totalorder %s660, %s661
      %p673 = scmp.eq.s32.totalorder %s85, 1
      %p674 = por %p672, %p673
      %p676 = scmp.ne.s32.totalorder %s661, %s675
      %p677 = scmp.eq.s32.totalorder %s85, 0
      %p678 = por %p676, %p677
      %s680 = sadd.s32 %s679, 1
      %p683 = scmp.eq.s32.totalorder %s79, 1
      %p684 = scmp.ne.s32.totalorder %s679, %s681
      %p685 = scmp.eq.s32.totalorder %s79, 0
      %p686 = por %p684, %p685
      %p687 = scmp.ne.s32.totalorder %s679, %s681
      %p688 = scmp.eq.s32.totalorder %s84, 1
      %p689 = por %p687, %p688
      %p690 = scmp.ne.s32.totalorder %s681, %s682
      %p691 = scmp.eq.s32.totalorder %s84, 0
      %p692 = por %p690, %p691
      %p693 = scmp.ne.s32.totalorder %s681, %s682
      %p694 = scmp.eq.s32.totalorder %s85, 1
      %p695 = por %p693, %p694
      %p697 = scmp.ne.s32.totalorder %s682, %s696
      %p698 = scmp.eq.s32.totalorder %s85, 0
      %p699 = por %p697, %p698
      %s701 = sadd.s32 %s700, 1
      %p704 = scmp.eq.s32.totalorder %s79, 1
      %p705 = scmp.ne.s32.totalorder %s700, %s702
      %p706 = scmp.eq.s32.totalorder %s79, 0
      %p707 = por %p705, %p706
      %p708 = scmp.ne.s32.totalorder %s700, %s702
      %p709 = scmp.eq.s32.totalorder %s84, 1
      %p710 = por %p708, %p709
      %p711 = scmp.ne.s32.totalorder %s702, %s703
      %p712 = scmp.eq.s32.totalorder %s84, 0
      %p713 = por %p711, %p712
      %p714 = scmp.ne.s32.totalorder %s702, %s703
      %p715 = scmp.eq.s32.totalorder %s85, 1
      %p716 = por %p714, %p715
      %p718 = scmp.ne.s32.totalorder %s703, %s717
      %p719 = scmp.eq.s32.totalorder %s85, 0
      %p720 = por %p718, %p719
      %s721 = ssub.s32 %s79, %s86
      %p722 = scmp.eq.s32.totalorder %s721, 0
      %s724 = sadd.s32 %s723, 1
      %s725 = scalar_select %p722, %s723, %s724
      %p728 = pneg %p722
      %p729 = scmp.eq.s32.totalorder %s79, 1
      %p730 = por %p728, %p729
      %p731 = scmp.ne.s32.totalorder %s723, %s726
      %p732 = scmp.eq.s32.totalorder %s79, 0
      %p733 = por %p731, %p732
      %p734 = scmp.ne.s32.totalorder %s723, %s726
      %p735 = scmp.eq.s32.totalorder %s84, 1
      %p736 = por %p734, %p735
      %p737 = scmp.ne.s32.totalorder %s726, %s727
      %p738 = scmp.eq.s32.totalorder %s84, 0
      %p739 = por %p737, %p738
      %p740 = scmp.ne.s32.totalorder %s726, %s727
      %p741 = scmp.eq.s32.totalorder %s85, 1
      %p742 = por %p740, %p741
      %p744 = scmp.ne.s32.totalorder %s727, %s743
      %p745 = scmp.eq.s32.totalorder %s85, 0
      %p746 = por %p744, %p745
      %p747 = scmp.le.s32.totalorder 1, %s79
      %p748 = scmp.lt.s32.totalorder %s79, 3
      %p749 = pnand %p747, %p748
      %p750 = pneg %p749
      // Predicated region
      $region9: #{tpu_custom_call.1} parent=5 // pred_check
        _
      $region10: #{tpu_custom_call.1} parent=5 // pred_check_branch
        %752 = sbr.rel (%p749) target = $region12
      $region11: #{tpu_custom_call.1} parent=5 // pred_region
        %s753 = ssub.s32 %s79, 1
        // Predicated region
        $region13: #{tpu_custom_call.1} parent=11 // pred_check
          %p754 = pneg %p230
        $region14: #{tpu_custom_call.1} parent=11 // pred_check_branch
          %756 = sbr.rel (%p754) target = $region16
        $region15: #{tpu_custom_call.1} parent=11 // pred_region
          %758 = vsyncadd [#allocation6], 0
          %s759 = sshll.u32 %s11, 4
          %s760 = int_to_ptr.hbm [resolvable:$true] %s759
          %s761 = sshll.u32 [#allocation7], 4
          %s762 = int_to_ptr.vmem [resolvable:$true] %s761
          %767 = dma.hbm_to_vmem [thread:$0]  %s760, 384, %s762, [#allocation6], 128, 128, 8
        $region16: #{tpu_custom_call.1} parent=11 // pred_fallthru
          _
        // Predicated region
        $region17: #{tpu_custom_call.1} parent=11 // pred_check
          %p768 = pneg %p251
        $region18: #{tpu_custom_call.1} parent=11 // pred_check_branch
          %770 = sbr.rel (%p768) target = $region20
        $region19: #{tpu_custom_call.1} parent=11 // pred_region
          %772 = vsyncadd [#allocation9], 0
          %s773 = sshll.u32 %s13, 4
          %s774 = int_to_ptr.hbm [resolvable:$true] %s773
          %s775 = sshll.u32 [#allocation8], 4
          %s776 = int_to_ptr.vmem [resolvable:$true] %s775
          %781 = dma.hbm_to_vmem [thread:$0]  %s774, 512, %s776, [#allocation9], 128, 128, 8
        $region20: #{tpu_custom_call.1} parent=11 // pred_fallthru
          _
        // Predicated region
        $region21: #{tpu_custom_call.1} parent=11 // pred_check
          %p782 = pneg %p272
        $region22: #{tpu_custom_call.1} parent=11 // pred_check_branch
          %784 = sbr.rel (%p782) target = $region24
        $region23: #{tpu_custom_call.1} parent=11 // pred_region
          _
        $region24: #{tpu_custom_call.1} parent=11 // pred_fallthru
          _
        // Predicated region
        $region25: #{tpu_custom_call.1} parent=11 // pred_check
          %p785 = pneg %p293
        $region26: #{tpu_custom_call.1} parent=11 // pred_check_branch
          %787 = sbr.rel (%p785) target = $region28
        $region27: #{tpu_custom_call.1} parent=11 // pred_region
          %789 = vsyncadd [#allocation9], 0
          %s790 = sshll.u32 %s17, 4
          %s791 = int_to_ptr.hbm [resolvable:$true] %s790
          %s792 = sshll.u32 [#allocation10], 4
          %s793 = int_to_ptr.vmem [resolvable:$true] %s792
          %798 = dma.hbm_to_vmem [thread:$0]  %s791, 2048, %s793, [#allocation9], 256, 256, 16
        $region28: #{tpu_custom_call.1} parent=11 // pred_fallthru
          _
        // Predicated region
        $region29: #{tpu_custom_call.1} parent=11 // pred_check
          %p799 = pneg %p314
        $region30: #{tpu_custom_call.1} parent=11 // pred_check_branch
          %801 = sbr.rel (%p799) target = $region32
        $region31: #{tpu_custom_call.1} parent=11 // pred_region
          %803 = vsyncadd [#allocation12], 0
          %s804 = sshll.u32 %s19, 4
          %s805 = int_to_ptr.hbm [resolvable:$true] %s804
          %s806 = sshll.u32 [#allocation11], 4
          %s807 = int_to_ptr.vmem [resolvable:$true] %s806
          %812 = dma.hbm_to_vmem [thread:$0]  %s805, 2048, %s807, [#allocation12], 256, 256, 16
        $region32: #{tpu_custom_call.1} parent=11 // pred_fallthru
          _
        // Predicated region
        $region33: #{tpu_custom_call.1} parent=11 // pred_check
          %p813 = pneg %p335
        $region34: #{tpu_custom_call.1} parent=11 // pred_check_branch
          %815 = sbr.rel (%p813) target = $region36
        $region35: #{tpu_custom_call.1} parent=11 // pred_region
          _
        $region36: #{tpu_custom_call.1} parent=11 // pred_fallthru
          _
        // Predicated region
        $region37: #{tpu_custom_call.1} parent=11 // pred_check
          %p816 = pneg %p356
        $region38: #{tpu_custom_call.1} parent=11 // pred_check_branch
          %818 = sbr.rel (%p816) target = $region40
        $region39: #{tpu_custom_call.1} parent=11 // pred_region
          _
        $region40: #{tpu_custom_call.1} parent=11 // pred_fallthru
          _
        // Predicated region
        $region41: #{tpu_custom_call.1} parent=11 // pred_check
          %p819 = pneg %p377
        $region42: #{tpu_custom_call.1} parent=11 // pred_check_branch
          %821 = sbr.rel (%p819) target = $region44
        $region43: #{tpu_custom_call.1} parent=11 // pred_region
          %823 = vsyncadd [#allocation12], 0
          %s824 = sshll.u32 %s25, 4
          %s825 = int_to_ptr.hbm [resolvable:$true] %s824
          %s826 = sshll.u32 [#allocation13], 4
          %s827 = int_to_ptr.vmem [resolvable:$true] %s826
          %832 = dma.hbm_to_vmem [thread:$0]  %s825, 1024, %s827, [#allocation12], 128, 128, 8
        $region44: #{tpu_custom_call.1} parent=11 // pred_fallthru
          _
        // Predicated region
        $region45: #{tpu_custom_call.1} parent=11 // pred_check
          %p833 = pneg %p398
        $region46: #{tpu_custom_call.1} parent=11 // pred_check_branch
          %835 = sbr.rel (%p833) target = $region48
        $region47: #{tpu_custom_call.1} parent=11 // pred_region
          _
        $region48: #{tpu_custom_call.1} parent=11 // pred_fallthru
          _
        // Predicated region
        $region49: #{tpu_custom_call.1} parent=11 // pred_check
          %p836 = pneg %p419
        $region50: #{tpu_custom_call.1} parent=11 // pred_check_branch
          %838 = sbr.rel (%p836) target = $region52
        $region51: #{tpu_custom_call.1} parent=11 // pred_region
          %840 = vsyncadd [#allocation15], 0
          %s841 = sshll.u32 %s29, 4
          %s842 = int_to_ptr.hbm [resolvable:$true] %s841
          %s843 = sshll.u32 [#allocation14], 4
          %s844 = int_to_ptr.vmem [resolvable:$true] %s843
          %849 = dma.hbm_to_vmem [thread:$0]  %s842, 512, %s844, [#allocation15], 128, 128, 8
        $region52: #{tpu_custom_call.1} parent=11 // pred_fallthru
          _
        // Predicated region
        $region53: #{tpu_custom_call.1} parent=11 // pred_check
          %p850 = pneg %p440
        $region54: #{tpu_custom_call.1} parent=11 // pred_check_branch
          %852 = sbr.rel (%p850) target = $region56
        $region55: #{tpu_custom_call.1} parent=11 // pred_region
          %854 = vsyncadd [#allocation15], 0
          %s855 = sshll.u32 %s31, 4
          %s856 = int_to_ptr.hbm [resolvable:$true] %s855
          %s857 = sshll.u32 [#allocation16], 4
          %s858 = int_to_ptr.vmem [resolvable:$true] %s857
          %863 = dma.hbm_to_vmem [thread:$0]  %s856, 512, %s858, [#allocation15], 128, 128, 8
        $region56: #{tpu_custom_call.1} parent=11 // pred_fallthru
          _
        // Predicated region
        $region57: #{tpu_custom_call.1} parent=11 // pred_check
          %p864 = pneg %p461
        $region58: #{tpu_custom_call.1} parent=11 // pred_check_branch
          %866 = sbr.rel (%p864) target = $region60
        $region59: #{tpu_custom_call.1} parent=11 // pred_region
          _
        $region60: #{tpu_custom_call.1} parent=11 // pred_fallthru
          _
        // Predicated region
        $region61: #{tpu_custom_call.1} parent=11 // pred_check
          %p867 = pneg %p482
        $region62: #{tpu_custom_call.1} parent=11 // pred_check_branch
          %869 = sbr.rel (%p867) target = $region64
        $region63: #{tpu_custom_call.1} parent=11 // pred_region
          _
        $region64: #{tpu_custom_call.1} parent=11 // pred_fallthru
          _
        // Predicated region
        $region65: #{tpu_custom_call.1} parent=11 // pred_check
          %p870 = pneg %p503
        $region66: #{tpu_custom_call.1} parent=11 // pred_check_branch
          %872 = sbr.rel (%p870) target = $region68
        $region67: #{tpu_custom_call.1} parent=11 // pred_region
          %874 = vsyncadd [#allocation18], 0
          %s875 = sshll.u32 %s37, 4
          %s876 = int_to_ptr.hbm [resolvable:$true] %s875
          %s877 = sshll.u32 [#allocation17], 4
          %s878 = int_to_ptr.vmem [resolvable:$true] %s877
          %883 = dma.hbm_to_vmem [thread:$0]  %s876, 2048, %s878, [#allocation18], 128, 128, 8
        $region68: #{tpu_custom_call.1} parent=11 // pred_fallthru
          _
        // Predicated region
        $region69: #{tpu_custom_call.1} parent=11 // pred_check
          %p884 = pneg %p524
        $region70: #{tpu_custom_call.1} parent=11 // pred_check_branch
          %886 = sbr.rel (%p884) target = $region72
        $region71: #{tpu_custom_call.1} parent=11 // pred_region
          _
        $region72: #{tpu_custom_call.1} parent=11 // pred_fallthru
          _
        // Predicated region
        $region73: #{tpu_custom_call.1} parent=11 // pred_check
          %p887 = pneg %p545
        $region74: #{tpu_custom_call.1} parent=11 // pred_check_branch
          %889 = sbr.rel (%p887) target = $region76
        $region75: #{tpu_custom_call.1} parent=11 // pred_region
          %891 = vsyncadd [#allocation18], 0
          %s892 = sshll.u32 %s41, 4
          %s893 = int_to_ptr.hbm [resolvable:$true] %s892
          %s894 = sshll.u32 [#allocation19], 4
          %s895 = int_to_ptr.vmem [resolvable:$true] %s894
          %900 = dma.hbm_to_vmem [thread:$0]  %s893, 256, %s895, [#allocation18], 128, 128, 8
        $region76: #{tpu_custom_call.1} parent=11 // pred_fallthru
          _
        // Predicated region
        $region77: #{tpu_custom_call.1} parent=11 // pred_check
          %p901 = pneg %p566
        $region78: #{tpu_custom_call.1} parent=11 // pred_check_branch
          %903 = sbr.rel (%p901) target = $region80
        $region79: #{tpu_custom_call.1} parent=11 // pred_region
          %905 = vsyncadd [#allocation21], 0
          %s906 = sshll.u32 %s43, 4
          %s907 = int_to_ptr.hbm [resolvable:$true] %s906
          %s908 = sshll.u32 [#allocation20], 4
          %s909 = int_to_ptr.vmem [resolvable:$true] %s908
          %914 = dma.hbm_to_vmem [thread:$0]  %s907, 256, %s909, [#allocation21], 128, 128, 8
        $region80: #{tpu_custom_call.1} parent=11 // pred_fallthru
          _
        // Predicated region
        $region81: #{tpu_custom_call.1} parent=11 // pred_check
          %p915 = pneg %p587
        $region82: #{tpu_custom_call.1} parent=11 // pred_check_branch
          %917 = sbr.rel (%p915) target = $region84
        $region83: #{tpu_custom_call.1} parent=11 // pred_region
          _
        $region84: #{tpu_custom_call.1} parent=11 // pred_fallthru
          _
        // Predicated region
        $region85: #{tpu_custom_call.1} parent=11 // pred_check
          %p918 = pneg %p608
        $region86: #{tpu_custom_call.1} parent=11 // pred_check_branch
          %920 = sbr.rel (%p918) target = $region88
        $region87: #{tpu_custom_call.1} parent=11 // pred_region
          _
        $region88: #{tpu_custom_call.1} parent=11 // pred_fallthru
          _
        // Predicated region
        $region89: #{tpu_custom_call.1} parent=11 // pred_check
          %p921 = pneg %p629
        $region90: #{tpu_custom_call.1} parent=11 // pred_check_branch
          %923 = sbr.rel (%p921) target = $region92
        $region91: #{tpu_custom_call.1} parent=11 // pred_region
          _
        $region92: #{tpu_custom_call.1} parent=11 // pred_fallthru
          _
        // Predicated region
        $region93: #{tpu_custom_call.1} parent=11 // pred_check
          %p924 = pneg %p650
        $region94: #{tpu_custom_call.1} parent=11 // pred_check_branch
          %926 = sbr.rel (%p924) target = $region96
        $region95: #{tpu_custom_call.1} parent=11 // pred_region
          _
        $region96: #{tpu_custom_call.1} parent=11 // pred_fallthru
          _
        // Predicated region
        $region97: #{tpu_custom_call.1} parent=11 // pred_check
          %p927 = pneg %p671
        $region98: #{tpu_custom_call.1} parent=11 // pred_check_branch
          %929 = sbr.rel (%p927) target = $region100
        $region99: #{tpu_custom_call.1} parent=11 // pred_region
          _
        $region100: #{tpu_custom_call.1} parent=11 // pred_fallthru
          _
        // Predicated region
        $region101: #{tpu_custom_call.1} parent=11 // pred_check
          %p930 = pneg %p692
        $region102: #{tpu_custom_call.1} parent=11 // pred_check_branch
          %932 = sbr.rel (%p930) target = $region104
        $region103: #{tpu_custom_call.1} parent=11 // pred_region
          %934 = vsyncadd [#allocation21], 0
          %s936 = sshll.u32 %s55, 4
          %s937 = int_to_ptr.hbm [resolvable:$true] %s936
          %s938 = sshll.u32 [#allocation22], 4
          %s939 = int_to_ptr.vmem [resolvable:$true] %s938
          %941 = dma.hbm_to_vmem [thread:$0]  %s937, 128, %s939, [#allocation21]
        $region104: #{tpu_custom_call.1} parent=11 // pred_fallthru
          _
        // Predicated region
        $region105: #{tpu_custom_call.1} parent=11 // pred_check
          %p942 = pneg %p713
        $region106: #{tpu_custom_call.1} parent=11 // pred_check_branch
          %944 = sbr.rel (%p942) target = $region108
        $region107: #{tpu_custom_call.1} parent=11 // pred_region
          _
        $region108: #{tpu_custom_call.1} parent=11 // pred_fallthru
          _
      $region12: #{tpu_custom_call.1} parent=5 // pred_fallthru
        _
      %p945 = scmp.lt.s32.totalorder %s79, 2
      // Predicated region
      $region109: #{tpu_custom_call.1} parent=5 // pred_check
        %p946 = pneg %p945
      $region110: #{tpu_custom_call.1} parent=5 // pred_check_branch
        %948 = sbr.rel (%p946) target = $region112
      $region111: #{tpu_custom_call.1} parent=5 // pred_region
        // Predicated region
        $region113: #{tpu_custom_call.1} parent=111 // pred_check
          %p949 = pneg %p99
        $region114: #{tpu_custom_call.1} parent=111 // pred_check_branch
          %951 = sbr.rel (%p949) target = $region116
        $region115: #{tpu_custom_call.1} parent=111 // pred_region
          %p952 = scmp.lt.s32.totalorder %s79, 1
          %s953 = scalar_select %p952, %s79, 1
          %s954 = smul.addr %s953, 16
          %s955 = smul.addr %s954, 8
          %s956 = scalar_lea.vmem %s1, %s955
        $region116: #{tpu_custom_call.1} parent=111 // pred_fallthru
          _
        // Predicated region
        $region117: #{tpu_custom_call.1} parent=111 // pred_check
          %p957 = pneg %p125
        $region118: #{tpu_custom_call.1} parent=111 // pred_check_branch
          %959 = sbr.rel (%p957) target = $region120
        $region119: #{tpu_custom_call.1} parent=111 // pred_region
          %p960 = scmp.lt.s32.totalorder %s79, 1
          %s961 = scalar_select %p960, %s79, 1
          %s962 = smul.addr %s961, 8
          %s963 = smul.addr %s962, 8
          %s964 = scalar_lea.vmem %s3, %s963
        $region120: #{tpu_custom_call.1} parent=111 // pred_fallthru
          _
        // Predicated region
        $region121: #{tpu_custom_call.1} parent=111 // pred_check
          %p965 = pneg %p151
        $region122: #{tpu_custom_call.1} parent=111 // pred_check_branch
          %967 = sbr.rel (%p965) target = $region124
        $region123: #{tpu_custom_call.1} parent=111 // pred_region
          %s968 = sand.u32 %s141, 1
          %s969 = scalar_lea.sflag [#allocation3], %s968
          %s970 = sand.u32 %s141, 1
          %s971 = smul.addr %s970, 32
          %s972 = scalar_lea.vmem [#allocation2], %s971
          %974 = vsyncadd %s969, 0
          %s975 = smul.addr %s79, 4
          %s976 = smul.addr %s975, 8
          %s977 = scalar_lea.hbm %s5, %s976
          %s978 = sshll.u32 %s977, 4
          %s979 = int_to_ptr.hbm [resolvable:$true] %s978
          %s980 = sshll.u32 %s972, 4
          %s981 = int_to_ptr.vmem [resolvable:$true] %s980
          %986 = dma.hbm_to_vmem [thread:$0]  %s979, 512, %s981, %s969, 128, 128, 8
        $region124: #{tpu_custom_call.1} parent=111 // pred_fallthru
          _
        // Predicated region
        $region125: #{tpu_custom_call.1} parent=111 // pred_check
          %p987 = pneg %p177
        $region126: #{tpu_custom_call.1} parent=111 // pred_check_branch
          %989 = sbr.rel (%p987) target = $region128
        $region127: #{tpu_custom_call.1} parent=111 // pred_region
          %s990 = sand.u32 %s79, 1
          %s991 = scalar_lea.sflag [#allocation6], %s990
          %s992 = sand.u32 %s167, 1
          %s993 = smul.addr %s992, 16
          %s994 = scalar_lea.vmem [#allocation5], %s993
          %996 = vsyncadd %s991, 0
          %s997 = smul.addr %s79, 2
          %s998 = smul.addr %s997, 8
          %s999 = scalar_lea.hbm %s7, %s998
          %s1000 = sshll.u32 %s999, 4
          %s1001 = int_to_ptr.hbm [resolvable:$true] %s1000
          %s1002 = sshll.u32 %s994, 4
          %s1003 = int_to_ptr.vmem [resolvable:$true] %s1002
          %1008 = dma.hbm_to_vmem [thread:$0]  %s1001, 256, %s1003, %s991, 128, 128, 8
        $region128: #{tpu_custom_call.1} parent=111 // pred_fallthru
          _
        // Predicated region
        $region129: #{tpu_custom_call.1} parent=111 // pred_check
          %p1009 = pneg %p203
        $region130: #{tpu_custom_call.1} parent=111 // pred_check_branch
          %1011 = sbr.rel (%p1009) target = $region132
        $region131: #{tpu_custom_call.1} parent=111 // pred_region
          %p1012 = scmp.lt.s32.totalorder %s79, 1
          %s1013 = scalar_select %p1012, %s79, 1
          %s1014 = smul.addr %s1013, 8
          %s1015 = scalar_lea.vmem %s9, %s1014
        $region132: #{tpu_custom_call.1} parent=111 // pred_fallthru
          _
      $region112: #{tpu_custom_call.1} parent=5 // pred_fallthru
        _
      %p1016 = scmp.le.s32.totalorder 1, %s79
      %p1017 = scmp.lt.s32.totalorder %s79, 3
      %p1018 = pnand %p1016, %p1017
      %p1019 = pneg %p1018
      // Predicated region
      $region133: #{tpu_custom_call.1} parent=5 // pred_check
        _
      $region134: #{tpu_custom_call.1} parent=5 // pred_check_branch
        %1021 = sbr.rel (%p1018) target = $region136
      $region135: #{tpu_custom_call.1} parent=5 // pred_region
        %s1022 = ssub.s32 %s79, 1
        %s1023 = sand.u32 %s144, 1
        %s1024 = scalar_lea.sflag [#allocation3], %s1023
        %s1025 = sand.u32 %s144, 1
        %s1026 = smul.addr %s1025, 32
        %s1027 = scalar_lea.vmem [#allocation2], %s1026
        // Predicated region
        $region137: #{tpu_custom_call.1} parent=135 // pred_check
          %p1028 = pneg %p157
        $region138: #{tpu_custom_call.1} parent=135 // pred_check_branch
          %1030 = sbr.rel (%p1028) target = $region140
        $region139: #{tpu_custom_call.1} parent=135 // pred_region
          %1032 = dma.done %s1024, 512
        $region140: #{tpu_custom_call.1} parent=135 // pred_fallthru
          _
        %s1033 = sand.u32 %s84, 1
        %s1034 = scalar_lea.sflag [#allocation6], %s1033
        %s1035 = sand.u32 %s170, 1
        %s1036 = smul.addr %s1035, 16
        %s1037 = scalar_lea.vmem [#allocation5], %s1036
        // Predicated region
        $region141: #{tpu_custom_call.1} parent=135 // pred_check
          %p1038 = pneg %p183
        $region142: #{tpu_custom_call.1} parent=135 // pred_check_branch
          %1040 = sbr.rel (%p1038) target = $region144
        $region143: #{tpu_custom_call.1} parent=135 // pred_region
          %1042 = dma.done %s1034, 256
        $region144: #{tpu_custom_call.1} parent=135 // pred_fallthru
          _
        // Predicated region
        $region145: #{tpu_custom_call.1} parent=135 // pred_check
          %p1043 = pneg %p230
        $region146: #{tpu_custom_call.1} parent=135 // pred_check_branch
          %1045 = sbr.rel (%p1043) target = $region148
        $region147: #{tpu_custom_call.1} parent=135 // pred_region
          %1047 = dma.done [#allocation6], 384
        $region148: #{tpu_custom_call.1} parent=135 // pred_fallthru
          _
        // Predicated region
        $region149: #{tpu_custom_call.1} parent=135 // pred_check
          %p1048 = pneg %p251
        $region150: #{tpu_custom_call.1} parent=135 // pred_check_branch
          %1050 = sbr.rel (%p1048) target = $region152
        $region151: #{tpu_custom_call.1} parent=135 // pred_region
          %1052 = dma.done [#allocation9], 512
        $region152: #{tpu_custom_call.1} parent=135 // pred_fallthru
          _
        // Predicated region
        $region153: #{tpu_custom_call.1} parent=135 // pred_check
          %p1053 = pneg %p293
        $region154: #{tpu_custom_call.1} parent=135 // pred_check_branch
          %1055 = sbr.rel (%p1053) target = $region156
        $region155: #{tpu_custom_call.1} parent=135 // pred_region
          %1057 = dma.done [#allocation9], 2048
        $region156: #{tpu_custom_call.1} parent=135 // pred_fallthru
          _
        // Predicated region
        $region157: #{tpu_custom_call.1} parent=135 // pred_check
          %p1058 = pneg %p314
        $region158: #{tpu_custom_call.1} parent=135 // pred_check_branch
          %1060 = sbr.rel (%p1058) target = $region160
        $region159: #{tpu_custom_call.1} parent=135 // pred_region
          %1062 = dma.done [#allocation12], 2048
        $region160: #{tpu_custom_call.1} parent=135 // pred_fallthru
          _
        // Predicated region
        $region161: #{tpu_custom_call.1} parent=135 // pred_check
          %p1063 = pneg %p377
        $region162: #{tpu_custom_call.1} parent=135 // pred_check_branch
          %1065 = sbr.rel (%p1063) target = $region164
        $region163: #{tpu_custom_call.1} parent=135 // pred_region
          %1067 = dma.done [#allocation12], 1024
        $region164: #{tpu_custom_call.1} parent=135 // pred_fallthru
          _
        // Predicated region
        $region165: #{tpu_custom_call.1} parent=135 // pred_check
          %p1068 = pneg %p419
        $region166: #{tpu_custom_call.1} parent=135 // pred_check_branch
          %1070 = sbr.rel (%p1068) target = $region168
        $region167: #{tpu_custom_call.1} parent=135 // pred_region
          %1072 = dma.done [#allocation15], 512
        $region168: #{tpu_custom_call.1} parent=135 // pred_fallthru
          _
        // Predicated region
        $region169: #{tpu_custom_call.1} parent=135 // pred_check
          %p1073 = pneg %p440
        $region170: #{tpu_custom_call.1} parent=135 // pred_check_branch
          %1075 = sbr.rel (%p1073) target = $region172
        $region171: #{tpu_custom_call.1} parent=135 // pred_region
          %1077 = dma.done [#allocation15], 512
        $region172: #{tpu_custom_call.1} parent=135 // pred_fallthru
          _
        // Predicated region
        $region173: #{tpu_custom_call.1} parent=135 // pred_check
          %p1078 = pneg %p503
        $region174: #{tpu_custom_call.1} parent=135 // pred_check_branch
          %1080 = sbr.rel (%p1078) target = $region176
        $region175: #{tpu_custom_call.1} parent=135 // pred_region
          %1082 = dma.done [#allocation18], 2048
        $region176: #{tpu_custom_call.1} parent=135 // pred_fallthru
          _
        // Predicated region
        $region177: #{tpu_custom_call.1} parent=135 // pred_check
          %p1083 = pneg %p545
        $region178: #{tpu_custom_call.1} parent=135 // pred_check_branch
          %1085 = sbr.rel (%p1083) target = $region180
        $region179: #{tpu_custom_call.1} parent=135 // pred_region
          %1087 = dma.done [#allocation18], 256
        $region180: #{tpu_custom_call.1} parent=135 // pred_fallthru
          _
        // Predicated region
        $region181: #{tpu_custom_call.1} parent=135 // pred_check
          %p1088 = pneg %p566
        $region182: #{tpu_custom_call.1} parent=135 // pred_check_branch
          %1090 = sbr.rel (%p1088) target = $region184
        $region183: #{tpu_custom_call.1} parent=135 // pred_region
          %1092 = dma.done [#allocation21], 256
        $region184: #{tpu_custom_call.1} parent=135 // pred_fallthru
          _
        // Predicated region
        $region185: #{tpu_custom_call.1} parent=135 // pred_check
          %p1093 = pneg %p692
        $region186: #{tpu_custom_call.1} parent=135 // pred_check_branch
          %1095 = sbr.rel (%p1093) target = $region188
        $region187: #{tpu_custom_call.1} parent=135 // pred_region
          %1097 = dma.done [#allocation21], 128
        $region188: #{tpu_custom_call.1} parent=135 // pred_fallthru
          _
        %p1098 = scmp.lt.s32.totalorder %s84, 1
        %s1099 = scalar_select %p1098, %s84, 1
        %s1100 = smul.addr %s1099, 16
        %s1101 = smul.addr %s1100, 8
        %s1102 = scalar_lea.vmem %s1, %s1101
        %p1103 = pneg %p105
        %p1104 = pneg %p102
        %p1105 = scmp.lt.s32.totalorder %s84, 1
        %s1106 = scalar_select %p1105, %s84, 1
        %s1107 = smul.addr %s1106, 8
        %s1108 = smul.addr %s1107, 8
        %s1109 = scalar_lea.vmem %s3, %s1108
        %p1110 = pneg %p131
        %p1111 = pneg %p128
        %s1112 = sand.u32 %s144, 1
        %s1113 = scalar_lea.sflag [#allocation3], %s1112
        %s1114 = sand.u32 %s144, 1
        %s1115 = smul.addr %s1114, 32
        %s1116 = scalar_lea.vmem [#allocation2], %s1115
        %p1117 = pneg %p157
        %p1118 = pneg %p154
        %s1119 = sand.u32 %s84, 1
        %s1120 = scalar_lea.sflag [#allocation6], %s1119
        %s1121 = sand.u32 %s170, 1
        %s1122 = smul.addr %s1121, 16
        %s1123 = scalar_lea.vmem [#allocation5], %s1122
        %p1124 = pneg %p183
        %p1125 = pneg %p180
        %p1126 = scmp.lt.s32.totalorder %s84, 1
        %s1127 = scalar_select %p1126, %s84, 1
        %s1128 = smul.addr %s1127, 8
        %s1129 = scalar_lea.vmem %s9, %s1128
        %p1130 = pneg %p209
        %p1131 = pneg %p206
        %p1132 = pneg %p230
        %p1133 = pneg %p227
        %p1134 = pneg %p251
        %p1135 = pneg %p248
        %p1136 = pneg %p272
        %p1137 = pneg %p269
        %p1138 = pneg %p293
        %p1139 = pneg %p290
        %p1140 = pneg %p314
        %p1141 = pneg %p311
        %p1142 = pneg %p335
        %p1143 = pneg %p332
        %p1144 = pneg %p356
        %p1145 = pneg %p353
        %p1146 = pneg %p377
        %p1147 = pneg %p374
        %p1148 = pneg %p398
        %p1149 = pneg %p395
        %p1150 = pneg %p419
        %p1151 = pneg %p416
        %p1152 = pneg %p440
        %p1153 = pneg %p437
        %p1154 = pneg %p461
        %p1155 = pneg %p458
        %p1156 = pneg %p482
        %p1157 = pneg %p479
        %p1158 = pneg %p503
        %p1159 = pneg %p500
        %p1160 = pneg %p524
        %p1161 = pneg %p521
        %p1162 = pneg %p545
        %p1163 = pneg %p542
        %p1164 = pneg %p566
        %p1165 = pneg %p563
        %p1166 = pneg %p587
        %p1167 = pneg %p584
        %p1168 = pneg %p608
        %p1169 = pneg %p605
        %p1170 = pneg %p629
        %p1171 = pneg %p626
        %p1172 = pneg %p650
        %p1173 = pneg %p647
        %p1174 = pneg %p671
        %p1175 = pneg %p668
        %p1176 = pneg %p692
        %p1177 = pneg %p689
        %p1178 = pneg %p713
        %p1179 = pneg %p710
        %p1180 = pneg %p739
        %p1181 = pneg %p736
        %s1182 = sand.u32 %s726, 1
        %s1183 = scalar_lea.sflag [#allocation4], %s1182
        %s1184 = sand.u32 %s726, 1
        %s1185 = smul.addr %s1184, 8
        %s1186 = scalar_lea.vmem [#allocation23], %s1185
        %p1187 = scmp.lt.s32.totalorder %s84, 1
        %s1188 = scalar_select %p1187, %s84, 1
        %s1189 = smul.addr %s1188, 16
        %s1190 = smul.addr %s1189, 8
        %s1191 = scalar_lea.vmem %s1, %s1190
        %p1192 = scmp.lt.s32.totalorder %s84, 1
        %s1193 = scalar_select %p1192, %s84, 1
        %s1194 = smul.addr %s1193, 8
        %s1195 = smul.addr %s1194, 8
        %s1196 = scalar_lea.vmem %s3, %s1195
        %p1197 = scmp.lt.s32.totalorder %s84, 1
        %s1198 = scalar_select %p1197, %s84, 1
        %s1199 = smul.addr %s1198, 8
        %s1200 = scalar_lea.vmem %s9, %s1199
        %v1201 = vld [vmem:[%s1191] sm:$0xff]
        %v1202 = vld [vmem:[%s1191 + $0x8] sm:$0xff]
        %v1203 = vld [vmem:[%s1191 + $0x10] sm:$0xff]
        %v1204 = vld [vmem:[%s1191 + $0x18] sm:$0xff]
        %v1205 = vld [vmem:[%s1191 + $0x20] sm:$0xff]
        %v1206 = vld [vmem:[%s1191 + $0x28] sm:$0xff]
        %v1207 = vld [vmem:[%s1191 + $0x30] sm:$0xff]
        %v1208 = vld [vmem:[%s1191 + $0x38] sm:$0xff]
        %v1209 = vld [vmem:[%s1191 + $0x40] sm:$0xff]
        %v1210 = vld [vmem:[%s1191 + $0x48] sm:$0xff]
        %v1211 = vld [vmem:[%s1191 + $0x50] sm:$0xff]
        %v1212 = vld [vmem:[%s1191 + $0x58] sm:$0xff]
        %v1213 = vld [vmem:[%s1191 + $0x60] sm:$0xff]
        %v1214 = vld [vmem:[%s1191 + $0x68] sm:$0xff]
        %v1215 = vld [vmem:[%s1191 + $0x70] sm:$0xff]
        %v1216 = vld [vmem:[%s1191 + $0x78] sm:$0xff]
        %v1217 = vld [vmem:[%s1196] sm:$0xff]
        %v1218 = vld [vmem:[%s1196 + $0x8] sm:$0xff]
        %v1219 = vld [vmem:[%s1196 + $0x10] sm:$0xff]
        %v1220 = vld [vmem:[%s1196 + $0x18] sm:$0xff]
        %v1221 = vld [vmem:[%s1196 + $0x20] sm:$0xff]
        %v1222 = vld [vmem:[%s1196 + $0x28] sm:$0xff]
        %v1223 = vld [vmem:[%s1196 + $0x30] sm:$0xff]
        %v1224 = vld [vmem:[%s1196 + $0x38] sm:$0xff]
        %v1225 = vld [vmem:[%s15] sm:$0xff]
        %v1226 = vld [vmem:[%s15 + $0x8] sm:$0xff]
        %v1227 = vld [vmem:[%s15 + $0x10] sm:$0xff]
        %v1228 = vld [vmem:[%s15 + $0x18] sm:$0xff]
        %v1229 = vld [vmem:[%s15 + $0x20] sm:$0xff]
        %v1230 = vld [vmem:[%s15 + $0x28] sm:$0xff]
        %v1231 = vld [vmem:[%s15 + $0x30] sm:$0xff]
        %v1232 = vld [vmem:[%s15 + $0x38] sm:$0xff]
        %v1233 = vld [vmem:[%s15 + $0x40] sm:$0xff]
        %v1234 = vld [vmem:[%s15 + $0x48] sm:$0xff]
        %v1235 = vld [vmem:[%s15 + $0x50] sm:$0xff]
        %v1236 = vld [vmem:[%s15 + $0x58] sm:$0xff]
        %v1237 = vld [vmem:[%s15 + $0x60] sm:$0xff]
        %v1238 = vld [vmem:[%s15 + $0x68] sm:$0xff]
        %v1239 = vld [vmem:[%s15 + $0x70] sm:$0xff]
        %v1240 = vld [vmem:[%s15 + $0x78] sm:$0xff]
        %v1241 = vld [vmem:[%s15 + $0x80] sm:$0xff]
        %v1242 = vld [vmem:[%s15 + $0x88] sm:$0xff]
        %v1243 = vld [vmem:[%s15 + $0x90] sm:$0xff]
        %v1244 = vld [vmem:[%s15 + $0x98] sm:$0xff]
        %v1245 = vld [vmem:[%s15 + $0xa0] sm:$0xff]
        %v1246 = vld [vmem:[%s15 + $0xa8] sm:$0xff]
        %v1247 = vld [vmem:[%s15 + $0xb0] sm:$0xff]
        %v1248 = vld [vmem:[%s15 + $0xb8] sm:$0xff]
        %1249 = vmatpush.msra.mxu0 %v1216
        %1250 = vmatpush.msra.mxu0 %v1215
        %1251 = vmatpush.msra.mxu0 %v1214
        %1252 = vmatpush.msra.mxu0 %v1213
        %1253 = vmatpush.msra.mxu0 %v1212
        %1254 = vmatpush.msra.mxu0 %v1211
        %1255 = vmatpush.msra.mxu0 %v1210
        %1256 = vmatpush.msra.mxu0 %v1209
        %1257 = vmatpush.msra.mxu0 %v1208
        %1258 = vmatpush.msra.mxu0 %v1207
        %1259 = vmatpush.msra.mxu0 %v1206
        %1260 = vmatpush.msra.mxu0 %v1205
        %1261 = vmatpush.msra.mxu0 %v1204
        %1262 = vmatpush.msra.mxu0 %v1203
        %1263 = vmatpush.msra.mxu0 %v1202
        %1264 = vmatpush.msra.mxu0 %v1201
        %1265 = vmatmul.f32.gmra.mxu0 %v1225
        %v1266 = vpop.f32.mrf.mxu0
        %v1267 = vadd.f32 0.0, %v1266
        %1268 = vmatmul.f32.gmra.mxu0 %v1226
        %v1269 = vpop.f32.mrf.mxu0
        %v1270 = vadd.f32 0.0, %v1269
        %1271 = vmatmul.f32.gmra.mxu0 %v1227
        %v1272 = vpop.f32.mrf.mxu0
        %v1273 = vadd.f32 0.0, %v1272
        %1274 = vmatmul.f32.gmra.mxu0 %v1228
        %v1275 = vpop.f32.mrf.mxu0
        %v1276 = vadd.f32 0.0, %v1275
        %1277 = vmatmul.f32.gmra.mxu0 %v1229
        %v1278 = vpop.f32.mrf.mxu0
        %v1279 = vadd.f32 0.0, %v1278
        %1280 = vmatmul.f32.gmra.mxu0 %v1230
        %v1281 = vpop.f32.mrf.mxu0
        %v1282 = vadd.f32 0.0, %v1281
        %1283 = vmatmul.f32.gmra.mxu0 %v1231
        %v1284 = vpop.f32.mrf.mxu0
        %v1285 = vadd.f32 0.0, %v1284
        %1286 = vmatmul.f32.gmra.mxu0 %v1232
        %v1287 = vpop.f32.mrf.mxu0
        %v1288 = vadd.f32 0.0, %v1287
        %1289 = vmatmul.f32.gmra.mxu0 %v1233
        %v1290 = vpop.f32.mrf.mxu0
        %v1291 = vadd.f32 0.0, %v1290
        %1292 = vmatmul.f32.gmra.mxu0 %v1234
        %v1293 = vpop.f32.mrf.mxu0
        %v1294 = vadd.f32 0.0, %v1293
        %1295 = vmatmul.f32.gmra.mxu0 %v1235
        %v1296 = vpop.f32.mrf.mxu0
        %v1297 = vadd.f32 0.0, %v1296
        %1298 = vmatmul.f32.gmra.mxu0 %v1236
        %v1299 = vpop.f32.mrf.mxu0
        %v1300 = vadd.f32 0.0, %v1299
        %1301 = vmatmul.f32.gmra.mxu0 %v1237
        %v1302 = vpop.f32.mrf.mxu0
        %v1303 = vadd.f32 0.0, %v1302
        %1304 = vmatmul.f32.gmra.mxu0 %v1238
        %v1305 = vpop.f32.mrf.mxu0
        %v1306 = vadd.f32 0.0, %v1305
        %1307 = vmatmul.f32.gmra.mxu0 %v1239
        %v1308 = vpop.f32.mrf.mxu0
        %v1309 = vadd.f32 0.0, %v1308
        %1310 = vmatmul.f32.gmra.mxu0 %v1240
        %v1311 = vpop.f32.mrf.mxu0
        %v1312 = vadd.f32 0.0, %v1311
        %1313 = vmatmul.f32.gmra.mxu0 %v1241
        %v1314 = vpop.f32.mrf.mxu0
        %v1315 = vadd.f32 0.0, %v1314
        %1316 = vmatmul.f32.gmra.mxu0 %v1242
        %v1317 = vpop.f32.mrf.mxu0
        %v1318 = vadd.f32 0.0, %v1317
        %1319 = vmatmul.f32.gmra.mxu0 %v1243
        %v1320 = vpop.f32.mrf.mxu0
        %v1321 = vadd.f32 0.0, %v1320
        %1322 = vmatmul.f32.gmra.mxu0 %v1244
        %v1323 = vpop.f32.mrf.mxu0
        %v1324 = vadd.f32 0.0, %v1323
        %1325 = vmatmul.f32.gmra.mxu0 %v1245
        %v1326 = vpop.f32.mrf.mxu0
        %v1327 = vadd.f32 0.0, %v1326
        %1328 = vmatmul.f32.gmra.mxu0 %v1246
        %v1329 = vpop.f32.mrf.mxu0
        %v1330 = vadd.f32 0.0, %v1329
        %1331 = vmatmul.f32.gmra.mxu0 %v1247
        %v1332 = vpop.f32.mrf.mxu0
        %v1333 = vadd.f32 0.0, %v1332
        %1334 = vmatmul.f32.gmra.mxu0 %v1248
        %v1335 = vpop.f32.mrf.mxu0
        %v1336 = vadd.f32 0.0, %v1335
        %1337 = vdwg.mxu0
        %v1338 = vld [vmem:[#allocation7] sm:$0xff]
        %s1339 = scalar_lea.vmem [#allocation7], 8
        %v1340 = vld [vmem:[%s1339] sm:$0xff]
        %vm1341 = vcmask 64512
        %v1343 = vsel %vm1341, %v1291, 0
        %v1346 = vsel %vm1341, %v1294, 0
        %v1349 = vsel %vm1341, %v1297, 0
        %v1352 = vsel %vm1341, %v1300, 0
        %v1355 = vsel %vm1341, %v1303, 0
        %v1358 = vsel %vm1341, %v1306, 0
        %v1361 = vsel %vm1341, %v1309, 0
        %v1364 = vsel %vm1341, %v1312, 0
        %1366 = vmatpush.msra.mxu0 0.0
        %1367 = vmatpush.msra.mxu0 0.0
        %1368 = vmatpush.msra.mxu0 0.0
        %1369 = vmatpush.msra.mxu0 0.0
        %1370 = vmatpush.msra.mxu0 0.0
        %1371 = vmatpush.msra.mxu0 0.0
        %1372 = vmatpush.msra.mxu0 0.0
        %1373 = vmatpush.msra.mxu0 0.0
        %1374 = vmatpush.msra.mxu0 0.0
        %1375 = vmatpush.msra.mxu0 0.0
        %1376 = vmatpush.msra.mxu0 0.0
        %1377 = vmatpush.msra.mxu0 0.0
        %1378 = vmatpush.msra.mxu0 0.0
        %1379 = vmatpush.msra.mxu0 0.0
        %1380 = vmatpush.msra.mxu0 0.0
        %1381 = vmatpush.msra.mxu0 %v1340
        %1382 = vmatmul.f32.gmra.mxu0 %v1343
        %v1383 = vpop.f32.mrf.mxu0
        %v1384 = vadd.f32 0.0, %v1383
        %1385 = vmatmul.f32.gmra.mxu0 %v1346
        %v1386 = vpop.f32.mrf.mxu0
        %v1387 = vadd.f32 0.0, %v1386
        %1388 = vmatmul.f32.gmra.mxu0 %v1349
        %v1389 = vpop.f32.mrf.mxu0
        %v1390 = vadd.f32 0.0, %v1389
        %1391 = vmatmul.f32.gmra.mxu0 %v1352
        %v1392 = vpop.f32.mrf.mxu0
        %v1393 = vadd.f32 0.0, %v1392
        %1394 = vmatmul.f32.gmra.mxu0 %v1355
        %v1395 = vpop.f32.mrf.mxu0
        %v1396 = vadd.f32 0.0, %v1395
        %1397 = vmatmul.f32.gmra.mxu0 %v1358
        %v1398 = vpop.f32.mrf.mxu0
        %v1399 = vadd.f32 0.0, %v1398
        %1400 = vmatmul.f32.gmra.mxu0 %v1361
        %v1401 = vpop.f32.mrf.mxu0
        %v1402 = vadd.f32 0.0, %v1401
        %1403 = vmatmul.f32.gmra.mxu0 %v1364
        %v1404 = vpop.f32.mrf.mxu0
        %v1405 = vadd.f32 0.0, %v1404
        %1406 = vdwg.mxu0
        %v1408 = vsel %vm1341, %v1267, 0
        %v1411 = vsel %vm1341, %v1270, 0
        %v1414 = vsel %vm1341, %v1273, 0
        %v1417 = vsel %vm1341, %v1276, 0
        %v1420 = vsel %vm1341, %v1279, 0
        %v1423 = vsel %vm1341, %v1282, 0
        %v1426 = vsel %vm1341, %v1285, 0
        %v1429 = vsel %vm1341, %v1288, 0
        %1431 = vmatpush.msra.mxu0 0.0
        %1432 = vmatpush.msra.mxu0 0.0
        %1433 = vmatpush.msra.mxu0 0.0
        %1434 = vmatpush.msra.mxu0 0.0
        %1435 = vmatpush.msra.mxu0 0.0
        %1436 = vmatpush.msra.mxu0 0.0
        %1437 = vmatpush.msra.mxu0 0.0
        %1438 = vmatpush.msra.mxu0 0.0
        %1439 = vmatpush.msra.mxu0 0.0
        %1440 = vmatpush.msra.mxu0 0.0
        %1441 = vmatpush.msra.mxu0 0.0
        %1442 = vmatpush.msra.mxu0 0.0
        %1443 = vmatpush.msra.mxu0 0.0
        %1444 = vmatpush.msra.mxu0 0.0
        %1445 = vmatpush.msra.mxu0 0.0
        %1446 = vmatpush.msra.mxu0 %v1338
        %1447 = vmatmul.f32.gmra.mxu0 %v1408
        %v1448 = vpop.f32.mrf.mxu0
        %v1449 = vadd.f32 %v1384, %v1448
        %1450 = vmatmul.f32.gmra.mxu0 %v1411
        %v1451 = vpop.f32.mrf.mxu0
        %v1452 = vadd.f32 %v1387, %v1451
        %1453 = vmatmul.f32.gmra.mxu0 %v1414
        %v1454 = vpop.f32.mrf.mxu0
        %v1455 = vadd.f32 %v1390, %v1454
        %1456 = vmatmul.f32.gmra.mxu0 %v1417
        %v1457 = vpop.f32.mrf.mxu0
        %v1458 = vadd.f32 %v1393, %v1457
        %1459 = vmatmul.f32.gmra.mxu0 %v1420
        %v1460 = vpop.f32.mrf.mxu0
        %v1461 = vadd.f32 %v1396, %v1460
        %1462 = vmatmul.f32.gmra.mxu0 %v1423
        %v1463 = vpop.f32.mrf.mxu0
        %v1464 = vadd.f32 %v1399, %v1463
        %1465 = vmatmul.f32.gmra.mxu0 %v1426
        %v1466 = vpop.f32.mrf.mxu0
        %v1467 = vadd.f32 %v1402, %v1466
        %1468 = vmatmul.f32.gmra.mxu0 %v1429
        %v1469 = vpop.f32.mrf.mxu0
        %v1470 = vadd.f32 %v1405, %v1469
        %1471 = vdwg.mxu0
        %s1472 = scalar_lea.vmem [#allocation7], 16
        %v1473 = vld [vmem:[%s1472] sm:$0xff]
        %v1475 = vsel %vm1341, %v1315, 0
        %v1478 = vsel %vm1341, %v1318, 0
        %v1481 = vsel %vm1341, %v1321, 0
        %v1484 = vsel %vm1341, %v1324, 0
        %v1487 = vsel %vm1341, %v1327, 0
        %v1490 = vsel %vm1341, %v1330, 0
        %v1493 = vsel %vm1341, %v1333, 0
        %v1496 = vsel %vm1341, %v1336, 0
        %1498 = vmatpush.msra.mxu0 0.0
        %1499 = vmatpush.msra.mxu0 0.0
        %1500 = vmatpush.msra.mxu0 0.0
        %1501 = vmatpush.msra.mxu0 0.0
        %1502 = vmatpush.msra.mxu0 0.0
        %1503 = vmatpush.msra.mxu0 0.0
        %1504 = vmatpush.msra.mxu0 0.0
        %1505 = vmatpush.msra.mxu0 0.0
        %1506 = vmatpush.msra.mxu0 0.0
        %1507 = vmatpush.msra.mxu0 0.0
        %1508 = vmatpush.msra.mxu0 0.0
        %1509 = vmatpush.msra.mxu0 0.0
        %1510 = vmatpush.msra.mxu0 0.0
        %1511 = vmatpush.msra.mxu0 0.0
        %1512 = vmatpush.msra.mxu0 0.0
        %1513 = vmatpush.msra.mxu0 %v1473
        %1514 = vmatmul.f32.gmra.mxu0 %v1475
        %v1515 = vpop.f32.mrf.mxu0
        %v1516 = vadd.f32 0.0, %v1515
        %1517 = vmatmul.f32.gmra.mxu0 %v1478
        %v1518 = vpop.f32.mrf.mxu0
        %v1519 = vadd.f32 0.0, %v1518
        %1520 = vmatmul.f32.gmra.mxu0 %v1481
        %v1521 = vpop.f32.mrf.mxu0
        %v1522 = vadd.f32 0.0, %v1521
        %1523 = vmatmul.f32.gmra.mxu0 %v1484
        %v1524 = vpop.f32.mrf.mxu0
        %v1525 = vadd.f32 0.0, %v1524
        %1526 = vmatmul.f32.gmra.mxu0 %v1487
        %v1527 = vpop.f32.mrf.mxu0
        %v1528 = vadd.f32 0.0, %v1527
        %1529 = vmatmul.f32.gmra.mxu0 %v1490
        %v1530 = vpop.f32.mrf.mxu0
        %v1531 = vadd.f32 0.0, %v1530
        %1532 = vmatmul.f32.gmra.mxu0 %v1493
        %v1533 = vpop.f32.mrf.mxu0
        %v1534 = vadd.f32 0.0, %v1533
        %1535 = vmatmul.f32.gmra.mxu0 %v1496
        %v1536 = vpop.f32.mrf.mxu0
        %v1537 = vadd.f32 0.0, %v1536
        %1538 = vdwg.mxu0
        %v1539 = vadd.f32 %v1449, %v1516
        %v1540 = vadd.f32 %v1452, %v1519
        %v1541 = vadd.f32 %v1455, %v1522
        %v1542 = vadd.f32 %v1458, %v1525
        %v1543 = vadd.f32 %v1461, %v1528
        %v1544 = vadd.f32 %v1464, %v1531
        %v1545 = vadd.f32 %v1467, %v1534
        %v1546 = vadd.f32 %v1470, %v1537
        %v1547 = vld [vmem:[#allocation8] sm:$0xff]
        %v1548 = vld [vmem:[#allocation8 + $0x8] sm:$0xff]
        %s1549 = scalar_lea.vmem [#allocation8], 16
        %v1550 = vld [vmem:[%s1549] sm:$0xff]
        %v1551 = vld [vmem:[%s1549 + $0x8] sm:$0xff]
        %vm1552 = vcmask 130048
        %v1554 = vsel %vm1552, %v1217, 0
        %v1557 = vsel %vm1552, %v1218, 0
        %v1560 = vsel %vm1552, %v1219, 0
        %v1563 = vsel %vm1552, %v1220, 0
        %v1566 = vsel %vm1552, %v1221, 0
        %v1569 = vsel %vm1552, %v1222, 0
        %v1572 = vsel %vm1552, %v1223, 0
        %v1575 = vsel %vm1552, %v1224, 0
        %1577 = vmatpush.msra.mxu0 0.0
        %1578 = vmatpush.msra.mxu0 0.0
        %1579 = vmatpush.msra.mxu0 0.0
        %1580 = vmatpush.msra.mxu0 0.0
        %1581 = vmatpush.msra.mxu0 0.0
        %1582 = vmatpush.msra.mxu0 0.0
        %1583 = vmatpush.msra.mxu0 0.0
        %1584 = vmatpush.msra.mxu0 0.0
        %1585 = vmatpush.msra.mxu0 0.0
        %1586 = vmatpush.msra.mxu0 0.0
        %1587 = vmatpush.msra.mxu0 0.0
        %1588 = vmatpush.msra.mxu0 0.0
        %1589 = vmatpush.msra.mxu0 0.0
        %1590 = vmatpush.msra.mxu0 0.0
        %1591 = vmatpush.msra.mxu0 %v1548
        %1592 = vmatpush.msra.mxu0 %v1547
        %1593 = vmatmul.f32.gmra.mxu0 %v1554
        %v1594 = vpop.f32.mrf.mxu0
        %v1595 = vadd.f32 0.0, %v1594
        %1596 = vmatmul.f32.gmra.mxu0 %v1557
        %v1597 = vpop.f32.mrf.mxu0
        %v1598 = vadd.f32 0.0, %v1597
        %1599 = vmatmul.f32.gmra.mxu0 %v1560
        %v1600 = vpop.f32.mrf.mxu0
        %v1601 = vadd.f32 0.0, %v1600
        %1602 = vmatmul.f32.gmra.mxu0 %v1563
        %v1603 = vpop.f32.mrf.mxu0
        %v1604 = vadd.f32 0.0, %v1603
        %1605 = vmatmul.f32.gmra.mxu0 %v1566
        %v1606 = vpop.f32.mrf.mxu0
        %v1607 = vadd.f32 0.0, %v1606
        %1608 = vmatmul.f32.gmra.mxu0 %v1569
        %v1609 = vpop.f32.mrf.mxu0
        %v1610 = vadd.f32 0.0, %v1609
        %1611 = vmatmul.f32.gmra.mxu0 %v1572
        %v1612 = vpop.f32.mrf.mxu0
        %v1613 = vadd.f32 0.0, %v1612
        %1614 = vmatmul.f32.gmra.mxu0 %v1575
        %v1615 = vpop.f32.mrf.mxu0
        %v1616 = vadd.f32 0.0, %v1615
        %1617 = vdwg.mxu0
        %1618 = vmatpush.msra.mxu0 0.0
        %1619 = vmatpush.msra.mxu0 0.0
        %1620 = vmatpush.msra.mxu0 0.0
        %1621 = vmatpush.msra.mxu0 0.0
        %1622 = vmatpush.msra.mxu0 0.0
        %1623 = vmatpush.msra.mxu0 0.0
        %1624 = vmatpush.msra.mxu0 0.0
        %1625 = vmatpush.msra.mxu0 0.0
        %1626 = vmatpush.msra.mxu0 0.0
        %1627 = vmatpush.msra.mxu0 0.0
        %1628 = vmatpush.msra.mxu0 0.0
        %1629 = vmatpush.msra.mxu0 0.0
        %1630 = vmatpush.msra.mxu0 0.0
        %1631 = vmatpush.msra.mxu0 0.0
        %1632 = vmatpush.msra.mxu0 %v1551
        %1633 = vmatpush.msra.mxu0 %v1550
        %1634 = vmatmul.f32.gmra.mxu0 %v1554
        %v1635 = vpop.f32.mrf.mxu0
        %v1636 = vadd.f32 0.0, %v1635
        %1637 = vmatmul.f32.gmra.mxu0 %v1557
        %v1638 = vpop.f32.mrf.mxu0
        %v1639 = vadd.f32 0.0, %v1638
        %1640 = vmatmul.f32.gmra.mxu0 %v1560
        %v1641 = vpop.f32.mrf.mxu0
        %v1642 = vadd.f32 0.0, %v1641
        %1643 = vmatmul.f32.gmra.mxu0 %v1563
        %v1644 = vpop.f32.mrf.mxu0
        %v1645 = vadd.f32 0.0, %v1644
        %1646 = vmatmul.f32.gmra.mxu0 %v1566
        %v1647 = vpop.f32.mrf.mxu0
        %v1648 = vadd.f32 0.0, %v1647
        %1649 = vmatmul.f32.gmra.mxu0 %v1569
        %v1650 = vpop.f32.mrf.mxu0
        %v1651 = vadd.f32 0.0, %v1650
        %1652 = vmatmul.f32.gmra.mxu0 %v1572
        %v1653 = vpop.f32.mrf.mxu0
        %v1654 = vadd.f32 0.0, %v1653
        %1655 = vmatmul.f32.gmra.mxu0 %v1575
        %v1656 = vpop.f32.mrf.mxu0
        %v1657 = vadd.f32 0.0, %v1656
        %1658 = vdwg.mxu0
        %v1659 = vld [vmem:[#allocation10] sm:$0xff]
        %v1660 = vld [vmem:[#allocation10 + $0x8] sm:$0xff]
        %v1661 = vld [vmem:[#allocation10 + $0x10] sm:$0xff]
        %v1662 = vld [vmem:[#allocation10 + $0x18] sm:$0xff]
        %v1663 = vld [vmem:[#allocation10 + $0x20] sm:$0xff]
        %v1664 = vld [vmem:[#allocation10 + $0x28] sm:$0xff]
        %v1665 = vld [vmem:[#allocation10 + $0x30] sm:$0xff]
        %v1666 = vld [vmem:[#allocation10 + $0x38] sm:$0xff]
        %v1667 = vld [vmem:[#allocation10 + $0x40] sm:$0xff]
        %v1668 = vld [vmem:[#allocation10 + $0x48] sm:$0xff]
        %v1669 = vld [vmem:[#allocation10 + $0x50] sm:$0xff]
        %v1670 = vld [vmem:[#allocation10 + $0x58] sm:$0xff]
        %v1671 = vld [vmem:[#allocation10 + $0x60] sm:$0xff]
        %v1672 = vld [vmem:[#allocation10 + $0x68] sm:$0xff]
        %v1673 = vld [vmem:[#allocation10 + $0x70] sm:$0xff]
        %v1674 = vld [vmem:[#allocation10 + $0x78] sm:$0xff]
        %vm1675 = vcmask 523264
        %v1677 = vsel %vm1675, %v1660, 0
        %v1680 = vsel %vm1675, %v1662, 0
        %v1683 = vsel %vm1675, %v1664, 0
        %v1686 = vsel %vm1675, %v1666, 0
        %v1689 = vsel %vm1675, %v1668, 0
        %v1692 = vsel %vm1675, %v1670, 0
        %v1695 = vsel %vm1675, %v1672, 0
        %v1698 = vsel %vm1675, %v1674, 0
        %1700 = vmatpush.msra.mxu0 %v1224
        %1701 = vmatpush.msra.mxu0 %v1223
        %1702 = vmatpush.msra.mxu0 %v1222
        %1703 = vmatpush.msra.mxu0 %v1221
        %1704 = vmatpush.msra.mxu0 %v1220
        %1705 = vmatpush.msra.mxu0 %v1219
        %1706 = vmatpush.msra.mxu0 %v1218
        %1707 = vmatpush.msra.mxu0 %v1217
        %1708 = vmatpush.msra.mxu0 %v1616
        %1709 = vmatpush.msra.mxu0 %v1613
        %1710 = vmatpush.msra.mxu0 %v1610
        %1711 = vmatpush.msra.mxu0 %v1607
        %1712 = vmatpush.msra.mxu0 %v1604
        %1713 = vmatpush.msra.mxu0 %v1601
        %1714 = vmatpush.msra.mxu0 %v1598
        %1715 = vmatpush.msra.mxu0 %v1595
        %1716 = vmatmul.f32.gmra.mxu0 %v1659
        %v1717 = vpop.f32.mrf.mxu0
        %v1718 = vadd.f32 0.0, %v1717
        %1719 = vmatmul.f32.gmra.mxu0 %v1661
        %v1720 = vpop.f32.mrf.mxu0
        %v1721 = vadd.f32 0.0, %v1720
        %1722 = vmatmul.f32.gmra.mxu0 %v1663
        %v1723 = vpop.f32.mrf.mxu0
        %v1724 = vadd.f32 0.0, %v1723
        %1725 = vmatmul.f32.gmra.mxu0 %v1665
        %v1726 = vpop.f32.mrf.mxu0
        %v1727 = vadd.f32 0.0, %v1726
        %1728 = vmatmul.f32.gmra.mxu0 %v1667
        %v1729 = vpop.f32.mrf.mxu0
        %v1730 = vadd.f32 0.0, %v1729
        %1731 = vmatmul.f32.gmra.mxu0 %v1669
        %v1732 = vpop.f32.mrf.mxu0
        %v1733 = vadd.f32 0.0, %v1732
        %1734 = vmatmul.f32.gmra.mxu0 %v1671
        %v1735 = vpop.f32.mrf.mxu0
        %v1736 = vadd.f32 0.0, %v1735
        %1737 = vmatmul.f32.gmra.mxu0 %v1673
        %v1738 = vpop.f32.mrf.mxu0
        %v1739 = vadd.f32 0.0, %v1738
        %1740 = vdwg.mxu0
        %1741 = vmatpush.msra.mxu0 0.0
        %1742 = vmatpush.msra.mxu0 0.0
        %1743 = vmatpush.msra.mxu0 0.0
        %1744 = vmatpush.msra.mxu0 0.0
        %1745 = vmatpush.msra.mxu0 0.0
        %1746 = vmatpush.msra.mxu0 0.0
        %1747 = vmatpush.msra.mxu0 0.0
        %1748 = vmatpush.msra.mxu0 0.0
        %1749 = vmatpush.msra.mxu0 %v1657
        %1750 = vmatpush.msra.mxu0 %v1654
        %1751 = vmatpush.msra.mxu0 %v1651
        %1752 = vmatpush.msra.mxu0 %v1648
        %1753 = vmatpush.msra.mxu0 %v1645
        %1754 = vmatpush.msra.mxu0 %v1642
        %1755 = vmatpush.msra.mxu0 %v1639
        %1756 = vmatpush.msra.mxu0 %v1636
        %1757 = vmatmul.f32.gmra.mxu0 %v1677
        %v1758 = vpop.f32.mrf.mxu0
        %v1759 = vadd.f32 %v1718, %v1758
        %1760 = vmatmul.f32.gmra.mxu0 %v1680
        %v1761 = vpop.f32.mrf.mxu0
        %v1762 = vadd.f32 %v1721, %v1761
        %1763 = vmatmul.f32.gmra.mxu0 %v1683
        %v1764 = vpop.f32.mrf.mxu0
        %v1765 = vadd.f32 %v1724, %v1764
        %1766 = vmatmul.f32.gmra.mxu0 %v1686
        %v1767 = vpop.f32.mrf.mxu0
        %v1768 = vadd.f32 %v1727, %v1767
        %1769 = vmatmul.f32.gmra.mxu0 %v1689
        %v1770 = vpop.f32.mrf.mxu0
        %v1771 = vadd.f32 %v1730, %v1770
        %1772 = vmatmul.f32.gmra.mxu0 %v1692
        %v1773 = vpop.f32.mrf.mxu0
        %v1774 = vadd.f32 %v1733, %v1773
        %1775 = vmatmul.f32.gmra.mxu0 %v1695
        %v1776 = vpop.f32.mrf.mxu0
        %v1777 = vadd.f32 %v1736, %v1776
        %1778 = vmatmul.f32.gmra.mxu0 %v1698
        %v1779 = vpop.f32.mrf.mxu0
        %v1780 = vadd.f32 %v1739, %v1779
        %1781 = vdwg.mxu0
        %v1782 = vadd.f32 %v1539, %v1759
        %v1783 = vadd.f32 %v1540, %v1762
        %v1784 = vadd.f32 %v1541, %v1765
        %v1785 = vadd.f32 %v1542, %v1768
        %v1786 = vadd.f32 %v1543, %v1771
        %v1787 = vadd.f32 %v1544, %v1774
        %v1788 = vadd.f32 %v1545, %v1777
        %v1789 = vadd.f32 %v1546, %v1780
        %v1790 = vld [vmem:[%s21] sm:$0xff]
        %v1791 = vld [vmem:[%s21 + $0x8] sm:$0xff]
        %v1792 = vld [vmem:[%s21 + $0x10] sm:$0xff]
        %v1793 = vld [vmem:[%s21 + $0x18] sm:$0xff]
        %v1794 = vld [vmem:[%s21 + $0x20] sm:$0xff]
        %v1795 = vld [vmem:[%s21 + $0x28] sm:$0xff]
        %v1796 = vld [vmem:[%s21 + $0x30] sm:$0xff]
        %v1797 = vld [vmem:[%s21 + $0x38] sm:$0xff]
        %1799 = vset.pattern.permute.xlu0 0
        %1800 = vperm.xlu0 %1799, %v1790
        %v1801 = vpop.permute.xlu0 %1800
        %1804 = vset.pattern.permute.xlu0 0
        %1805 = vperm.xlu0 %1804, %v1791
        %v1806 = vpop.permute.xlu0 %1805
        %1809 = vset.pattern.permute.xlu0 0
        %1810 = vperm.xlu0 %1809, %v1792
        %v1811 = vpop.permute.xlu0 %1810
        %1814 = vset.pattern.permute.xlu0 0
        %1815 = vperm.xlu0 %1814, %v1793
        %v1816 = vpop.permute.xlu0 %1815
        %1819 = vset.pattern.permute.xlu0 0
        %1820 = vperm.xlu0 %1819, %v1794
        %v1821 = vpop.permute.xlu0 %1820
        %1824 = vset.pattern.permute.xlu0 0
        %1825 = vperm.xlu0 %1824, %v1795
        %v1826 = vpop.permute.xlu0 %1825
        %1829 = vset.pattern.permute.xlu0 0
        %1830 = vperm.xlu0 %1829, %v1796
        %v1831 = vpop.permute.xlu0 %1830
        %1834 = vset.pattern.permute.xlu0 0
        %1835 = vperm.xlu0 %1834, %v1797
        %v1836 = vpop.permute.xlu0 %1835
        %v1838 = vadd.f32 %v1782, %v1801
        %v1839 = vadd.f32 %v1783, %v1806
        %v1840 = vadd.f32 %v1784, %v1811
        %v1841 = vadd.f32 %v1785, %v1816
        %v1842 = vadd.f32 %v1786, %v1821
        %v1843 = vadd.f32 %v1787, %v1826
        %v1844 = vadd.f32 %v1788, %v1831
        %v1845 = vadd.f32 %v1789, %v1836
        %v1846 = vmax.f32 %v1838, 0.0
        %v1847 = vmax.f32 %v1839, 0.0
        %v1848 = vmax.f32 %v1840, 0.0
        %v1849 = vmax.f32 %v1841, 0.0
        %v1850 = vmax.f32 %v1842, 0.0
        %v1851 = vmax.f32 %v1843, 0.0
        %v1852 = vmax.f32 %v1844, 0.0
        %v1853 = vmax.f32 %v1845, 0.0
        %v1855 = vsel %vm1552, %v1846, 0
        %v1858 = vsel %vm1552, %v1847, 0
        %v1861 = vsel %vm1552, %v1848, 0
        %v1864 = vsel %vm1552, %v1849, 0
        %v1867 = vsel %vm1552, %v1850, 0
        %v1870 = vsel %vm1552, %v1851, 0
        %v1873 = vsel %vm1552, %v1852, 0
        %v1876 = vsel %vm1552, %v1853, 0
        %1878 = vmatpush.msra.mxu0 0.0
        %1879 = vmatpush.msra.mxu0 0.0
        %1880 = vmatpush.msra.mxu0 0.0
        %1881 = vmatpush.msra.mxu0 0.0
        %1882 = vmatpush.msra.mxu0 0.0
        %1883 = vmatpush.msra.mxu0 0.0
        %1884 = vmatpush.msra.mxu0 0.0
        %1885 = vmatpush.msra.mxu0 0.0
        %1886 = vmatpush.msra.mxu0 0.0
        %1887 = vmatpush.msra.mxu0 0.0
        %1888 = vmatpush.msra.mxu0 0.0
        %1889 = vmatpush.msra.mxu0 0.0
        %1890 = vmatpush.msra.mxu0 0.0
        %1891 = vmatpush.msra.mxu0 0.0
        %1892 = vmatpush.msra.mxu0 %v1548
        %1893 = vmatpush.msra.mxu0 %v1547
        %1894 = vmatmul.f32.gmra.mxu0 %v1855
        %v1895 = vpop.f32.mrf.mxu0
        %v1896 = vadd.f32 0.0, %v1895
        %1897 = vmatmul.f32.gmra.mxu0 %v1858
        %v1898 = vpop.f32.mrf.mxu0
        %v1899 = vadd.f32 0.0, %v1898
        %1900 = vmatmul.f32.gmra.mxu0 %v1861
        %v1901 = vpop.f32.mrf.mxu0
        %v1902 = vadd.f32 0.0, %v1901
        %1903 = vmatmul.f32.gmra.mxu0 %v1864
        %v1904 = vpop.f32.mrf.mxu0
        %v1905 = vadd.f32 0.0, %v1904
        %1906 = vmatmul.f32.gmra.mxu0 %v1867
        %v1907 = vpop.f32.mrf.mxu0
        %v1908 = vadd.f32 0.0, %v1907
        %1909 = vmatmul.f32.gmra.mxu0 %v1870
        %v1910 = vpop.f32.mrf.mxu0
        %v1911 = vadd.f32 0.0, %v1910
        %1912 = vmatmul.f32.gmra.mxu0 %v1873
        %v1913 = vpop.f32.mrf.mxu0
        %v1914 = vadd.f32 0.0, %v1913
        %1915 = vmatmul.f32.gmra.mxu0 %v1876
        %v1916 = vpop.f32.mrf.mxu0
        %v1917 = vadd.f32 0.0, %v1916
        %1918 = vdwg.mxu0
        %1919 = vmatpush.msra.mxu0 0.0
        %1920 = vmatpush.msra.mxu0 0.0
        %1921 = vmatpush.msra.mxu0 0.0
        %1922 = vmatpush.msra.mxu0 0.0
        %1923 = vmatpush.msra.mxu0 0.0
        %1924 = vmatpush.msra.mxu0 0.0
        %1925 = vmatpush.msra.mxu0 0.0
        %1926 = vmatpush.msra.mxu0 0.0
        %1927 = vmatpush.msra.mxu0 0.0
        %1928 = vmatpush.msra.mxu0 0.0
        %1929 = vmatpush.msra.mxu0 0.0
        %1930 = vmatpush.msra.mxu0 0.0
        %1931 = vmatpush.msra.mxu0 0.0
        %1932 = vmatpush.msra.mxu0 0.0
        %1933 = vmatpush.msra.mxu0 %v1551
        %1934 = vmatpush.msra.mxu0 %v1550
        %1935 = vmatmul.f32.gmra.mxu0 %v1855
        %v1936 = vpop.f32.mrf.mxu0
        %v1937 = vadd.f32 0.0, %v1936
        %1938 = vmatmul.f32.gmra.mxu0 %v1858
        %v1939 = vpop.f32.mrf.mxu0
        %v1940 = vadd.f32 0.0, %v1939
        %1941 = vmatmul.f32.gmra.mxu0 %v1861
        %v1942 = vpop.f32.mrf.mxu0
        %v1943 = vadd.f32 0.0, %v1942
        %1944 = vmatmul.f32.gmra.mxu0 %v1864
        %v1945 = vpop.f32.mrf.mxu0
        %v1946 = vadd.f32 0.0, %v1945
        %1947 = vmatmul.f32.gmra.mxu0 %v1867
        %v1948 = vpop.f32.mrf.mxu0
        %v1949 = vadd.f32 0.0, %v1948
        %1950 = vmatmul.f32.gmra.mxu0 %v1870
        %v1951 = vpop.f32.mrf.mxu0
        %v1952 = vadd.f32 0.0, %v1951
        %1953 = vmatmul.f32.gmra.mxu0 %v1873
        %v1954 = vpop.f32.mrf.mxu0
        %v1955 = vadd.f32 0.0, %v1954
        %1956 = vmatmul.f32.gmra.mxu0 %v1876
        %v1957 = vpop.f32.mrf.mxu0
        %v1958 = vadd.f32 0.0, %v1957
        %1959 = vdwg.mxu0
        %v1960 = vld [vmem:[#allocation11] sm:$0xff]
        %v1961 = vld [vmem:[#allocation11 + $0x8] sm:$0xff]
        %v1962 = vld [vmem:[#allocation11 + $0x10] sm:$0xff]
        %v1963 = vld [vmem:[#allocation11 + $0x18] sm:$0xff]
        %v1964 = vld [vmem:[#allocation11 + $0x20] sm:$0xff]
        %v1965 = vld [vmem:[#allocation11 + $0x28] sm:$0xff]
        %v1966 = vld [vmem:[#allocation11 + $0x30] sm:$0xff]
        %v1967 = vld [vmem:[#allocation11 + $0x38] sm:$0xff]
        %v1968 = vld [vmem:[#allocation11 + $0x40] sm:$0xff]
        %v1969 = vld [vmem:[#allocation11 + $0x48] sm:$0xff]
        %v1970 = vld [vmem:[#allocation11 + $0x50] sm:$0xff]
        %v1971 = vld [vmem:[#allocation11 + $0x58] sm:$0xff]
        %v1972 = vld [vmem:[#allocation11 + $0x60] sm:$0xff]
        %v1973 = vld [vmem:[#allocation11 + $0x68] sm:$0xff]
        %v1974 = vld [vmem:[#allocation11 + $0x70] sm:$0xff]
        %v1975 = vld [vmem:[#allocation11 + $0x78] sm:$0xff]
        %s1976 = scalar_lea.vmem %s21, 64
        %v1977 = vld [vmem:[%s1976] sm:$0xff]
        %v1978 = vld [vmem:[%s1976 + $0x8] sm:$0xff]
        %v1979 = vld [vmem:[%s1976 + $0x10] sm:$0xff]
        %v1980 = vld [vmem:[%s1976 + $0x18] sm:$0xff]
        %v1981 = vld [vmem:[%s1976 + $0x20] sm:$0xff]
        %v1982 = vld [vmem:[%s1976 + $0x28] sm:$0xff]
        %v1983 = vld [vmem:[%s1976 + $0x30] sm:$0xff]
        %v1984 = vld [vmem:[%s1976 + $0x38] sm:$0xff]
        %1986 = vset.pattern.permute.xlu0 0
        %1987 = vperm.xlu0 %1986, %v1977
        %v1988 = vpop.permute.xlu0 %1987
        %1991 = vset.pattern.permute.xlu0 0
        %1992 = vperm.xlu0 %1991, %v1978
        %v1993 = vpop.permute.xlu0 %1992
        %1996 = vset.pattern.permute.xlu0 0
        %1997 = vperm.xlu0 %1996, %v1979
        %v1998 = vpop.permute.xlu0 %1997
        %2001 = vset.pattern.permute.xlu0 0
        %2002 = vperm.xlu0 %2001, %v1980
        %v2003 = vpop.permute.xlu0 %2002
        %2006 = vset.pattern.permute.xlu0 0
        %2007 = vperm.xlu0 %2006, %v1981
        %v2008 = vpop.permute.xlu0 %2007
        %2011 = vset.pattern.permute.xlu0 0
        %2012 = vperm.xlu0 %2011, %v1982
        %v2013 = vpop.permute.xlu0 %2012
        %2016 = vset.pattern.permute.xlu0 0
        %2017 = vperm.xlu0 %2016, %v1983
        %v2018 = vpop.permute.xlu0 %2017
        %2021 = vset.pattern.permute.xlu0 0
        %2022 = vperm.xlu0 %2021, %v1984
        %v2023 = vpop.permute.xlu0 %2022
        %v2026 = vsel %vm1675, %v1961, 0
        %v2029 = vsel %vm1675, %v1963, 0
        %v2032 = vsel %vm1675, %v1965, 0
        %v2035 = vsel %vm1675, %v1967, 0
        %v2038 = vsel %vm1675, %v1969, 0
        %v2041 = vsel %vm1675, %v1971, 0
        %v2044 = vsel %vm1675, %v1973, 0
        %v2047 = vsel %vm1675, %v1975, 0
        %2049 = vmatpush.msra.mxu0 %v1853
        %2050 = vmatpush.msra.mxu0 %v1852
        %2051 = vmatpush.msra.mxu0 %v1851
        %2052 = vmatpush.msra.mxu0 %v1850
        %2053 = vmatpush.msra.mxu0 %v1849
        %2054 = vmatpush.msra.mxu0 %v1848
        %2055 = vmatpush.msra.mxu0 %v1847
        %2056 = vmatpush.msra.mxu0 %v1846
        %2057 = vmatpush.msra.mxu0 %v1917
        %2058 = vmatpush.msra.mxu0 %v1914
        %2059 = vmatpush.msra.mxu0 %v1911
        %2060 = vmatpush.msra.mxu0 %v1908
        %2061 = vmatpush.msra.mxu0 %v1905
        %2062 = vmatpush.msra.mxu0 %v1902
        %2063 = vmatpush.msra.mxu0 %v1899
        %2064 = vmatpush.msra.mxu0 %v1896
        %2065 = vmatmul.f32.gmra.mxu0 %v1960
        %v2066 = vpop.f32.mrf.mxu0
        %v2067 = vadd.f32 %v1988, %v2066
        %2068 = vmatmul.f32.gmra.mxu0 %v1962
        %v2069 = vpop.f32.mrf.mxu0
        %v2070 = vadd.f32 %v1993, %v2069
        %2071 = vmatmul.f32.gmra.mxu0 %v1964
        %v2072 = vpop.f32.mrf.mxu0
        %v2073 = vadd.f32 %v1998, %v2072
        %2074 = vmatmul.f32.gmra.mxu0 %v1966
        %v2075 = vpop.f32.mrf.mxu0
        %v2076 = vadd.f32 %v2003, %v2075
        %2077 = vmatmul.f32.gmra.mxu0 %v1968
        %v2078 = vpop.f32.mrf.mxu0
        %v2079 = vadd.f32 %v2008, %v2078
        %2080 = vmatmul.f32.gmra.mxu0 %v1970
        %v2081 = vpop.f32.mrf.mxu0
        %v2082 = vadd.f32 %v2013, %v2081
        %2083 = vmatmul.f32.gmra.mxu0 %v1972
        %v2084 = vpop.f32.mrf.mxu0
        %v2085 = vadd.f32 %v2018, %v2084
        %2086 = vmatmul.f32.gmra.mxu0 %v1974
        %v2087 = vpop.f32.mrf.mxu0
        %v2088 = vadd.f32 %v2023, %v2087
        %2089 = vdwg.mxu0
        %2090 = vmatpush.msra.mxu0 0.0
        %2091 = vmatpush.msra.mxu0 0.0
        %2092 = vmatpush.msra.mxu0 0.0
        %2093 = vmatpush.msra.mxu0 0.0
        %2094 = vmatpush.msra.mxu0 0.0
        %2095 = vmatpush.msra.mxu0 0.0
        %2096 = vmatpush.msra.mxu0 0.0
        %2097 = vmatpush.msra.mxu0 0.0
        %2098 = vmatpush.msra.mxu0 %v1958
        %2099 = vmatpush.msra.mxu0 %v1955
        %2100 = vmatpush.msra.mxu0 %v1952
        %2101 = vmatpush.msra.mxu0 %v1949
        %2102 = vmatpush.msra.mxu0 %v1946
        %2103 = vmatpush.msra.mxu0 %v1943
        %2104 = vmatpush.msra.mxu0 %v1940
        %2105 = vmatpush.msra.mxu0 %v1937
        %2106 = vmatmul.f32.gmra.mxu0 %v2026
        %v2107 = vpop.f32.mrf.mxu0
        %v2108 = vadd.f32 %v2067, %v2107
        %2109 = vmatmul.f32.gmra.mxu0 %v2029
        %v2110 = vpop.f32.mrf.mxu0
        %v2111 = vadd.f32 %v2070, %v2110
        %2112 = vmatmul.f32.gmra.mxu0 %v2032
        %v2113 = vpop.f32.mrf.mxu0
        %v2114 = vadd.f32 %v2073, %v2113
        %2115 = vmatmul.f32.gmra.mxu0 %v2035
        %v2116 = vpop.f32.mrf.mxu0
        %v2117 = vadd.f32 %v2076, %v2116
        %2118 = vmatmul.f32.gmra.mxu0 %v2038
        %v2119 = vpop.f32.mrf.mxu0
        %v2120 = vadd.f32 %v2079, %v2119
        %2121 = vmatmul.f32.gmra.mxu0 %v2041
        %v2122 = vpop.f32.mrf.mxu0
        %v2123 = vadd.f32 %v2082, %v2122
        %2124 = vmatmul.f32.gmra.mxu0 %v2044
        %v2125 = vpop.f32.mrf.mxu0
        %v2126 = vadd.f32 %v2085, %v2125
        %2127 = vmatmul.f32.gmra.mxu0 %v2047
        %v2128 = vpop.f32.mrf.mxu0
        %v2129 = vadd.f32 %v2088, %v2128
        %2130 = vdwg.mxu0
        %v2131 = vmax.f32 %v2108, 0.0
        %v2132 = vmax.f32 %v2111, 0.0
        %v2133 = vmax.f32 %v2114, 0.0
        %v2134 = vmax.f32 %v2117, 0.0
        %v2135 = vmax.f32 %v2120, 0.0
        %v2136 = vmax.f32 %v2123, 0.0
        %v2137 = vmax.f32 %v2126, 0.0
        %v2138 = vmax.f32 %v2129, 0.0
        %v2139 = vld [vmem:[%s1027] sm:$0xff]
        %v2140 = vld [vmem:[%s1027 + $0x8] sm:$0xff]
        %v2141 = vld [vmem:[%s1027 + $0x10] sm:$0xff]
        %v2142 = vld [vmem:[%s1027 + $0x18] sm:$0xff]
        %v2143 = vld [vmem:[%s27] sm:$0xff]
        %v2144 = vld [vmem:[%s27 + $0x8] sm:$0xff]
        %v2145 = vld [vmem:[%s27 + $0x10] sm:$0xff]
        %v2146 = vld [vmem:[%s27 + $0x18] sm:$0xff]
        %v2147 = vld [vmem:[%s27 + $0x20] sm:$0xff]
        %v2148 = vld [vmem:[%s27 + $0x28] sm:$0xff]
        %v2149 = vld [vmem:[%s27 + $0x30] sm:$0xff]
        %v2150 = vld [vmem:[%s27 + $0x38] sm:$0xff]
        %v2151 = vld [vmem:[%s27 + $0x40] sm:$0xff]
        %v2152 = vld [vmem:[%s27 + $0x48] sm:$0xff]
        %v2153 = vld [vmem:[%s27 + $0x50] sm:$0xff]
        %v2154 = vld [vmem:[%s27 + $0x58] sm:$0xff]
        %v2156 = vsel %vm1675, %v2143, 0
        %v2159 = vsel %vm1675, %v2144, 0
        %v2162 = vsel %vm1675, %v2145, 0
        %v2165 = vsel %vm1675, %v2146, 0
        %v2168 = vsel %vm1675, %v2147, 0
        %v2171 = vsel %vm1675, %v2148, 0
        %v2174 = vsel %vm1675, %v2149, 0
        %v2177 = vsel %vm1675, %v2150, 0
        %v2180 = vsel %vm1675, %v2151, 0
        %v2183 = vsel %vm1675, %v2152, 0
        %v2186 = vsel %vm1675, %v2153, 0
        %v2189 = vsel %vm1675, %v2154, 0
        %2191 = vmatpush.msra.mxu0 0.0
        %2192 = vmatpush.msra.mxu0 0.0
        %2193 = vmatpush.msra.mxu0 0.0
        %2194 = vmatpush.msra.mxu0 0.0
        %2195 = vmatpush.msra.mxu0 0.0
        %2196 = vmatpush.msra.mxu0 0.0
        %2197 = vmatpush.msra.mxu0 0.0
        %2198 = vmatpush.msra.mxu0 0.0
        %2199 = vmatpush.msra.mxu0 %v2138
        %2200 = vmatpush.msra.mxu0 %v2137
        %2201 = vmatpush.msra.mxu0 %v2136
        %2202 = vmatpush.msra.mxu0 %v2135
        %2203 = vmatpush.msra.mxu0 %v2134
        %2204 = vmatpush.msra.mxu0 %v2133
        %2205 = vmatpush.msra.mxu0 %v2132
        %2206 = vmatpush.msra.mxu0 %v2131
        %2207 = vmatmul.f32.gmra.mxu0 %v2156
        %v2208 = vpop.f32.mrf.mxu0
        %v2209 = vadd.f32 0.0, %v2208
        %2210 = vmatmul.f32.gmra.mxu0 %v2159
        %v2211 = vpop.f32.mrf.mxu0
        %v2212 = vadd.f32 0.0, %v2211
        %2213 = vmatmul.f32.gmra.mxu0 %v2162
        %v2214 = vpop.f32.mrf.mxu0
        %v2215 = vadd.f32 0.0, %v2214
        %2216 = vmatmul.f32.gmra.mxu0 %v2165
        %v2217 = vpop.f32.mrf.mxu0
        %v2218 = vadd.f32 0.0, %v2217
        %2219 = vmatmul.f32.gmra.mxu0 %v2168
        %v2220 = vpop.f32.mrf.mxu0
        %v2221 = vadd.f32 0.0, %v2220
        %2222 = vmatmul.f32.gmra.mxu0 %v2171
        %v2223 = vpop.f32.mrf.mxu0
        %v2224 = vadd.f32 0.0, %v2223
        %2225 = vmatmul.f32.gmra.mxu0 %v2174
        %v2226 = vpop.f32.mrf.mxu0
        %v2227 = vadd.f32 0.0, %v2226
        %2228 = vmatmul.f32.gmra.mxu0 %v2177
        %v2229 = vpop.f32.mrf.mxu0
        %v2230 = vadd.f32 0.0, %v2229
        %2231 = vmatmul.f32.gmra.mxu0 %v2180
        %v2232 = vpop.f32.mrf.mxu0
        %v2233 = vadd.f32 0.0, %v2232
        %2234 = vmatmul.f32.gmra.mxu0 %v2183
        %v2235 = vpop.f32.mrf.mxu0
        %v2236 = vadd.f32 0.0, %v2235
        %2237 = vmatmul.f32.gmra.mxu0 %v2186
        %v2238 = vpop.f32.mrf.mxu0
        %v2239 = vadd.f32 0.0, %v2238
        %2240 = vmatmul.f32.gmra.mxu0 %v2189
        %v2241 = vpop.f32.mrf.mxu0
        %v2242 = vadd.f32 0.0, %v2241
        %2243 = vdwg.mxu0
        %v2244 = vld [vmem:[%s23] sm:$0xff]
        %v2245 = vld [vmem:[%s23 + $0x8] sm:$0xff]
        %s2246 = scalar_lea.vmem %s23, 16
        %v2247 = vld [vmem:[%s2246] sm:$0xff]
        %v2248 = vld [vmem:[%s2246 + $0x8] sm:$0xff]
        %v2250 = vsel %vm1552, %v2221, 0
        %v2253 = vsel %vm1552, %v2224, 0
        %v2256 = vsel %vm1552, %v2227, 0
        %v2259 = vsel %vm1552, %v2230, 0
        %2261 = vmatpush.msra.mxu0 0.0
        %2262 = vmatpush.msra.mxu0 0.0
        %2263 = vmatpush.msra.mxu0 0.0
        %2264 = vmatpush.msra.mxu0 0.0
        %2265 = vmatpush.msra.mxu0 0.0
        %2266 = vmatpush.msra.mxu0 0.0
        %2267 = vmatpush.msra.mxu0 0.0
        %2268 = vmatpush.msra.mxu0 0.0
        %2269 = vmatpush.msra.mxu0 0.0
        %2270 = vmatpush.msra.mxu0 0.0
        %2271 = vmatpush.msra.mxu0 0.0
        %2272 = vmatpush.msra.mxu0 0.0
        %2273 = vmatpush.msra.mxu0 0.0
        %2274 = vmatpush.msra.mxu0 0.0
        %2275 = vmatpush.msra.mxu0 %v2248
        %2276 = vmatpush.msra.mxu0 %v2247
        %2277 = vmatmul.f32.gmra.mxu0 %v2250
        %v2278 = vpop.f32.mrf.mxu0
        %v2279 = vadd.f32 0.0, %v2278
        %2280 = vmatmul.f32.gmra.mxu0 %v2253
        %v2281 = vpop.f32.mrf.mxu0
        %v2282 = vadd.f32 0.0, %v2281
        %2283 = vmatmul.f32.gmra.mxu0 %v2256
        %v2284 = vpop.f32.mrf.mxu0
        %v2285 = vadd.f32 0.0, %v2284
        %2286 = vmatmul.f32.gmra.mxu0 %v2259
        %v2287 = vpop.f32.mrf.mxu0
        %v2288 = vadd.f32 0.0, %v2287
        %2289 = vdwg.mxu0
        %v2291 = vsel %vm1552, %v2209, 0
        %v2294 = vsel %vm1552, %v2212, 0
        %v2297 = vsel %vm1552, %v2215, 0
        %v2300 = vsel %vm1552, %v2218, 0
        %2302 = vmatpush.msra.mxu0 0.0
        %2303 = vmatpush.msra.mxu0 0.0
        %2304 = vmatpush.msra.mxu0 0.0
        %2305 = vmatpush.msra.mxu0 0.0
        %2306 = vmatpush.msra.mxu0 0.0
        %2307 = vmatpush.msra.mxu0 0.0
        %2308 = vmatpush.msra.mxu0 0.0
        %2309 = vmatpush.msra.mxu0 0.0
        %2310 = vmatpush.msra.mxu0 0.0
        %2311 = vmatpush.msra.mxu0 0.0
        %2312 = vmatpush.msra.mxu0 0.0
        %2313 = vmatpush.msra.mxu0 0.0
        %2314 = vmatpush.msra.mxu0 0.0
        %2315 = vmatpush.msra.mxu0 0.0
        %2316 = vmatpush.msra.mxu0 %v2245
        %2317 = vmatpush.msra.mxu0 %v2244
        %2318 = vmatmul.f32.gmra.mxu0 %v2291
        %v2319 = vpop.f32.mrf.mxu0
        %v2320 = vadd.f32 %v2279, %v2319
        %2321 = vmatmul.f32.gmra.mxu0 %v2294
        %v2322 = vpop.f32.mrf.mxu0
        %v2323 = vadd.f32 %v2282, %v2322
        %2324 = vmatmul.f32.gmra.mxu0 %v2297
        %v2325 = vpop.f32.mrf.mxu0
        %v2326 = vadd.f32 %v2285, %v2325
        %2327 = vmatmul.f32.gmra.mxu0 %v2300
        %v2328 = vpop.f32.mrf.mxu0
        %v2329 = vadd.f32 %v2288, %v2328
        %2330 = vdwg.mxu0
        %s2331 = scalar_lea.vmem %s23, 32
        %v2332 = vld [vmem:[%s2331] sm:$0xff]
        %v2333 = vld [vmem:[%s2331 + $0x8] sm:$0xff]
        %v2335 = vsel %vm1552, %v2233, 0
        %v2338 = vsel %vm1552, %v2236, 0
        %v2341 = vsel %vm1552, %v2239, 0
        %v2344 = vsel %vm1552, %v2242, 0
        %2346 = vmatpush.msra.mxu0 0.0
        %2347 = vmatpush.msra.mxu0 0.0
        %2348 = vmatpush.msra.mxu0 0.0
        %2349 = vmatpush.msra.mxu0 0.0
        %2350 = vmatpush.msra.mxu0 0.0
        %2351 = vmatpush.msra.mxu0 0.0
        %2352 = vmatpush.msra.mxu0 0.0
        %2353 = vmatpush.msra.mxu0 0.0
        %2354 = vmatpush.msra.mxu0 0.0
        %2355 = vmatpush.msra.mxu0 0.0
        %2356 = vmatpush.msra.mxu0 0.0
        %2357 = vmatpush.msra.mxu0 0.0
        %2358 = vmatpush.msra.mxu0 0.0
        %2359 = vmatpush.msra.mxu0 0.0
        %2360 = vmatpush.msra.mxu0 %v2333
        %2361 = vmatpush.msra.mxu0 %v2332
        %2362 = vmatmul.f32.gmra.mxu0 %v2335
        %v2363 = vpop.f32.mrf.mxu0
        %v2364 = vadd.f32 0.0, %v2363
        %2365 = vmatmul.f32.gmra.mxu0 %v2338
        %v2366 = vpop.f32.mrf.mxu0
        %v2367 = vadd.f32 0.0, %v2366
        %2368 = vmatmul.f32.gmra.mxu0 %v2341
        %v2369 = vpop.f32.mrf.mxu0
        %v2370 = vadd.f32 0.0, %v2369
        %2371 = vmatmul.f32.gmra.mxu0 %v2344
        %v2372 = vpop.f32.mrf.mxu0
        %v2373 = vadd.f32 0.0, %v2372
        %2374 = vdwg.mxu0
        %v2375 = vadd.f32 %v2320, %v2364
        %v2376 = vadd.f32 %v2323, %v2367
        %v2377 = vadd.f32 %v2326, %v2370
        %v2378 = vadd.f32 %v2329, %v2373
        %v2379 = vld [vmem:[#allocation13] sm:$0xff]
        %v2380 = vld [vmem:[#allocation13 + $0x8] sm:$0xff]
        %v2381 = vld [vmem:[#allocation13 + $0x10] sm:$0xff]
        %v2382 = vld [vmem:[#allocation13 + $0x18] sm:$0xff]
        %s2383 = scalar_lea.vmem [#allocation13], 32
        %v2384 = vld [vmem:[%s2383] sm:$0xff]
        %v2385 = vld [vmem:[%s2383 + $0x8] sm:$0xff]
        %v2386 = vld [vmem:[%s2383 + $0x10] sm:$0xff]
        %v2387 = vld [vmem:[%s2383 + $0x18] sm:$0xff]
        %vm2388 = vcmask 261120
        %v2390 = vsel %vm2388, %v2139, 0
        %v2393 = vsel %vm2388, %v2140, 0
        %v2396 = vsel %vm2388, %v2141, 0
        %v2399 = vsel %vm2388, %v2142, 0
        %2401 = vmatpush.msra.mxu0 0.0
        %2402 = vmatpush.msra.mxu0 0.0
        %2403 = vmatpush.msra.mxu0 0.0
        %2404 = vmatpush.msra.mxu0 0.0
        %2405 = vmatpush.msra.mxu0 0.0
        %2406 = vmatpush.msra.mxu0 0.0
        %2407 = vmatpush.msra.mxu0 0.0
        %2408 = vmatpush.msra.mxu0 0.0
        %2409 = vmatpush.msra.mxu0 0.0
        %2410 = vmatpush.msra.mxu0 0.0
        %2411 = vmatpush.msra.mxu0 0.0
        %2412 = vmatpush.msra.mxu0 0.0
        %2413 = vmatpush.msra.mxu0 %v2382
        %2414 = vmatpush.msra.mxu0 %v2381
        %2415 = vmatpush.msra.mxu0 %v2380
        %2416 = vmatpush.msra.mxu0 %v2379
        %2417 = vmatmul.f32.gmra.mxu0 %v2390
        %v2418 = vpop.f32.mrf.mxu0
        %v2419 = vadd.f32 0.0, %v2418
        %2420 = vmatmul.f32.gmra.mxu0 %v2393
        %v2421 = vpop.f32.mrf.mxu0
        %v2422 = vadd.f32 0.0, %v2421
        %2423 = vmatmul.f32.gmra.mxu0 %v2396
        %v2424 = vpop.f32.mrf.mxu0
        %v2425 = vadd.f32 0.0, %v2424
        %2426 = vmatmul.f32.gmra.mxu0 %v2399
        %v2427 = vpop.f32.mrf.mxu0
        %v2428 = vadd.f32 0.0, %v2427
        %2429 = vdwg.mxu0
        %2430 = vmatpush.msra.mxu0 0.0
        %2431 = vmatpush.msra.mxu0 0.0
        %2432 = vmatpush.msra.mxu0 0.0
        %2433 = vmatpush.msra.mxu0 0.0
        %2434 = vmatpush.msra.mxu0 0.0
        %2435 = vmatpush.msra.mxu0 0.0
        %2436 = vmatpush.msra.mxu0 0.0
        %2437 = vmatpush.msra.mxu0 0.0
        %2438 = vmatpush.msra.mxu0 0.0
        %2439 = vmatpush.msra.mxu0 0.0
        %2440 = vmatpush.msra.mxu0 0.0
        %2441 = vmatpush.msra.mxu0 0.0
        %2442 = vmatpush.msra.mxu0 %v2387
        %2443 = vmatpush.msra.mxu0 %v2386
        %2444 = vmatpush.msra.mxu0 %v2385
        %2445 = vmatpush.msra.mxu0 %v2384
        %2446 = vmatmul.f32.gmra.mxu0 %v2390
        %v2447 = vpop.f32.mrf.mxu0
        %v2448 = vadd.f32 0.0, %v2447
        %2449 = vmatmul.f32.gmra.mxu0 %v2393
        %v2450 = vpop.f32.mrf.mxu0
        %v2451 = vadd.f32 0.0, %v2450
        %2452 = vmatmul.f32.gmra.mxu0 %v2396
        %v2453 = vpop.f32.mrf.mxu0
        %v2454 = vadd.f32 0.0, %v2453
        %2455 = vmatmul.f32.gmra.mxu0 %v2399
        %v2456 = vpop.f32.mrf.mxu0
        %v2457 = vadd.f32 0.0, %v2456
        %2458 = vdwg.mxu0
        %v2459 = vld [vmem:[#allocation14] sm:$0xff]
        %v2460 = vld [vmem:[#allocation14 + $0x8] sm:$0xff]
        %v2461 = vld [vmem:[#allocation14 + $0x10] sm:$0xff]
        %v2462 = vld [vmem:[#allocation14 + $0x18] sm:$0xff]
        %vm2463 = vcmask 785408
        %v2465 = vsel %vm2463, %v2459, 0
        %v2468 = vsel %vm2463, %v2460, 0
        %v2471 = vsel %vm2463, %v2461, 0
        %v2474 = vsel %vm2463, %v2462, 0
        %2476 = vmatpush.msra.mxu0 0.0
        %2477 = vmatpush.msra.mxu0 0.0
        %2478 = vmatpush.msra.mxu0 0.0
        %2479 = vmatpush.msra.mxu0 0.0
        %2480 = vmatpush.msra.mxu0 %v2457
        %2481 = vmatpush.msra.mxu0 %v2454
        %2482 = vmatpush.msra.mxu0 %v2451
        %2483 = vmatpush.msra.mxu0 %v2448
        %2484 = vmatpush.msra.mxu0 %v2142
        %2485 = vmatpush.msra.mxu0 %v2141
        %2486 = vmatpush.msra.mxu0 %v2140
        %2487 = vmatpush.msra.mxu0 %v2139
        %2488 = vmatpush.msra.mxu0 %v2428
        %2489 = vmatpush.msra.mxu0 %v2425
        %2490 = vmatpush.msra.mxu0 %v2422
        %2491 = vmatpush.msra.mxu0 %v2419
        %2492 = vmatmul.f32.gmra.mxu0 %v2465
        %v2493 = vpop.f32.mrf.mxu0
        %v2494 = vadd.f32 0.0, %v2493
        %2495 = vmatmul.f32.gmra.mxu0 %v2468
        %v2496 = vpop.f32.mrf.mxu0
        %v2497 = vadd.f32 0.0, %v2496
        %2498 = vmatmul.f32.gmra.mxu0 %v2471
        %v2499 = vpop.f32.mrf.mxu0
        %v2500 = vadd.f32 0.0, %v2499
        %2501 = vmatmul.f32.gmra.mxu0 %v2474
        %v2502 = vpop.f32.mrf.mxu0
        %v2503 = vadd.f32 0.0, %v2502
        %2504 = vdwg.mxu0
        %v2505 = vadd.f32 %v2375, %v2494
        %v2506 = vadd.f32 %v2376, %v2497
        %v2507 = vadd.f32 %v2377, %v2500
        %v2508 = vadd.f32 %v2378, %v2503
        %v2509 = vld [vmem:[%s33] sm:$0xff]
        %v2510 = vld [vmem:[%s33 + $0x8] sm:$0xff]
        %v2511 = vld [vmem:[%s33 + $0x10] sm:$0xff]
        %v2512 = vld [vmem:[%s33 + $0x18] sm:$0xff]
        %2514 = vset.pattern.permute.xlu0 0
        %2515 = vperm.xlu0 %2514, %v2509
        %v2516 = vpop.permute.xlu0 %2515
        %2519 = vset.pattern.permute.xlu0 0
        %2520 = vperm.xlu0 %2519, %v2510
        %v2521 = vpop.permute.xlu0 %2520
        %2524 = vset.pattern.permute.xlu0 0
        %2525 = vperm.xlu0 %2524, %v2511
        %v2526 = vpop.permute.xlu0 %2525
        %2529 = vset.pattern.permute.xlu0 0
        %2530 = vperm.xlu0 %2529, %v2512
        %v2531 = vpop.permute.xlu0 %2530
        %v2533 = vadd.f32 %v2505, %v2516
        %v2534 = vadd.f32 %v2506, %v2521
        %v2535 = vadd.f32 %v2507, %v2526
        %v2536 = vadd.f32 %v2508, %v2531
        %v2537 = vmax.f32 %v2533, 0.0
        %v2538 = vmax.f32 %v2534, 0.0
        %v2539 = vmax.f32 %v2535, 0.0
        %v2540 = vmax.f32 %v2536, 0.0
        %v2542 = vsel %vm2388, %v2537, 0
        %v2545 = vsel %vm2388, %v2538, 0
        %v2548 = vsel %vm2388, %v2539, 0
        %v2551 = vsel %vm2388, %v2540, 0
        %2553 = vmatpush.msra.mxu0 0.0
        %2554 = vmatpush.msra.mxu0 0.0
        %2555 = vmatpush.msra.mxu0 0.0
        %2556 = vmatpush.msra.mxu0 0.0
        %2557 = vmatpush.msra.mxu0 0.0
        %2558 = vmatpush.msra.mxu0 0.0
        %2559 = vmatpush.msra.mxu0 0.0
        %2560 = vmatpush.msra.mxu0 0.0
        %2561 = vmatpush.msra.mxu0 0.0
        %2562 = vmatpush.msra.mxu0 0.0
        %2563 = vmatpush.msra.mxu0 0.0
        %2564 = vmatpush.msra.mxu0 0.0
        %2565 = vmatpush.msra.mxu0 %v2382
        %2566 = vmatpush.msra.mxu0 %v2381
        %2567 = vmatpush.msra.mxu0 %v2380
        %2568 = vmatpush.msra.mxu0 %v2379
        %2569 = vmatmul.f32.gmra.mxu0 %v2542
        %v2570 = vpop.f32.mrf.mxu0
        %v2571 = vadd.f32 0.0, %v2570
        %2572 = vmatmul.f32.gmra.mxu0 %v2545
        %v2573 = vpop.f32.mrf.mxu0
        %v2574 = vadd.f32 0.0, %v2573
        %2575 = vmatmul.f32.gmra.mxu0 %v2548
        %v2576 = vpop.f32.mrf.mxu0
        %v2577 = vadd.f32 0.0, %v2576
        %2578 = vmatmul.f32.gmra.mxu0 %v2551
        %v2579 = vpop.f32.mrf.mxu0
        %v2580 = vadd.f32 0.0, %v2579
        %2581 = vdwg.mxu0
        %2582 = vmatpush.msra.mxu0 0.0
        %2583 = vmatpush.msra.mxu0 0.0
        %2584 = vmatpush.msra.mxu0 0.0
        %2585 = vmatpush.msra.mxu0 0.0
        %2586 = vmatpush.msra.mxu0 0.0
        %2587 = vmatpush.msra.mxu0 0.0
        %2588 = vmatpush.msra.mxu0 0.0
        %2589 = vmatpush.msra.mxu0 0.0
        %2590 = vmatpush.msra.mxu0 0.0
        %2591 = vmatpush.msra.mxu0 0.0
        %2592 = vmatpush.msra.mxu0 0.0
        %2593 = vmatpush.msra.mxu0 0.0
        %2594 = vmatpush.msra.mxu0 %v2387
        %2595 = vmatpush.msra.mxu0 %v2386
        %2596 = vmatpush.msra.mxu0 %v2385
        %2597 = vmatpush.msra.mxu0 %v2384
        %2598 = vmatmul.f32.gmra.mxu0 %v2542
        %v2599 = vpop.f32.mrf.mxu0
        %v2600 = vadd.f32 0.0, %v2599
        %2601 = vmatmul.f32.gmra.mxu0 %v2545
        %v2602 = vpop.f32.mrf.mxu0
        %v2603 = vadd.f32 0.0, %v2602
        %2604 = vmatmul.f32.gmra.mxu0 %v2548
        %v2605 = vpop.f32.mrf.mxu0
        %v2606 = vadd.f32 0.0, %v2605
        %2607 = vmatmul.f32.gmra.mxu0 %v2551
        %v2608 = vpop.f32.mrf.mxu0
        %v2609 = vadd.f32 0.0, %v2608
        %2610 = vdwg.mxu0
        %v2611 = vld [vmem:[#allocation16] sm:$0xff]
        %v2612 = vld [vmem:[#allocation16 + $0x8] sm:$0xff]
        %v2613 = vld [vmem:[#allocation16 + $0x10] sm:$0xff]
        %v2614 = vld [vmem:[#allocation16 + $0x18] sm:$0xff]
        %s2615 = scalar_lea.vmem %s33, 32
        %v2616 = vld [vmem:[%s2615] sm:$0xff]
        %v2617 = vld [vmem:[%s2615 + $0x8] sm:$0xff]
        %v2618 = vld [vmem:[%s2615 + $0x10] sm:$0xff]
        %v2619 = vld [vmem:[%s2615 + $0x18] sm:$0xff]
        %2621 = vset.pattern.permute.xlu0 0
        %2622 = vperm.xlu0 %2621, %v2616
        %v2623 = vpop.permute.xlu0 %2622
        %2626 = vset.pattern.permute.xlu0 0
        %2627 = vperm.xlu0 %2626, %v2617
        %v2628 = vpop.permute.xlu0 %2627
        %2631 = vset.pattern.permute.xlu0 0
        %2632 = vperm.xlu0 %2631, %v2618
        %v2633 = vpop.permute.xlu0 %2632
        %2636 = vset.pattern.permute.xlu0 0
        %2637 = vperm.xlu0 %2636, %v2619
        %v2638 = vpop.permute.xlu0 %2637
        %v2641 = vsel %vm2463, %v2611, 0
        %v2644 = vsel %vm2463, %v2612, 0
        %v2647 = vsel %vm2463, %v2613, 0
        %v2650 = vsel %vm2463, %v2614, 0
        %2652 = vmatpush.msra.mxu0 0.0
        %2653 = vmatpush.msra.mxu0 0.0
        %2654 = vmatpush.msra.mxu0 0.0
        %2655 = vmatpush.msra.mxu0 0.0
        %2656 = vmatpush.msra.mxu0 %v2609
        %2657 = vmatpush.msra.mxu0 %v2606
        %2658 = vmatpush.msra.mxu0 %v2603
        %2659 = vmatpush.msra.mxu0 %v2600
        %2660 = vmatpush.msra.mxu0 %v2540
        %2661 = vmatpush.msra.mxu0 %v2539
        %2662 = vmatpush.msra.mxu0 %v2538
        %2663 = vmatpush.msra.mxu0 %v2537
        %2664 = vmatpush.msra.mxu0 %v2580
        %2665 = vmatpush.msra.mxu0 %v2577
        %2666 = vmatpush.msra.mxu0 %v2574
        %2667 = vmatpush.msra.mxu0 %v2571
        %2668 = vmatmul.f32.gmra.mxu0 %v2641
        %v2669 = vpop.f32.mrf.mxu0
        %v2670 = vadd.f32 %v2623, %v2669
        %2671 = vmatmul.f32.gmra.mxu0 %v2644
        %v2672 = vpop.f32.mrf.mxu0
        %v2673 = vadd.f32 %v2628, %v2672
        %2674 = vmatmul.f32.gmra.mxu0 %v2647
        %v2675 = vpop.f32.mrf.mxu0
        %v2676 = vadd.f32 %v2633, %v2675
        %2677 = vmatmul.f32.gmra.mxu0 %v2650
        %v2678 = vpop.f32.mrf.mxu0
        %v2679 = vadd.f32 %v2638, %v2678
        %2680 = vdwg.mxu0
        %v2681 = vmax.f32 %v2670, 0.0
        %v2682 = vmax.f32 %v2673, 0.0
        %v2683 = vmax.f32 %v2676, 0.0
        %v2684 = vmax.f32 %v2679, 0.0
        %v2685 = vld [vmem:[%s1037] sm:$0xff]
        %v2686 = vld [vmem:[%s1037 + $0x8] sm:$0xff]
        %v2687 = vld [vmem:[%s39] sm:$0xff]
        %v2688 = vld [vmem:[%s39 + $0x8] sm:$0xff]
        %v2689 = vld [vmem:[%s39 + $0x10] sm:$0xff]
        %v2690 = vld [vmem:[%s39 + $0x18] sm:$0xff]
        %v2691 = vld [vmem:[%s39 + $0x20] sm:$0xff]
        %v2692 = vld [vmem:[%s39 + $0x28] sm:$0xff]
        %v2694 = vsel %vm2388, %v2687, 0
        %v2697 = vsel %vm2388, %v2688, 0
        %v2700 = vsel %vm2388, %v2689, 0
        %v2703 = vsel %vm2388, %v2690, 0
        %v2706 = vsel %vm2388, %v2691, 0
        %v2709 = vsel %vm2388, %v2692, 0
        %2711 = vmatpush.msra.mxu0 0.0
        %2712 = vmatpush.msra.mxu0 0.0
        %2713 = vmatpush.msra.mxu0 0.0
        %2714 = vmatpush.msra.mxu0 0.0
        %2715 = vmatpush.msra.mxu0 0.0
        %2716 = vmatpush.msra.mxu0 0.0
        %2717 = vmatpush.msra.mxu0 0.0
        %2718 = vmatpush.msra.mxu0 0.0
        %2719 = vmatpush.msra.mxu0 0.0
        %2720 = vmatpush.msra.mxu0 0.0
        %2721 = vmatpush.msra.mxu0 0.0
        %2722 = vmatpush.msra.mxu0 0.0
        %2723 = vmatpush.msra.mxu0 %v2684
        %2724 = vmatpush.msra.mxu0 %v2683
        %2725 = vmatpush.msra.mxu0 %v2682
        %2726 = vmatpush.msra.mxu0 %v2681
        %2727 = vmatmul.f32.gmra.mxu0 %v2694
        %v2728 = vpop.f32.mrf.mxu0
        %v2729 = vadd.f32 0.0, %v2728
        %2730 = vmatmul.f32.gmra.mxu0 %v2697
        %v2731 = vpop.f32.mrf.mxu0
        %v2732 = vadd.f32 0.0, %v2731
        %2733 = vmatmul.f32.gmra.mxu0 %v2700
        %v2734 = vpop.f32.mrf.mxu0
        %v2735 = vadd.f32 0.0, %v2734
        %2736 = vmatmul.f32.gmra.mxu0 %v2703
        %v2737 = vpop.f32.mrf.mxu0
        %v2738 = vadd.f32 0.0, %v2737
        %2739 = vmatmul.f32.gmra.mxu0 %v2706
        %v2740 = vpop.f32.mrf.mxu0
        %v2741 = vadd.f32 0.0, %v2740
        %2742 = vmatmul.f32.gmra.mxu0 %v2709
        %v2743 = vpop.f32.mrf.mxu0
        %v2744 = vadd.f32 0.0, %v2743
        %2745 = vdwg.mxu0
        %v2746 = vld [vmem:[%s35] sm:$0xff]
        %v2747 = vld [vmem:[%s35 + $0x8] sm:$0xff]
        %v2748 = vld [vmem:[%s35 + $0x10] sm:$0xff]
        %v2749 = vld [vmem:[%s35 + $0x18] sm:$0xff]
        %s2750 = scalar_lea.vmem %s35, 32
        %v2751 = vld [vmem:[%s2750] sm:$0xff]
        %v2752 = vld [vmem:[%s2750 + $0x8] sm:$0xff]
        %v2753 = vld [vmem:[%s2750 + $0x10] sm:$0xff]
        %v2754 = vld [vmem:[%s2750 + $0x18] sm:$0xff]
        %v2756 = vsel %vm2388, %v2735, 0
        %v2759 = vsel %vm2388, %v2738, 0
        %2761 = vmatpush.msra.mxu0 0.0
        %2762 = vmatpush.msra.mxu0 0.0
        %2763 = vmatpush.msra.mxu0 0.0
        %2764 = vmatpush.msra.mxu0 0.0
        %2765 = vmatpush.msra.mxu0 0.0
        %2766 = vmatpush.msra.mxu0 0.0
        %2767 = vmatpush.msra.mxu0 0.0
        %2768 = vmatpush.msra.mxu0 0.0
        %2769 = vmatpush.msra.mxu0 0.0
        %2770 = vmatpush.msra.mxu0 0.0
        %2771 = vmatpush.msra.mxu0 0.0
        %2772 = vmatpush.msra.mxu0 0.0
        %2773 = vmatpush.msra.mxu0 %v2754
        %2774 = vmatpush.msra.mxu0 %v2753
        %2775 = vmatpush.msra.mxu0 %v2752
        %2776 = vmatpush.msra.mxu0 %v2751
        %2777 = vmatmul.f32.gmra.mxu0 %v2756
        %v2778 = vpop.f32.mrf.mxu0
        %v2779 = vadd.f32 0.0, %v2778
        %2780 = vmatmul.f32.gmra.mxu0 %v2759
        %v2781 = vpop.f32.mrf.mxu0
        %v2782 = vadd.f32 0.0, %v2781
        %2783 = vdwg.mxu0
        %v2785 = vsel %vm2388, %v2729, 0
        %v2788 = vsel %vm2388, %v2732, 0
        %2790 = vmatpush.msra.mxu0 0.0
        %2791 = vmatpush.msra.mxu0 0.0
        %2792 = vmatpush.msra.mxu0 0.0
        %2793 = vmatpush.msra.mxu0 0.0
        %2794 = vmatpush.msra.mxu0 0.0
        %2795 = vmatpush.msra.mxu0 0.0
        %2796 = vmatpush.msra.mxu0 0.0
        %2797 = vmatpush.msra.mxu0 0.0
        %2798 = vmatpush.msra.mxu0 0.0
        %2799 = vmatpush.msra.mxu0 0.0
        %2800 = vmatpush.msra.mxu0 0.0
        %2801 = vmatpush.msra.mxu0 0.0
        %2802 = vmatpush.msra.mxu0 %v2749
        %2803 = vmatpush.msra.mxu0 %v2748
        %2804 = vmatpush.msra.mxu0 %v2747
        %2805 = vmatpush.msra.mxu0 %v2746
        %2806 = vmatmul.f32.gmra.mxu0 %v2785
        %v2807 = vpop.f32.mrf.mxu0
        %v2808 = vadd.f32 %v2779, %v2807
        %2809 = vmatmul.f32.gmra.mxu0 %v2788
        %v2810 = vpop.f32.mrf.mxu0
        %v2811 = vadd.f32 %v2782, %v2810
        %2812 = vdwg.mxu0
        %s2813 = scalar_lea.vmem %s35, 64
        %v2814 = vld [vmem:[%s2813] sm:$0xff]
        %v2815 = vld [vmem:[%s2813 + $0x8] sm:$0xff]
        %v2816 = vld [vmem:[%s2813 + $0x10] sm:$0xff]
        %v2817 = vld [vmem:[%s2813 + $0x18] sm:$0xff]
        %v2819 = vsel %vm2388, %v2741, 0
        %v2822 = vsel %vm2388, %v2744, 0
        %2824 = vmatpush.msra.mxu0 0.0
        %2825 = vmatpush.msra.mxu0 0.0
        %2826 = vmatpush.msra.mxu0 0.0
        %2827 = vmatpush.msra.mxu0 0.0
        %2828 = vmatpush.msra.mxu0 0.0
        %2829 = vmatpush.msra.mxu0 0.0
        %2830 = vmatpush.msra.mxu0 0.0
        %2831 = vmatpush.msra.mxu0 0.0
        %2832 = vmatpush.msra.mxu0 0.0
        %2833 = vmatpush.msra.mxu0 0.0
        %2834 = vmatpush.msra.mxu0 0.0
        %2835 = vmatpush.msra.mxu0 0.0
        %2836 = vmatpush.msra.mxu0 %v2817
        %2837 = vmatpush.msra.mxu0 %v2816
        %2838 = vmatpush.msra.mxu0 %v2815
        %2839 = vmatpush.msra.mxu0 %v2814
        %2840 = vmatmul.f32.gmra.mxu0 %v2819
        %v2841 = vpop.f32.mrf.mxu0
        %v2842 = vadd.f32 0.0, %v2841
        %2843 = vmatmul.f32.gmra.mxu0 %v2822
        %v2844 = vpop.f32.mrf.mxu0
        %v2845 = vadd.f32 0.0, %v2844
        %2846 = vdwg.mxu0
        %v2847 = vadd.f32 %v2808, %v2842
        %v2848 = vadd.f32 %v2811, %v2845
        %v2849 = vld [vmem:[#allocation17] sm:$0xff]
        %v2850 = vld [vmem:[#allocation17 + $0x8] sm:$0xff]
        %v2851 = vld [vmem:[#allocation17 + $0x10] sm:$0xff]
        %v2852 = vld [vmem:[#allocation17 + $0x18] sm:$0xff]
        %v2853 = vld [vmem:[#allocation17 + $0x20] sm:$0xff]
        %v2854 = vld [vmem:[#allocation17 + $0x28] sm:$0xff]
        %v2855 = vld [vmem:[#allocation17 + $0x30] sm:$0xff]
        %v2856 = vld [vmem:[#allocation17 + $0x38] sm:$0xff]
        %s2857 = scalar_lea.vmem [#allocation17], 64
        %v2858 = vld [vmem:[%s2857] sm:$0xff]
        %v2859 = vld [vmem:[%s2857 + $0x8] sm:$0xff]
        %v2860 = vld [vmem:[%s2857 + $0x10] sm:$0xff]
        %v2861 = vld [vmem:[%s2857 + $0x18] sm:$0xff]
        %v2862 = vld [vmem:[%s2857 + $0x20] sm:$0xff]
        %v2863 = vld [vmem:[%s2857 + $0x28] sm:$0xff]
        %v2864 = vld [vmem:[%s2857 + $0x30] sm:$0xff]
        %v2865 = vld [vmem:[%s2857 + $0x38] sm:$0xff]
        %v2867 = vsel %vm1675, %v2685, 0
        %v2870 = vsel %vm1675, %v2686, 0
        %2872 = vmatpush.msra.mxu0 0.0
        %2873 = vmatpush.msra.mxu0 0.0
        %2874 = vmatpush.msra.mxu0 0.0
        %2875 = vmatpush.msra.mxu0 0.0
        %2876 = vmatpush.msra.mxu0 0.0
        %2877 = vmatpush.msra.mxu0 0.0
        %2878 = vmatpush.msra.mxu0 0.0
        %2879 = vmatpush.msra.mxu0 0.0
        %2880 = vmatpush.msra.mxu0 %v2856
        %2881 = vmatpush.msra.mxu0 %v2855
        %2882 = vmatpush.msra.mxu0 %v2854
        %2883 = vmatpush.msra.mxu0 %v2853
        %2884 = vmatpush.msra.mxu0 %v2852
        %2885 = vmatpush.msra.mxu0 %v2851
        %2886 = vmatpush.msra.mxu0 %v2850
        %2887 = vmatpush.msra.mxu0 %v2849
        %2888 = vmatmul.f32.gmra.mxu0 %v2867
        %v2889 = vpop.f32.mrf.mxu0
        %v2890 = vadd.f32 0.0, %v2889
        %2891 = vmatmul.f32.gmra.mxu0 %v2870
        %v2892 = vpop.f32.mrf.mxu0
        %v2893 = vadd.f32 0.0, %v2892
        %2894 = vdwg.mxu0
        %2895 = vmatpush.msra.mxu0 0.0
        %2896 = vmatpush.msra.mxu0 0.0
        %2897 = vmatpush.msra.mxu0 0.0
        %2898 = vmatpush.msra.mxu0 0.0
        %2899 = vmatpush.msra.mxu0 0.0
        %2900 = vmatpush.msra.mxu0 0.0
        %2901 = vmatpush.msra.mxu0 0.0
        %2902 = vmatpush.msra.mxu0 0.0
        %2903 = vmatpush.msra.mxu0 %v2865
        %2904 = vmatpush.msra.mxu0 %v2864
        %2905 = vmatpush.msra.mxu0 %v2863
        %2906 = vmatpush.msra.mxu0 %v2862
        %2907 = vmatpush.msra.mxu0 %v2861
        %2908 = vmatpush.msra.mxu0 %v2860
        %2909 = vmatpush.msra.mxu0 %v2859
        %2910 = vmatpush.msra.mxu0 %v2858
        %2911 = vmatmul.f32.gmra.mxu0 %v2867
        %v2912 = vpop.f32.mrf.mxu0
        %v2913 = vadd.f32 0.0, %v2912
        %2914 = vmatmul.f32.gmra.mxu0 %v2870
        %v2915 = vpop.f32.mrf.mxu0
        %v2916 = vadd.f32 0.0, %v2915
        %2917 = vdwg.mxu0
        %v2918 = vld [vmem:[#allocation19] sm:$0xff]
        %v2919 = vld [vmem:[#allocation19 + $0x8] sm:$0xff]
        %vm2920 = vcmask 392192
        %v2922 = vsel %vm2920, %v2918, 0
        %v2925 = vsel %vm2920, %v2919, 0
        %2927 = vmatpush.msra.mxu0 0.0
        %2928 = vmatpush.msra.mxu0 0.0
        %2929 = vmatpush.msra.mxu0 0.0
        %2930 = vmatpush.msra.mxu0 0.0
        %2931 = vmatpush.msra.mxu0 0.0
        %2932 = vmatpush.msra.mxu0 0.0
        %2933 = vmatpush.msra.mxu0 0.0
        %2934 = vmatpush.msra.mxu0 0.0
        %2935 = vmatpush.msra.mxu0 0.0
        %2936 = vmatpush.msra.mxu0 0.0
        %2937 = vmatpush.msra.mxu0 %v2916
        %2938 = vmatpush.msra.mxu0 %v2913
        %2939 = vmatpush.msra.mxu0 %v2686
        %2940 = vmatpush.msra.mxu0 %v2685
        %2941 = vmatpush.msra.mxu0 %v2893
        %2942 = vmatpush.msra.mxu0 %v2890
        %2943 = vmatmul.f32.gmra.mxu0 %v2922
        %v2944 = vpop.f32.mrf.mxu0
        %v2945 = vadd.f32 0.0, %v2944
        %2946 = vmatmul.f32.gmra.mxu0 %v2925
        %v2947 = vpop.f32.mrf.mxu0
        %v2948 = vadd.f32 0.0, %v2947
        %2949 = vdwg.mxu0
        %v2950 = vadd.f32 %v2847, %v2945
        %v2951 = vadd.f32 %v2848, %v2948
        %v2952 = vld [vmem:[%s45] sm:$0xff]
        %v2953 = vld [vmem:[%s45 + $0x8] sm:$0xff]
        %2955 = vset.pattern.permute.xlu0 0
        %2956 = vperm.xlu0 %2955, %v2952
        %v2957 = vpop.permute.xlu0 %2956
        %2960 = vset.pattern.permute.xlu0 0
        %2961 = vperm.xlu0 %2960, %v2953
        %v2962 = vpop.permute.xlu0 %2961
        %v2964 = vadd.f32 %v2950, %v2957
        %v2965 = vadd.f32 %v2951, %v2962
        %v2966 = vmax.f32 %v2964, 0.0
        %v2967 = vmax.f32 %v2965, 0.0
        %v2969 = vsel %vm1675, %v2966, 0
        %v2972 = vsel %vm1675, %v2967, 0
        %2974 = vmatpush.msra.mxu0 0.0
        %2975 = vmatpush.msra.mxu0 0.0
        %2976 = vmatpush.msra.mxu0 0.0
        %2977 = vmatpush.msra.mxu0 0.0
        %2978 = vmatpush.msra.mxu0 0.0
        %2979 = vmatpush.msra.mxu0 0.0
        %2980 = vmatpush.msra.mxu0 0.0
        %2981 = vmatpush.msra.mxu0 0.0
        %2982 = vmatpush.msra.mxu0 %v2856
        %2983 = vmatpush.msra.mxu0 %v2855
        %2984 = vmatpush.msra.mxu0 %v2854
        %2985 = vmatpush.msra.mxu0 %v2853
        %2986 = vmatpush.msra.mxu0 %v2852
        %2987 = vmatpush.msra.mxu0 %v2851
        %2988 = vmatpush.msra.mxu0 %v2850
        %2989 = vmatpush.msra.mxu0 %v2849
        %2990 = vmatmul.f32.gmra.mxu0 %v2969
        %v2991 = vpop.f32.mrf.mxu0
        %v2992 = vadd.f32 0.0, %v2991
        %2993 = vmatmul.f32.gmra.mxu0 %v2972
        %v2994 = vpop.f32.mrf.mxu0
        %v2995 = vadd.f32 0.0, %v2994
        %2996 = vdwg.mxu0
        %2997 = vmatpush.msra.mxu0 0.0
        %2998 = vmatpush.msra.mxu0 0.0
        %2999 = vmatpush.msra.mxu0 0.0
        %3000 = vmatpush.msra.mxu0 0.0
        %3001 = vmatpush.msra.mxu0 0.0
        %3002 = vmatpush.msra.mxu0 0.0
        %3003 = vmatpush.msra.mxu0 0.0
        %3004 = vmatpush.msra.mxu0 0.0
        %3005 = vmatpush.msra.mxu0 %v2865
        %3006 = vmatpush.msra.mxu0 %v2864
        %3007 = vmatpush.msra.mxu0 %v2863
        %3008 = vmatpush.msra.mxu0 %v2862
        %3009 = vmatpush.msra.mxu0 %v2861
        %3010 = vmatpush.msra.mxu0 %v2860
        %3011 = vmatpush.msra.mxu0 %v2859
        %3012 = vmatpush.msra.mxu0 %v2858
        %3013 = vmatmul.f32.gmra.mxu0 %v2969
        %v3014 = vpop.f32.mrf.mxu0
        %v3015 = vadd.f32 0.0, %v3014
        %3016 = vmatmul.f32.gmra.mxu0 %v2972
        %v3017 = vpop.f32.mrf.mxu0
        %v3018 = vadd.f32 0.0, %v3017
        %3019 = vdwg.mxu0
        %v3020 = vld [vmem:[#allocation20] sm:$0xff]
        %v3021 = vld [vmem:[#allocation20 + $0x8] sm:$0xff]
        %s3022 = scalar_lea.vmem %s45, 16
        %v3023 = vld [vmem:[%s3022] sm:$0xff]
        %v3024 = vld [vmem:[%s3022 + $0x8] sm:$0xff]
        %3026 = vset.pattern.permute.xlu0 0
        %3027 = vperm.xlu0 %3026, %v3023
        %v3028 = vpop.permute.xlu0 %3027
        %3031 = vset.pattern.permute.xlu0 0
        %3032 = vperm.xlu0 %3031, %v3024
        %v3033 = vpop.permute.xlu0 %3032
        %v3036 = vsel %vm2920, %v3020, 0
        %v3039 = vsel %vm2920, %v3021, 0
        %3041 = vmatpush.msra.mxu0 0.0
        %3042 = vmatpush.msra.mxu0 0.0
        %3043 = vmatpush.msra.mxu0 0.0
        %3044 = vmatpush.msra.mxu0 0.0
        %3045 = vmatpush.msra.mxu0 0.0
        %3046 = vmatpush.msra.mxu0 0.0
        %3047 = vmatpush.msra.mxu0 0.0
        %3048 = vmatpush.msra.mxu0 0.0
        %3049 = vmatpush.msra.mxu0 0.0
        %3050 = vmatpush.msra.mxu0 0.0
        %3051 = vmatpush.msra.mxu0 %v3018
        %3052 = vmatpush.msra.mxu0 %v3015
        %3053 = vmatpush.msra.mxu0 %v2967
        %3054 = vmatpush.msra.mxu0 %v2966
        %3055 = vmatpush.msra.mxu0 %v2995
        %3056 = vmatpush.msra.mxu0 %v2992
        %3057 = vmatmul.f32.gmra.mxu0 %v3036
        %v3058 = vpop.f32.mrf.mxu0
        %v3059 = vadd.f32 %v3028, %v3058
        %3060 = vmatmul.f32.gmra.mxu0 %v3039
        %v3061 = vpop.f32.mrf.mxu0
        %v3062 = vadd.f32 %v3033, %v3061
        %3063 = vdwg.mxu0
        %v3064 = vmax.f32 %v3059, 0.0
        %v3065 = vmax.f32 %v3062, 0.0
        %v3066 = vld [vmem:[%s1200] sm:$0xff]
        %v3067 = vld [vmem:[%s51] sm:$0xff]
        %v3068 = vld [vmem:[%s51 + $0x8] sm:$0xff]
        %v3069 = vld [vmem:[%s51 + $0x10] sm:$0xff]
        %v3071 = vsel %vm1552, %v3067, 0
        %v3074 = vsel %vm1552, %v3068, 0
        %v3077 = vsel %vm1552, %v3069, 0
        %3079 = vmatpush.msra.mxu0 0.0
        %3080 = vmatpush.msra.mxu0 0.0
        %3081 = vmatpush.msra.mxu0 0.0
        %3082 = vmatpush.msra.mxu0 0.0
        %3083 = vmatpush.msra.mxu0 0.0
        %3084 = vmatpush.msra.mxu0 0.0
        %3085 = vmatpush.msra.mxu0 0.0
        %3086 = vmatpush.msra.mxu0 0.0
        %3087 = vmatpush.msra.mxu0 0.0
        %3088 = vmatpush.msra.mxu0 0.0
        %3089 = vmatpush.msra.mxu0 0.0
        %3090 = vmatpush.msra.mxu0 0.0
        %3091 = vmatpush.msra.mxu0 0.0
        %3092 = vmatpush.msra.mxu0 0.0
        %3093 = vmatpush.msra.mxu0 %v3065
        %3094 = vmatpush.msra.mxu0 %v3064
        %3095 = vmatmul.f32.gmra.mxu0 %v3071
        %v3096 = vpop.f32.mrf.mxu0
        %v3097 = vadd.f32 0.0, %v3096
        %3098 = vmatmul.f32.gmra.mxu0 %v3074
        %v3099 = vpop.f32.mrf.mxu0
        %v3100 = vadd.f32 0.0, %v3099
        %3101 = vmatmul.f32.gmra.mxu0 %v3077
        %v3102 = vpop.f32.mrf.mxu0
        %v3103 = vadd.f32 0.0, %v3102
        %3104 = vdwg.mxu0
        %v3105 = vld [vmem:[%s47] sm:$0xff]
        %v3106 = vld [vmem:[%s47 + $0x8] sm:$0xff]
        %v3107 = vld [vmem:[%s47 + $0x10] sm:$0xff]
        %v3108 = vld [vmem:[%s47 + $0x18] sm:$0xff]
        %v3109 = vld [vmem:[%s47 + $0x20] sm:$0xff]
        %v3110 = vld [vmem:[%s47 + $0x28] sm:$0xff]
        %v3111 = vld [vmem:[%s47 + $0x30] sm:$0xff]
        %v3112 = vld [vmem:[%s47 + $0x38] sm:$0xff]
        %s3113 = scalar_lea.vmem %s47, 64
        %v3114 = vld [vmem:[%s3113] sm:$0xff]
        %v3115 = vld [vmem:[%s3113 + $0x8] sm:$0xff]
        %v3116 = vld [vmem:[%s3113 + $0x10] sm:$0xff]
        %v3117 = vld [vmem:[%s3113 + $0x18] sm:$0xff]
        %v3118 = vld [vmem:[%s3113 + $0x20] sm:$0xff]
        %v3119 = vld [vmem:[%s3113 + $0x28] sm:$0xff]
        %v3120 = vld [vmem:[%s3113 + $0x30] sm:$0xff]
        %v3121 = vld [vmem:[%s3113 + $0x38] sm:$0xff]
        %v3123 = vsel %vm1675, %v3100, 0
        %3125 = vmatpush.msra.mxu0 0.0
        %3126 = vmatpush.msra.mxu0 0.0
        %3127 = vmatpush.msra.mxu0 0.0
        %3128 = vmatpush.msra.mxu0 0.0
        %3129 = vmatpush.msra.mxu0 0.0
        %3130 = vmatpush.msra.mxu0 0.0
        %3131 = vmatpush.msra.mxu0 0.0
        %3132 = vmatpush.msra.mxu0 0.0
        %3133 = vmatpush.msra.mxu0 %v3121
        %3134 = vmatpush.msra.mxu0 %v3120
        %3135 = vmatpush.msra.mxu0 %v3119
        %3136 = vmatpush.msra.mxu0 %v3118
        %3137 = vmatpush.msra.mxu0 %v3117
        %3138 = vmatpush.msra.mxu0 %v3116
        %3139 = vmatpush.msra.mxu0 %v3115
        %3140 = vmatpush.msra.mxu0 %v3114
        %3141 = vmatmul.f32.gmra.mxu0 %v3123
        %v3142 = vpop.f32.mrf.mxu0
        %v3143 = vadd.f32 0.0, %v3142
        %3144 = vdwg.mxu0
        %v3146 = vsel %vm1675, %v3097, 0
        %3148 = vmatpush.msra.mxu0 0.0
        %3149 = vmatpush.msra.mxu0 0.0
        %3150 = vmatpush.msra.mxu0 0.0
        %3151 = vmatpush.msra.mxu0 0.0
        %3152 = vmatpush.msra.mxu0 0.0
        %3153 = vmatpush.msra.mxu0 0.0
        %3154 = vmatpush.msra.mxu0 0.0
        %3155 = vmatpush.msra.mxu0 0.0
        %3156 = vmatpush.msra.mxu0 %v3112
        %3157 = vmatpush.msra.mxu0 %v3111
        %3158 = vmatpush.msra.mxu0 %v3110
        %3159 = vmatpush.msra.mxu0 %v3109
        %3160 = vmatpush.msra.mxu0 %v3108
        %3161 = vmatpush.msra.mxu0 %v3107
        %3162 = vmatpush.msra.mxu0 %v3106
        %3163 = vmatpush.msra.mxu0 %v3105
        %3164 = vmatmul.f32.gmra.mxu0 %v3146
        %v3165 = vpop.f32.mrf.mxu0
        %v3166 = vadd.f32 %v3143, %v3165
        %3167 = vdwg.mxu0
        %s3168 = scalar_lea.vmem %s47, 128
        %v3169 = vld [vmem:[%s3168] sm:$0xff]
        %v3170 = vld [vmem:[%s3168 + $0x8] sm:$0xff]
        %v3171 = vld [vmem:[%s3168 + $0x10] sm:$0xff]
        %v3172 = vld [vmem:[%s3168 + $0x18] sm:$0xff]
        %v3173 = vld [vmem:[%s3168 + $0x20] sm:$0xff]
        %v3174 = vld [vmem:[%s3168 + $0x28] sm:$0xff]
        %v3175 = vld [vmem:[%s3168 + $0x30] sm:$0xff]
        %v3176 = vld [vmem:[%s3168 + $0x38] sm:$0xff]
        %v3178 = vsel %vm1675, %v3103, 0
        %3180 = vmatpush.msra.mxu0 0.0
        %3181 = vmatpush.msra.mxu0 0.0
        %3182 = vmatpush.msra.mxu0 0.0
        %3183 = vmatpush.msra.mxu0 0.0
        %3184 = vmatpush.msra.mxu0 0.0
        %3185 = vmatpush.msra.mxu0 0.0
        %3186 = vmatpush.msra.mxu0 0.0
        %3187 = vmatpush.msra.mxu0 0.0
        %3188 = vmatpush.msra.mxu0 %v3176
        %3189 = vmatpush.msra.mxu0 %v3175
        %3190 = vmatpush.msra.mxu0 %v3174
        %3191 = vmatpush.msra.mxu0 %v3173
        %3192 = vmatpush.msra.mxu0 %v3172
        %3193 = vmatpush.msra.mxu0 %v3171
        %3194 = vmatpush.msra.mxu0 %v3170
        %3195 = vmatpush.msra.mxu0 %v3169
        %3196 = vmatmul.f32.gmra.mxu0 %v3178
        %v3197 = vpop.f32.mrf.mxu0
        %v3198 = vadd.f32 0.0, %v3197
        %3199 = vdwg.mxu0
        %v3200 = vadd.f32 %v3166, %v3198
        %v3201 = vld [vmem:[%s49] sm:$0xff]
        %v3202 = vld [vmem:[%s49 + $0x8] sm:$0xff]
        %v3203 = vld [vmem:[%s49 + $0x10] sm:$0xff]
        %v3204 = vld [vmem:[%s49 + $0x18] sm:$0xff]
        %v3205 = vld [vmem:[%s49 + $0x20] sm:$0xff]
        %v3206 = vld [vmem:[%s49 + $0x28] sm:$0xff]
        %v3207 = vld [vmem:[%s49 + $0x30] sm:$0xff]
        %v3208 = vld [vmem:[%s49 + $0x38] sm:$0xff]
        %v3209 = vld [vmem:[%s49 + $0x40] sm:$0xff]
        %v3210 = vld [vmem:[%s49 + $0x48] sm:$0xff]
        %v3211 = vld [vmem:[%s49 + $0x50] sm:$0xff]
        %v3212 = vld [vmem:[%s49 + $0x58] sm:$0xff]
        %v3213 = vld [vmem:[%s49 + $0x60] sm:$0xff]
        %v3214 = vld [vmem:[%s49 + $0x68] sm:$0xff]
        %v3215 = vld [vmem:[%s49 + $0x70] sm:$0xff]
        %v3216 = vld [vmem:[%s49 + $0x78] sm:$0xff]
        %s3217 = scalar_lea.vmem %s49, 128
        %v3218 = vld [vmem:[%s3217] sm:$0xff]
        %v3219 = vld [vmem:[%s3217 + $0x8] sm:$0xff]
        %v3220 = vld [vmem:[%s3217 + $0x10] sm:$0xff]
        %v3221 = vld [vmem:[%s3217 + $0x18] sm:$0xff]
        %v3222 = vld [vmem:[%s3217 + $0x20] sm:$0xff]
        %v3223 = vld [vmem:[%s3217 + $0x28] sm:$0xff]
        %v3224 = vld [vmem:[%s3217 + $0x30] sm:$0xff]
        %v3225 = vld [vmem:[%s3217 + $0x38] sm:$0xff]
        %v3226 = vld [vmem:[%s3217 + $0x40] sm:$0xff]
        %v3227 = vld [vmem:[%s3217 + $0x48] sm:$0xff]
        %v3228 = vld [vmem:[%s3217 + $0x50] sm:$0xff]
        %v3229 = vld [vmem:[%s3217 + $0x58] sm:$0xff]
        %v3230 = vld [vmem:[%s3217 + $0x60] sm:$0xff]
        %v3231 = vld [vmem:[%s3217 + $0x68] sm:$0xff]
        %v3232 = vld [vmem:[%s3217 + $0x70] sm:$0xff]
        %v3233 = vld [vmem:[%s3217 + $0x78] sm:$0xff]
        %3234 = vmatpush.msra.mxu0 %v3216
        %3235 = vmatpush.msra.mxu0 %v3215
        %3236 = vmatpush.msra.mxu0 %v3214
        %3237 = vmatpush.msra.mxu0 %v3213
        %3238 = vmatpush.msra.mxu0 %v3212
        %3239 = vmatpush.msra.mxu0 %v3211
        %3240 = vmatpush.msra.mxu0 %v3210
        %3241 = vmatpush.msra.mxu0 %v3209
        %3242 = vmatpush.msra.mxu0 %v3208
        %3243 = vmatpush.msra.mxu0 %v3207
        %3244 = vmatpush.msra.mxu0 %v3206
        %3245 = vmatpush.msra.mxu0 %v3205
        %3246 = vmatpush.msra.mxu0 %v3204
        %3247 = vmatpush.msra.mxu0 %v3203
        %3248 = vmatpush.msra.mxu0 %v3202
        %3249 = vmatpush.msra.mxu0 %v3201
        %3250 = vmatmul.f32.gmra.mxu0 %v3066
        %v3251 = vpop.f32.mrf.mxu0
        %v3252 = vadd.f32 0.0, %v3251
        %3253 = vdwg.mxu0
        %3254 = vmatpush.msra.mxu0 %v3233
        %3255 = vmatpush.msra.mxu0 %v3232
        %3256 = vmatpush.msra.mxu0 %v3231
        %3257 = vmatpush.msra.mxu0 %v3230
        %3258 = vmatpush.msra.mxu0 %v3229
        %3259 = vmatpush.msra.mxu0 %v3228
        %3260 = vmatpush.msra.mxu0 %v3227
        %3261 = vmatpush.msra.mxu0 %v3226
        %3262 = vmatpush.msra.mxu0 %v3225
        %3263 = vmatpush.msra.mxu0 %v3224
        %3264 = vmatpush.msra.mxu0 %v3223
        %3265 = vmatpush.msra.mxu0 %v3222
        %3266 = vmatpush.msra.mxu0 %v3221
        %3267 = vmatpush.msra.mxu0 %v3220
        %3268 = vmatpush.msra.mxu0 %v3219
        %3269 = vmatpush.msra.mxu0 %v3218
        %3270 = vmatmul.f32.gmra.mxu0 %v3066
        %v3271 = vpop.f32.mrf.mxu0
        %v3272 = vadd.f32 0.0, %v3271
        %3273 = vdwg.mxu0
        %v3274 = vld [vmem:[%s53] sm:$0xff]
        %vm3275 = vcmask 195584
        %v3277 = vsel %vm3275, %v3274, 0
        %3279 = vmatpush.msra.mxu0 0.0
        %3280 = vmatpush.msra.mxu0 0.0
        %3281 = vmatpush.msra.mxu0 0.0
        %3282 = vmatpush.msra.mxu0 0.0
        %3283 = vmatpush.msra.mxu0 0.0
        %3284 = vmatpush.msra.mxu0 0.0
        %3285 = vmatpush.msra.mxu0 0.0
        %3286 = vmatpush.msra.mxu0 0.0
        %3287 = vmatpush.msra.mxu0 0.0
        %3288 = vmatpush.msra.mxu0 0.0
        %3289 = vmatpush.msra.mxu0 0.0
        %3290 = vmatpush.msra.mxu0 0.0
        %3291 = vmatpush.msra.mxu0 0.0
        %3292 = vmatpush.msra.mxu0 %v3272
        %3293 = vmatpush.msra.mxu0 %v3066
        %3294 = vmatpush.msra.mxu0 %v3252
        %3295 = vmatmul.f32.gmra.mxu0 %v3277
        %v3296 = vpop.f32.mrf.mxu0
        %v3297 = vadd.f32 0.0, %v3296
        %3298 = vdwg.mxu0
        %v3299 = vadd.f32 %v3200, %v3297
        %v3300 = vld [vmem:[%s57] sm:$0xff]
        %3302 = vset.pattern.permute.xlu0 0
        %3303 = vperm.xlu0 %3302, %v3300
        %v3304 = vpop.permute.xlu0 %3303
        %v3306 = vadd.f32 %v3299, %v3304
        %v3307 = vmax.f32 %v3306, 0.0
        %3308 = vmatpush.msra.mxu0 %v3216
        %3309 = vmatpush.msra.mxu0 %v3215
        %3310 = vmatpush.msra.mxu0 %v3214
        %3311 = vmatpush.msra.mxu0 %v3213
        %3312 = vmatpush.msra.mxu0 %v3212
        %3313 = vmatpush.msra.mxu0 %v3211
        %3314 = vmatpush.msra.mxu0 %v3210
        %3315 = vmatpush.msra.mxu0 %v3209
        %3316 = vmatpush.msra.mxu0 %v3208
        %3317 = vmatpush.msra.mxu0 %v3207
        %3318 = vmatpush.msra.mxu0 %v3206
        %3319 = vmatpush.msra.mxu0 %v3205
        %3320 = vmatpush.msra.mxu0 %v3204
        %3321 = vmatpush.msra.mxu0 %v3203
        %3322 = vmatpush.msra.mxu0 %v3202
        %3323 = vmatpush.msra.mxu0 %v3201
        %3324 = vmatmul.f32.gmra.mxu0 %v3307
        %v3325 = vpop.f32.mrf.mxu0
        %v3326 = vadd.f32 0.0, %v3325
        %3327 = vdwg.mxu0
        %3328 = vmatpush.msra.mxu0 %v3233
        %3329 = vmatpush.msra.mxu0 %v3232
        %3330 = vmatpush.msra.mxu0 %v3231
        %3331 = vmatpush.msra.mxu0 %v3230
        %3332 = vmatpush.msra.mxu0 %v3229
        %3333 = vmatpush.msra.mxu0 %v3228
        %3334 = vmatpush.msra.mxu0 %v3227
        %3335 = vmatpush.msra.mxu0 %v3226
        %3336 = vmatpush.msra.mxu0 %v3225
        %3337 = vmatpush.msra.mxu0 %v3224
        %3338 = vmatpush.msra.mxu0 %v3223
        %3339 = vmatpush.msra.mxu0 %v3222
        %3340 = vmatpush.msra.mxu0 %v3221
        %3341 = vmatpush.msra.mxu0 %v3220
        %3342 = vmatpush.msra.mxu0 %v3219
        %3343 = vmatpush.msra.mxu0 %v3218
        %3344 = vmatmul.f32.gmra.mxu0 %v3307
        %v3345 = vpop.f32.mrf.mxu0
        %v3346 = vadd.f32 0.0, %v3345
        %3347 = vdwg.mxu0
        %v3348 = vld [vmem:[#allocation22] sm:$0xff]
        %s3349 = scalar_lea.vmem %s57, 8
        %v3350 = vld [vmem:[%s3349] sm:$0xff]
        %3352 = vset.pattern.permute.xlu0 0
        %3353 = vperm.xlu0 %3352, %v3350
        %v3354 = vpop.permute.xlu0 %3353
        %v3357 = vsel %vm3275, %v3348, 0
        %3359 = vmatpush.msra.mxu0 0.0
        %3360 = vmatpush.msra.mxu0 0.0
        %3361 = vmatpush.msra.mxu0 0.0
        %3362 = vmatpush.msra.mxu0 0.0
        %3363 = vmatpush.msra.mxu0 0.0
        %3364 = vmatpush.msra.mxu0 0.0
        %3365 = vmatpush.msra.mxu0 0.0
        %3366 = vmatpush.msra.mxu0 0.0
        %3367 = vmatpush.msra.mxu0 0.0
        %3368 = vmatpush.msra.mxu0 0.0
        %3369 = vmatpush.msra.mxu0 0.0
        %3370 = vmatpush.msra.mxu0 0.0
        %3371 = vmatpush.msra.mxu0 0.0
        %3372 = vmatpush.msra.mxu0 %v3346
        %3373 = vmatpush.msra.mxu0 %v3307
        %3374 = vmatpush.msra.mxu0 %v3326
        %3375 = vmatmul.f32.gmra.mxu0 %v3357
        %v3376 = vpop.f32.mrf.mxu0
        %v3377 = vadd.f32 %v3354, %v3376
        %3378 = vdwg.mxu0
        %v3379 = vmax.f32 %v3377, 0.0
        %3380 = vst [vmem:[%s1186] sm:$0xff] %v3379
        %s3381 = sand.u32 %s726, 1
        %s3382 = scalar_lea.sflag [#allocation4], %s3381
        %s3383 = sand.u32 %s726, 1
        %s3384 = smul.addr %s3383, 8
        %s3385 = scalar_lea.vmem [#allocation23], %s3384
        // Predicated region
        $region189: #{tpu_custom_call.1} parent=135 // pred_check
          %p3386 = pneg %p736
        $region190: #{tpu_custom_call.1} parent=135 // pred_check_branch
          %3388 = sbr.rel (%p3386) target = $region192
        $region191: #{tpu_custom_call.1} parent=135 // pred_region
          %3390 = vsyncadd %s3382, 0
          %s3391 = smul.addr %s84, 8
          %s3392 = scalar_lea.hbm %s59, %s3391
          %s3394 = sshll.u32 %s3385, 4
          %s3395 = int_to_ptr.vmem [resolvable:$true] %s3394
          %s3396 = sshll.u32 %s3392, 4
          %s3397 = int_to_ptr.hbm [resolvable:$true] %s3396
          %3399 = dma.vmem_to_hbm [thread:$0]  %s3395, 128, %s3397, %s3382
        $region192: #{tpu_custom_call.1} parent=135 // pred_fallthru
          _
      $region136: #{tpu_custom_call.1} parent=5 // pred_fallthru
        _
      %p3400 = scmp.le.s32.totalorder 2, %s79
      // Predicated region
      $region193: #{tpu_custom_call.1} parent=5 // pred_check
        %p3401 = pneg %p3400
      $region194: #{tpu_custom_call.1} parent=5 // pred_check_branch
        %3403 = sbr.rel (%p3401) target = $region196
      $region195: #{tpu_custom_call.1} parent=5 // pred_region
        %s3404 = ssub.s32 %s79, 2
        // Predicated region
        $region197: #{tpu_custom_call.1} parent=195 // pred_check
          %p3405 = pneg %p742
        $region198: #{tpu_custom_call.1} parent=195 // pred_check_branch
          %3407 = sbr.rel (%p3405) target = $region200
        $region199: #{tpu_custom_call.1} parent=195 // pred_region
          %s3408 = sand.u32 %s727, 1
          %s3409 = scalar_lea.sflag [#allocation4], %s3408
          %s3410 = sand.u32 %s727, 1
          %s3411 = smul.addr %s3410, 8
          %s3412 = scalar_lea.vmem [#allocation23], %s3411
          %3414 = dma.done %s3409, 128
        $region200: #{tpu_custom_call.1} parent=195 // pred_fallthru
          _
      $region196: #{tpu_custom_call.1} parent=5 // pred_fallthru
        _
    $region6: #{tpu_custom_call.1} parent=1 // loop_footer
      %s83 = sadd.s32 1, %s79
    $region7: #{tpu_custom_call.1} parent=1 // loop_footer_branch
      %78 = sbr.rel target = $region3
    $region8: #{tpu_custom_call.1} parent=1 // loop_exit
      _
    %3415 = vsyncpa [#allocation3], 1
    %s3416 = scalar_lea.sflag [#allocation3], 1
    %3417 = vsyncpa %s3416, 1
    %3418 = vsyncpa [#allocation6], 1
    %s3419 = scalar_lea.sflag [#allocation6], 1
    %3420 = vsyncpa %s3419, 1
    %3421 = vsyncpa [#allocation9], 1
    %3422 = vsyncpa [#allocation12], 1
    %3423 = vsyncpa [#allocation15], 1
    %3424 = vsyncpa [#allocation18], 1
    %3425 = vsyncpa [#allocation21], 1
    %3426 = vsyncpa [#allocation4], 1
    %s3427 = scalar_lea.sflag [#allocation4], 1
    %3428 = vsyncpa %s3427, 1

</llo_original>
